<compile_context>
chip_gen: v7x
topology: tpu7x:2x2x1
jax: 0.10.0
libtpu: 0.0.40
codegen_flags: <defaults>
</compile_context>

<pallas_src>
import functools

import jax
import jax.numpy as jnp
from jax import lax
from jax.experimental import pallas as pl
from jax.experimental.pallas import tpu as pltpu

INPUT_SIZE = 2
HIDDEN = 64
NUM_LAYERS = 2
OUTPUT_SIZE = 2


def lstm_xtc_kernel(x_ref,                     # (T*B, I)   time-major, flattened
                    wih0_ref,                  # (I, 4H)    pre-scaled (i,f,o * 0.5)
                    whh0_ref,                  # (H, 4H)    pre-scaled
                    b0_ref,                    # (1, 4H)    pre-scaled, b_ih+b_hh
                    w1_ref,                    # (2H, 4H)   [wih1; whh1] stacked, pre-scaled
                    b1_ref,                    # (1, 4H)    pre-scaled, b_ih+b_hh
                    wfc_ref,                   # (H, O)
                    bfc_ref,                   # (1, O)
                    out_ref,                   # (T*B, O)
                    xp_ref,                    # scratch (T*B, 4H) f32
                    hs_ref,                    # scratch (T*B, H)  f32
                    *, B, T, H):
    f32 = jnp.float32

    # ---- Prologue: layer-0 input projection for ALL timesteps at once. ----
    xp_ref[...] = (jnp.dot(x_ref[...], wih0_ref[...],
                           preferred_element_type=f32)
                   + b0_ref[...])                              # (T*B, 4H)

    # Hoisted loop-invariant broadcast (JAX doesn't CSE broadcast_in_dim).
    b1b = jnp.broadcast_to(b1_ref[...], (B, 4 * H))            # (B, 4H)

    def activations(pre):
        # i/f/o columns were pre-scaled by 0.5 in the wrapper, so a single
        # full-width tanh implements sigmoid for i/f/o and tanh for g:
        #   sigmoid(z) = 0.5 * tanh(0.5 * z) + 0.5
        t = jnp.tanh(pre)                                      # one EUP pass, (B, 4H)
        i_g = 0.5 * t[:, 0 * H:1 * H] + 0.5
        f_g = 0.5 * t[:, 1 * H:2 * H] + 0.5
        g_g = t[:, 2 * H:3 * H]
        o_g = 0.5 * t[:, 3 * H:4 * H] + 0.5
        return i_g, f_g, g_g, o_g

    zeros = jnp.zeros((B, H), f32)
    h0, c0, h1, c1 = zeros, zeros, zeros, zeros

    # Static unroll over the (small, fixed) sequence length: state stays in
    # vregs, and the scheduler gets full cross-step visibility.
    for t in range(T):
        row = t * B                                            # static, sublane-aligned

        # ---- layer 0: only the recurrent matmul (K=H) remains per step ----
        pre0 = xp_ref[row:row + B, :] + jnp.dot(
            h0, whh0_ref[...], preferred_element_type=f32)     # (B, 4H)
        i0, f0, g0, o0 = activations(pre0)
        c0 = f0 * c0 + i0 * g0
        h0 = o0 * jnp.tanh(c0)

        # ---- layer 1: fused input + recurrent matmul, K = 2H = 128 ----
        hin = jnp.concatenate([h0, h1], axis=1)                # (B, 2H) lane-concat
        pre1 = jnp.dot(hin, w1_ref[...],
                       preferred_element_type=f32) + b1b       # (B, 4H)
        i1, f1, g1, o1 = activations(pre1)
        c1 = f1 * c1 + i1 * g1
        h1 = o1 * jnp.tanh(c1)

        hs_ref[row:row + B, :] = h1                            # off critical path

    # ---- Epilogue: one FC matmul + a single store for the whole sequence ----
    y = (jnp.dot(hs_ref[...], wfc_ref[...], preferred_element_type=f32)
         + bfc_ref[...])                                       # (T*B, O)
    out_ref[...] = y.astype(out_ref.dtype)


def init_params(key, input_size=INPUT_SIZE, hidden=HIDDEN, output_size=OUTPUT_SIZE):
    """Deterministic PyTorch-style init: U(-1/sqrt(H), 1/sqrt(H))."""
    ks = jax.random.split(key, 11)
    s = 1.0 / jnp.sqrt(hidden)
    u = lambda k, shape: jax.random.uniform(k, shape, jnp.float32, -s, s)
    return {
        "w_ih_l0": u(ks[0], (4 * hidden, input_size)),
        "w_hh_l0": u(ks[1], (4 * hidden, hidden)),
        "b_ih_l0": u(ks[2], (4 * hidden,)),
        "b_hh_l0": u(ks[3], (4 * hidden,)),
        "w_ih_l1": u(ks[4], (4 * hidden, hidden)),
        "w_hh_l1": u(ks[5], (4 * hidden, hidden)),
        "b_ih_l1": u(ks[6], (4 * hidden,)),
        "b_hh_l1": u(ks[7], (4 * hidden,)),
        "fc_w": u(ks[8], (output_size, hidden)),
        "fc_b": u(ks[9], (output_size,)),
    }


def lstm_xtc_forward(x, p):
    """x: (B, T, I) float32 (batch_first, like PyTorch).  Returns (B, T, O)."""
    B, T, I = x.shape
    H = HIDDEN
    O = OUTPUT_SIZE

    # Time-major, flattened input so the kernel takes sublane-aligned row
    # slices per timestep.
    x_flat = jnp.transpose(x, (1, 0, 2)).reshape(T * B, I).astype(jnp.float32)

    # Pre-scale i/f/o gate columns & biases by 0.5 (tanh-based sigmoid trick).
    # PyTorch gate column order after transpose: [i | f | g | o].
    gate_scale = jnp.concatenate([
        jnp.full((H,), 0.5, jnp.float32),
        jnp.full((H,), 0.5, jnp.float32),
        jnp.ones((H,), jnp.float32),
        jnp.full((H,), 0.5, jnp.float32)])                      # (4H,)

    wih0 = p["w_ih_l0"].T * gate_scale[None, :]                 # (I, 4H)
    whh0 = p["w_hh_l0"].T * gate_scale[None, :]                 # (H, 4H)
    b0 = ((p["b_ih_l0"] + p["b_hh_l0"]) * gate_scale).reshape(1, 4 * H)

    # Layer 1: stack input & recurrent weights -> single K=2H matmul per step.
    w1 = jnp.concatenate([p["w_ih_l1"].T, p["w_hh_l1"].T], axis=0) \
        * gate_scale[None, :]                                   # (2H, 4H)
    b1 = ((p["b_ih_l1"] + p["b_hh_l1"]) * gate_scale).reshape(1, 4 * H)

    wfc = p["fc_w"].T                                           # (H, O)
    bfc = p["fc_b"].reshape(1, O)                               # (1, O)

    vmem = pl.BlockSpec(memory_space=pltpu.MemorySpace.VMEM)
    out_flat = pl.pallas_call(
        functools.partial(lstm_xtc_kernel, B=B, T=T, H=H),
        out_shape=jax.ShapeDtypeStruct((T * B, O), jnp.float32),
        in_specs=[vmem] * 8,
        out_specs=vmem,
        scratch_shapes=[
            pltpu.VMEM((T * B, 4 * H), jnp.float32),            # x_proj
            pltpu.VMEM((T * B, H), jnp.float32),                # h1 per step
        ],
    )(x_flat, wih0, whh0, b0, w1, b1, wfc, bfc)

    return jnp.transpose(out_flat.reshape(T, B, O), (1, 0, 2))  # (B, T, O)


def lstm_xtc_reference(x, p):
    """Pure-JAX reference (matches PyTorch nn.LSTM + nn.Linear semantics)."""
    def layer(xs, w_ih, w_hh, b_ih, b_hh):
        B = xs.shape[0]
        H = w_hh.shape[1]

        def step(carry, x_t):
            h, c = carry
            gates = x_t @ w_ih.T + b_ih + h @ w_hh.T + b_hh
            i_g, f_g, g_g, o_g = jnp.split(gates, 4, axis=-1)
            i_g = jax.nn.sigmoid(i_g)
            f_g = jax.nn.sigmoid(f_g)
            g_g = jnp.tanh(g_g)
            o_g = jax.nn.sigmoid(o_g)
            c = f_g * c + i_g * g_g
            h = o_g * jnp.tanh(c)
            return (h, c), h

        init = (jnp.zeros((B, H), jnp.float32), jnp.zeros((B, H), jnp.float32))
        _, hs = lax.scan(step, init, jnp.transpose(xs, (1, 0, 2)))
        return jnp.transpose(hs, (1, 0, 2))

    h = layer(x, p["w_ih_l0"], p["w_hh_l0"], p["b_ih_l0"], p["b_hh_l0"])
    h = layer(h, p["w_ih_l1"], p["w_hh_l1"], p["b_ih_l1"], p["b_hh_l1"])
    return h @ p["fc_w"].T + p["fc_b"]


if __name__ == "__main__":
    key = jax.random.PRNGKey(0)
    k_param, k_x = jax.random.split(key)

    B, T = 8, 8
    x = jax.random.normal(k_x, (B, T, INPUT_SIZE), jnp.float32)
    params = init_params(k_param)

    out = jax.block_until_ready(lstm_xtc_forward(x, params))
    ref = jax.block_until_ready(lstm_xtc_reference(x, params))

    assert out.shape == (B, T, OUTPUT_SIZE), out.shape
    assert jnp.allclose(out, ref, atol=1e-4, rtol=1e-4), float(jnp.max(jnp.abs(out - ref)))
    print("KERNEL_OK")
</pallas_src>

<mosaic_0001>
module attributes {stable_mosaic.version = 11 : i64} {
  func.func @lstm_xtc_kernel(%arg0: memref<64x2xf32, #tpu.memory_space<vmem>>, %arg1: memref<2x256xf32, #tpu.memory_space<vmem>>, %arg2: memref<64x256xf32, #tpu.memory_space<vmem>>, %arg3: memref<1x256xf32, #tpu.memory_space<vmem>>, %arg4: memref<128x256xf32, #tpu.memory_space<vmem>>, %arg5: memref<1x256xf32, #tpu.memory_space<vmem>>, %arg6: memref<64x2xf32, #tpu.memory_space<vmem>>, %arg7: memref<1x2xf32, #tpu.memory_space<vmem>>, %arg8: memref<64x2xf32, #tpu.memory_space<vmem>>, %arg9: memref<64x256xf32, #tpu.memory_space<vmem>>, %arg10: memref<64x64xf32, #tpu.memory_space<vmem>>) attributes {dimension_semantics = [], scalar_prefetch = 0 : i64, scratch_operands = 2 : i64, tpu.core_type = #tpu.core_type<tc>} {
    %c0 = arith.constant 0 : index
    %c0_0 = arith.constant 0 : index
    %0 = vector.load %arg0[%c0, %c0_0] : memref<64x2xf32, #tpu.memory_space<vmem>>, vector<64x2xf32>
    %c0_1 = arith.constant 0 : index
    %c0_2 = arith.constant 0 : index
    %1 = vector.load %arg1[%c0_1, %c0_2] : memref<2x256xf32, #tpu.memory_space<vmem>>, vector<2x256xf32>
    %cst = arith.constant dense<0.000000e+00> : vector<64x256xf32>
    %2 = tpu.matmul %0, %1, %cst {dimension_numbers = #tpu.dot_dimension_numbers<[1], [0], [0], [1], [0, 0, 1, 1], [], []>} : vector<64x2xf32>, vector<2x256xf32>, vector<64x256xf32> -> vector<64x256xf32>
    %c0_3 = arith.constant 0 : index
    %c0_4 = arith.constant 0 : index
    %3 = vector.load %arg3[%c0_3, %c0_4] : memref<1x256xf32, #tpu.memory_space<vmem>>, vector<1x256xf32>
    %4 = vector.broadcast %3 : vector<1x256xf32> to vector<64x256xf32>
    %5 = arith.addf %2, %4 : vector<64x256xf32>
    %c0_5 = arith.constant 0 : index
    %c0_6 = arith.constant 0 : index
    %6 = vector.load %arg9[%c0_5, %c0_6] : memref<64x256xf32, #tpu.memory_space<vmem>>, vector<64x256xf32>
    tpu.vector_store %arg9[%c0_5, %c0_6], %5 {strides = array<i32>} : memref<64x256xf32, #tpu.memory_space<vmem>>, vector<64x256xf32>,
    %c0_7 = arith.constant 0 : index
    %c0_8 = arith.constant 0 : index
    %7 = vector.load %arg5[%c0_7, %c0_8] : memref<1x256xf32, #tpu.memory_space<vmem>>, vector<1x256xf32>
    %8 = vector.shape_cast %7 : vector<1x256xf32> to vector<1x256xf32>
    %9 = vector.broadcast %8 : vector<1x256xf32> to vector<8x256xf32>
    %cst_9 = arith.constant 0.000000e+00 : f32
    %10 = vector.broadcast %cst_9 : f32 to vector<8x64xf32>
    %c0_10 = arith.constant 0 : index
    %c0_11 = arith.constant 0 : index
    %11 = vector.load %arg9[%c0_10, %c0_11] : memref<64x256xf32, #tpu.memory_space<vmem>>, vector<8x256xf32>
    %c0_12 = arith.constant 0 : index
    %c0_13 = arith.constant 0 : index
    %12 = vector.load %arg2[%c0_12, %c0_13] : memref<64x256xf32, #tpu.memory_space<vmem>>, vector<64x256xf32>
    %cst_14 = arith.constant dense<0.000000e+00> : vector<8x256xf32>
    %13 = tpu.matmul %10, %12, %cst_14 {dimension_numbers = #tpu.dot_dimension_numbers<[1], [0], [0], [1], [0, 0, 1, 1], [], []>} : vector<8x64xf32>, vector<64x256xf32>, vector<8x256xf32> -> vector<8x256xf32>
    %14 = arith.addf %11, %13 : vector<8x256xf32>
    %15 = math.tanh %14 : vector<8x256xf32>
    %16 = vector.extract_strided_slice %15 {offsets = [0, 0], sizes = [8, 64], strides = [1, 1]} : vector<8x256xf32> to vector<8x64xf32>
    %cst_15 = arith.constant 5.000000e-01 : f32
    %17 = vector.broadcast %cst_15 : f32 to vector<8x64xf32>
    %18 = arith.mulf %17, %16 : vector<8x64xf32>
    %cst_16 = arith.constant 5.000000e-01 : f32
    %19 = vector.broadcast %cst_16 : f32 to vector<8x64xf32>
    %20 = arith.addf %18, %19 : vector<8x64xf32>
    %21 = vector.extract_strided_slice %15 {offsets = [0, 64], sizes = [8, 64], strides = [1, 1]} : vector<8x256xf32> to vector<8x64xf32>
    %cst_17 = arith.constant 5.000000e-01 : f32
    %22 = vector.broadcast %cst_17 : f32 to vector<8x64xf32>
    %23 = arith.mulf %22, %21 : vector<8x64xf32>
    %cst_18 = arith.constant 5.000000e-01 : f32
    %24 = vector.broadcast %cst_18 : f32 to vector<8x64xf32>
    %25 = arith.addf %23, %24 : vector<8x64xf32>
    %26 = vector.extract_strided_slice %15 {offsets = [0, 128], sizes = [8, 64], strides = [1, 1]} : vector<8x256xf32> to vector<8x64xf32>
    %27 = vector.extract_strided_slice %15 {offsets = [0, 192], sizes = [8, 64], strides = [1, 1]} : vector<8x256xf32> to vector<8x64xf32>
    %cst_19 = arith.constant 5.000000e-01 : f32
    %28 = vector.broadcast %cst_19 : f32 to vector<8x64xf32>
    %29 = arith.mulf %28, %27 : vector<8x64xf32>
    %cst_20 = arith.constant 5.000000e-01 : f32
    %30 = vector.broadcast %cst_20 : f32 to vector<8x64xf32>
    %31 = arith.addf %29, %30 : vector<8x64xf32>
    %32 = arith.mulf %25, %10 : vector<8x64xf32>
    %33 = arith.mulf %20, %26 : vector<8x64xf32>
    %34 = arith.addf %32, %33 : vector<8x64xf32>
    %35 = math.tanh %34 : vector<8x64xf32>
    %36 = arith.mulf %31, %35 : vector<8x64xf32>
    %37 = tpu.concatenate %36, %10 in 1 : vector<8x64xf32>, vector<8x64xf32> -> vector<8x128xf32>
    %c0_21 = arith.constant 0 : index
    %c0_22 = arith.constant 0 : index
    %38 = vector.load %arg4[%c0_21, %c0_22] : memref<128x256xf32, #tpu.memory_space<vmem>>, vector<128x256xf32>
    %cst_23 = arith.constant dense<0.000000e+00> : vector<8x256xf32>
    %39 = tpu.matmul %37, %38, %cst_23 {dimension_numbers = #tpu.dot_dimension_numbers<[1], [0], [0], [1], [0, 0, 1, 1], [], []>} : vector<8x128xf32>, vector<128x256xf32>, vector<8x256xf32> -> vector<8x256xf32>
    %40 = arith.addf %39, %9 : vector<8x256xf32>
    %41 = math.tanh %40 : vector<8x256xf32>
    %42 = vector.extract_strided_slice %41 {offsets = [0, 0], sizes = [8, 64], strides = [1, 1]} : vector<8x256xf32> to vector<8x64xf32>
    %cst_24 = arith.constant 5.000000e-01 : f32
    %43 = vector.broadcast %cst_24 : f32 to vector<8x64xf32>
    %44 = arith.mulf %43, %42 : vector<8x64xf32>
    %cst_25 = arith.constant 5.000000e-01 : f32
    %45 = vector.broadcast %cst_25 : f32 to vector<8x64xf32>
    %46 = arith.addf %44, %45 : vector<8x64xf32>
    %47 = vector.extract_strided_slice %41 {offsets = [0, 64], sizes = [8, 64], strides = [1, 1]} : vector<8x256xf32> to vector<8x64xf32>
    %cst_26 = arith.constant 5.000000e-01 : f32
    %48 = vector.broadcast %cst_26 : f32 to vector<8x64xf32>
    %49 = arith.mulf %48, %47 : vector<8x64xf32>
    %cst_27 = arith.constant 5.000000e-01 : f32
    %50 = vector.broadcast %cst_27 : f32 to vector<8x64xf32>
    %51 = arith.addf %49, %50 : vector<8x64xf32>
    %52 = vector.extract_strided_slice %41 {offsets = [0, 128], sizes = [8, 64], strides = [1, 1]} : vector<8x256xf32> to vector<8x64xf32>
    %53 = vector.extract_strided_slice %41 {offsets = [0, 192], sizes = [8, 64], strides = [1, 1]} : vector<8x256xf32> to vector<8x64xf32>
    %cst_28 = arith.constant 5.000000e-01 : f32
    %54 = vector.broadcast %cst_28 : f32 to vector<8x64xf32>
    %55 = arith.mulf %54, %53 : vector<8x64xf32>
    %cst_29 = arith.constant 5.000000e-01 : f32
    %56 = vector.broadcast %cst_29 : f32 to vector<8x64xf32>
    %57 = arith.addf %55, %56 : vector<8x64xf32>
    %58 = arith.mulf %51, %10 : vector<8x64xf32>
    %59 = arith.mulf %46, %52 : vector<8x64xf32>
    %60 = arith.addf %58, %59 : vector<8x64xf32>
    %61 = math.tanh %60 : vector<8x64xf32>
    %62 = arith.mulf %57, %61 : vector<8x64xf32>
    %c0_30 = arith.constant 0 : index
    %c0_31 = arith.constant 0 : index
    %63 = vector.load %arg10[%c0_30, %c0_31] : memref<64x64xf32, #tpu.memory_space<vmem>>, vector<8x64xf32>
    tpu.vector_store %arg10[%c0_30, %c0_31], %62 {strides = array<i32>} : memref<64x64xf32, #tpu.memory_space<vmem>>, vector<8x64xf32>,
    %c8 = arith.constant 8 : index
    %c0_32 = arith.constant 0 : index
    %64 = vector.load %arg9[%c8, %c0_32] : memref<64x256xf32, #tpu.memory_space<vmem>>, vector<8x256xf32>
    %c0_33 = arith.constant 0 : index
    %c0_34 = arith.constant 0 : index
    %65 = vector.load %arg2[%c0_33, %c0_34] : memref<64x256xf32, #tpu.memory_space<vmem>>, vector<64x256xf32>
    %cst_35 = arith.constant dense<0.000000e+00> : vector<8x256xf32>
    %66 = tpu.matmul %36, %65, %cst_35 {dimension_numbers = #tpu.dot_dimension_numbers<[1], [0], [0], [1], [0, 0, 1, 1], [], []>} : vector<8x64xf32>, vector<64x256xf32>, vector<8x256xf32> -> vector<8x256xf32>
    %67 = arith.addf %64, %66 : vector<8x256xf32>
    %68 = math.tanh %67 : vector<8x256xf32>
    %69 = vector.extract_strided_slice %68 {offsets = [0, 0], sizes = [8, 64], strides = [1, 1]} : vector<8x256xf32> to vector<8x64xf32>
    %cst_36 = arith.constant 5.000000e-01 : f32
    %70 = vector.broadcast %cst_36 : f32 to vector<8x64xf32>
    %71 = arith.mulf %70, %69 : vector<8x64xf32>
    %cst_37 = arith.constant 5.000000e-01 : f32
    %72 = vector.broadcast %cst_37 : f32 to vector<8x64xf32>
    %73 = arith.addf %71, %72 : vector<8x64xf32>
    %74 = vector.extract_strided_slice %68 {offsets = [0, 64], sizes = [8, 64], strides = [1, 1]} : vector<8x256xf32> to vector<8x64xf32>
    %cst_38 = arith.constant 5.000000e-01 : f32
    %75 = vector.broadcast %cst_38 : f32 to vector<8x64xf32>
    %76 = arith.mulf %75, %74 : vector<8x64xf32>
    %cst_39 = arith.constant 5.000000e-01 : f32
    %77 = vector.broadcast %cst_39 : f32 to vector<8x64xf32>
    %78 = arith.addf %76, %77 : vector<8x64xf32>
    %79 = vector.extract_strided_slice %68 {offsets = [0, 128], sizes = [8, 64], strides = [1, 1]} : vector<8x256xf32> to vector<8x64xf32>
    %80 = vector.extract_strided_slice %68 {offsets = [0, 192], sizes = [8, 64], strides = [1, 1]} : vector<8x256xf32> to vector<8x64xf32>
    %cst_40 = arith.constant 5.000000e-01 : f32
    %81 = vector.broadcast %cst_40 : f32 to vector<8x64xf32>
    %82 = arith.mulf %81, %80 : vector<8x64xf32>
    %cst_41 = arith.constant 5.000000e-01 : f32
    %83 = vector.broadcast %cst_41 : f32 to vector<8x64xf32>
    %84 = arith.addf %82, %83 : vector<8x64xf32>
    %85 = arith.mulf %78, %34 : vector<8x64xf32>
    %86 = arith.mulf %73, %79 : vector<8x64xf32>
    %87 = arith.addf %85, %86 : vector<8x64xf32>
    %88 = math.tanh %87 : vector<8x64xf32>
    %89 = arith.mulf %84, %88 : vector<8x64xf32>
    %90 = tpu.concatenate %89, %62 in 1 : vector<8x64xf32>, vector<8x64xf32> -> vector<8x128xf32>
    %c0_42 = arith.constant 0 : index
    %c0_43 = arith.constant 0 : index
    %91 = vector.load %arg4[%c0_42, %c0_43] : memref<128x256xf32, #tpu.memory_space<vmem>>, vector<128x256xf32>
    %cst_44 = arith.constant dense<0.000000e+00> : vector<8x256xf32>
    %92 = tpu.matmul %90, %91, %cst_44 {dimension_numbers = #tpu.dot_dimension_numbers<[1], [0], [0], [1], [0, 0, 1, 1], [], []>} : vector<8x128xf32>, vector<128x256xf32>, vector<8x256xf32> -> vector<8x256xf32>
    %93 = arith.addf %92, %9 : vector<8x256xf32>
    %94 = math.tanh %93 : vector<8x256xf32>
    %95 = vector.extract_strided_slice %94 {offsets = [0, 0], sizes = [8, 64], strides = [1, 1]} : vector<8x256xf32> to vector<8x64xf32>
    %cst_45 = arith.constant 5.000000e-01 : f32
    %96 = vector.broadcast %cst_45 : f32 to vector<8x64xf32>
    %97 = arith.mulf %96, %95 : vector<8x64xf32>
    %cst_46 = arith.constant 5.000000e-01 : f32
    %98 = vector.broadcast %cst_46 : f32 to vector<8x64xf32>
    %99 = arith.addf %97, %98 : vector<8x64xf32>
    %100 = vector.extract_strided_slice %94 {offsets = [0, 64], sizes = [8, 64], strides = [1, 1]} : vector<8x256xf32> to vector<8x64xf32>
    %cst_47 = arith.constant 5.000000e-01 : f32
    %101 = vector.broadcast %cst_47 : f32 to vector<8x64xf32>
    %102 = arith.mulf %101, %100 : vector<8x64xf32>
    %cst_48 = arith.constant 5.000000e-01 : f32
    %103 = vector.broadcast %cst_48 : f32 to vector<8x64xf32>
    %104 = arith.addf %102, %103 : vector<8x64xf32>
    %105 = vector.extract_strided_slice %94 {offsets = [0, 128], sizes = [8, 64], strides = [1, 1]} : vector<8x256xf32> to vector<8x64xf32>
    %106 = vector.extract_strided_slice %94 {offsets = [0, 192], sizes = [8, 64], strides = [1, 1]} : vector<8x256xf32> to vector<8x64xf32>
    %cst_49 = arith.constant 5.000000e-01 : f32
    %107 = vector.broadcast %cst_49 : f32 to vector<8x64xf32>
    %108 = arith.mulf %107, %106 : vector<8x64xf32>
    %cst_50 = arith.constant 5.000000e-01 : f32
    %109 = vector.broadcast %cst_50 : f32 to vector<8x64xf32>
    %110 = arith.addf %108, %109 : vector<8x64xf32>
    %111 = arith.mulf %104, %60 : vector<8x64xf32>
    %112 = arith.mulf %99, %105 : vector<8x64xf32>
    %113 = arith.addf %111, %112 : vector<8x64xf32>
    %114 = math.tanh %113 : vector<8x64xf32>
    %115 = arith.mulf %110, %114 : vector<8x64xf32>
    %c8_51 = arith.constant 8 : index
    %c0_52 = arith.constant 0 : index
    %116 = vector.load %arg10[%c8_51, %c0_52] : memref<64x64xf32, #tpu.memory_space<vmem>>, vector<8x64xf32>
    tpu.vector_store %arg10[%c8_51, %c0_52], %115 {strides = array<i32>} : memref<64x64xf32, #tpu.memory_space<vmem>>, vector<8x64xf32>,
    %c16 = arith.constant 16 : index
    %c0_53 = arith.constant 0 : index
    %117 = vector.load %arg9[%c16, %c0_53] : memref<64x256xf32, #tpu.memory_space<vmem>>, vector<8x256xf32>
    %c0_54 = arith.constant 0 : index
    %c0_55 = arith.constant 0 : index
    %118 = vector.load %arg2[%c0_54, %c0_55] : memref<64x256xf32, #tpu.memory_space<vmem>>, vector<64x256xf32>
    %cst_56 = arith.constant dense<0.000000e+00> : vector<8x256xf32>
    %119 = tpu.matmul %89, %118, %cst_56 {dimension_numbers = #tpu.dot_dimension_numbers<[1], [0], [0], [1], [0, 0, 1, 1], [], []>} : vector<8x64xf32>, vector<64x256xf32>, vector<8x256xf32> -> vector<8x256xf32>
    %120 = arith.addf %117, %119 : vector<8x256xf32>
    %121 = math.tanh %120 : vector<8x256xf32>
    %122 = vector.extract_strided_slice %121 {offsets = [0, 0], sizes = [8, 64], strides = [1, 1]} : vector<8x256xf32> to vector<8x64xf32>
    %cst_57 = arith.constant 5.000000e-01 : f32
    %123 = vector.broadcast %cst_57 : f32 to vector<8x64xf32>
    %124 = arith.mulf %123, %122 : vector<8x64xf32>
    %cst_58 = arith.constant 5.000000e-01 : f32
    %125 = vector.broadcast %cst_58 : f32 to vector<8x64xf32>
    %126 = arith.addf %124, %125 : vector<8x64xf32>
    %127 = vector.extract_strided_slice %121 {offsets = [0, 64], sizes = [8, 64], strides = [1, 1]} : vector<8x256xf32> to vector<8x64xf32>
    %cst_59 = arith.constant 5.000000e-01 : f32
    %128 = vector.broadcast %cst_59 : f32 to vector<8x64xf32>
    %129 = arith.mulf %128, %127 : vector<8x64xf32>
    %cst_60 = arith.constant 5.000000e-01 : f32
    %130 = vector.broadcast %cst_60 : f32 to vector<8x64xf32>
    %131 = arith.addf %129, %130 : vector<8x64xf32>
    %132 = vector.extract_strided_slice %121 {offsets = [0, 128], sizes = [8, 64], strides = [1, 1]} : vector<8x256xf32> to vector<8x64xf32>
    %133 = vector.extract_strided_slice %121 {offsets = [0, 192], sizes = [8, 64], strides = [1, 1]} : vector<8x256xf32> to vector<8x64xf32>
    %cst_61 = arith.constant 5.000000e-01 : f32
    %134 = vector.broadcast %cst_61 : f32 to vector<8x64xf32>
    %135 = arith.mulf %134, %133 : vector<8x64xf32>
    %cst_62 = arith.constant 5.000000e-01 : f32
    %136 = vector.broadcast %cst_62 : f32 to vector<8x64xf32>
    %137 = arith.addf %135, %136 : vector<8x64xf32>
    %138 = arith.mulf %131, %87 : vector<8x64xf32>
    %139 = arith.mulf %126, %132 : vector<8x64xf32>
    %140 = arith.addf %138, %139 : vector<8x64xf32>
    %141 = math.tanh %140 : vector<8x64xf32>
    %142 = arith.mulf %137, %141 : vector<8x64xf32>
    %143 = tpu.concatenate %142, %115 in 1 : vector<8x64xf32>, vector<8x64xf32> -> vector<8x128xf32>
    %c0_63 = arith.constant 0 : index
    %c0_64 = arith.constant 0 : index
    %144 = vector.load %arg4[%c0_63, %c0_64] : memref<128x256xf32, #tpu.memory_space<vmem>>, vector<128x256xf32>
    %cst_65 = arith.constant dense<0.000000e+00> : vector<8x256xf32>
    %145 = tpu.matmul %143, %144, %cst_65 {dimension_numbers = #tpu.dot_dimension_numbers<[1], [0], [0], [1], [0, 0, 1, 1], [], []>} : vector<8x128xf32>, vector<128x256xf32>, vector<8x256xf32> -> vector<8x256xf32>
    %146 = arith.addf %145, %9 : vector<8x256xf32>
    %147 = math.tanh %146 : vector<8x256xf32>
    %148 = vector.extract_strided_slice %147 {offsets = [0, 0], sizes = [8, 64], strides = [1, 1]} : vector<8x256xf32> to vector<8x64xf32>
    %cst_66 = arith.constant 5.000000e-01 : f32
    %149 = vector.broadcast %cst_66 : f32 to vector<8x64xf32>
    %150 = arith.mulf %149, %148 : vector<8x64xf32>
    %cst_67 = arith.constant 5.000000e-01 : f32
    %151 = vector.broadcast %cst_67 : f32 to vector<8x64xf32>
    %152 = arith.addf %150, %151 : vector<8x64xf32>
    %153 = vector.extract_strided_slice %147 {offsets = [0, 64], sizes = [8, 64], strides = [1, 1]} : vector<8x256xf32> to vector<8x64xf32>
    %cst_68 = arith.constant 5.000000e-01 : f32
    %154 = vector.broadcast %cst_68 : f32 to vector<8x64xf32>
    %155 = arith.mulf %154, %153 : vector<8x64xf32>
    %cst_69 = arith.constant 5.000000e-01 : f32
    %156 = vector.broadcast %cst_69 : f32 to vector<8x64xf32>
    %157 = arith.addf %155, %156 : vector<8x64xf32>
    %158 = vector.extract_strided_slice %147 {offsets = [0, 128], sizes = [8, 64], strides = [1, 1]} : vector<8x256xf32> to vector<8x64xf32>
    %159 = vector.extract_strided_slice %147 {offsets = [0, 192], sizes = [8, 64], strides = [1, 1]} : vector<8x256xf32> to vector<8x64xf32>
    %cst_70 = arith.constant 5.000000e-01 : f32
    %160 = vector.broadcast %cst_70 : f32 to vector<8x64xf32>
    %161 = arith.mulf %160, %159 : vector<8x64xf32>
    %cst_71 = arith.constant 5.000000e-01 : f32
    %162 = vector.broadcast %cst_71 : f32 to vector<8x64xf32>
    %163 = arith.addf %161, %162 : vector<8x64xf32>
    %164 = arith.mulf %157, %113 : vector<8x64xf32>
    %165 = arith.mulf %152, %158 : vector<8x64xf32>
    %166 = arith.addf %164, %165 : vector<8x64xf32>
    %167 = math.tanh %166 : vector<8x64xf32>
    %168 = arith.mulf %163, %167 : vector<8x64xf32>
    %c16_72 = arith.constant 16 : index
    %c0_73 = arith.constant 0 : index
    %169 = vector.load %arg10[%c16_72, %c0_73] : memref<64x64xf32, #tpu.memory_space<vmem>>, vector<8x64xf32>
    tpu.vector_store %arg10[%c16_72, %c0_73], %168 {strides = array<i32>} : memref<64x64xf32, #tpu.memory_space<vmem>>, vector<8x64xf32>,
    %c24 = arith.constant 24 : index
    %c0_74 = arith.constant 0 : index
    %170 = vector.load %arg9[%c24, %c0_74] : memref<64x256xf32, #tpu.memory_space<vmem>>, vector<8x256xf32>
    %c0_75 = arith.constant 0 : index
    %c0_76 = arith.constant 0 : index
    %171 = vector.load %arg2[%c0_75, %c0_76] : memref<64x256xf32, #tpu.memory_space<vmem>>, vector<64x256xf32>
    %cst_77 = arith.constant dense<0.000000e+00> : vector<8x256xf32>
    %172 = tpu.matmul %142, %171, %cst_77 {dimension_numbers = #tpu.dot_dimension_numbers<[1], [0], [0], [1], [0, 0, 1, 1], [], []>} : vector<8x64xf32>, vector<64x256xf32>, vector<8x256xf32> -> vector<8x256xf32>
    %173 = arith.addf %170, %172 : vector<8x256xf32>
    %174 = math.tanh %173 : vector<8x256xf32>
    %175 = vector.extract_strided_slice %174 {offsets = [0, 0], sizes = [8, 64], strides = [1, 1]} : vector<8x256xf32> to vector<8x64xf32>
    %cst_78 = arith.constant 5.000000e-01 : f32
    %176 = vector.broadcast %cst_78 : f32 to vector<8x64xf32>
    %177 = arith.mulf %176, %175 : vector<8x64xf32>
    %cst_79 = arith.constant 5.000000e-01 : f32
    %178 = vector.broadcast %cst_79 : f32 to vector<8x64xf32>
    %179 = arith.addf %177, %178 : vector<8x64xf32>
    %180 = vector.extract_strided_slice %174 {offsets = [0, 64], sizes = [8, 64], strides = [1, 1]} : vector<8x256xf32> to vector<8x64xf32>
    %cst_80 = arith.constant 5.000000e-01 : f32
    %181 = vector.broadcast %cst_80 : f32 to vector<8x64xf32>
    %182 = arith.mulf %181, %180 : vector<8x64xf32>
    %cst_81 = arith.constant 5.000000e-01 : f32
    %183 = vector.broadcast %cst_81 : f32 to vector<8x64xf32>
    %184 = arith.addf %182, %183 : vector<8x64xf32>
    %185 = vector.extract_strided_slice %174 {offsets = [0, 128], sizes = [8, 64], strides = [1, 1]} : vector<8x256xf32> to vector<8x64xf32>
    %186 = vector.extract_strided_slice %174 {offsets = [0, 192], sizes = [8, 64], strides = [1, 1]} : vector<8x256xf32> to vector<8x64xf32>
    %cst_82 = arith.constant 5.000000e-01 : f32
    %187 = vector.broadcast %cst_82 : f32 to vector<8x64xf32>
    %188 = arith.mulf %187, %186 : vector<8x64xf32>
    %cst_83 = arith.constant 5.000000e-01 : f32
    %189 = vector.broadcast %cst_83 : f32 to vector<8x64xf32>
    %190 = arith.addf %188, %189 : vector<8x64xf32>
    %191 = arith.mulf %184, %140 : vector<8x64xf32>
    %192 = arith.mulf %179, %185 : vector<8x64xf32>
    %193 = arith.addf %191, %192 : vector<8x64xf32>
    %194 = math.tanh %193 : vector<8x64xf32>
    %195 = arith.mulf %190, %194 : vector<8x64xf32>
    %196 = tpu.concatenate %195, %168 in 1 : vector<8x64xf32>, vector<8x64xf32> -> vector<8x128xf32>
    %c0_84 = arith.constant 0 : index
    %c0_85 = arith.constant 0 : index
    %197 = vector.load %arg4[%c0_84, %c0_85] : memref<128x256xf32, #tpu.memory_space<vmem>>, vector<128x256xf32>
    %cst_86 = arith.constant dense<0.000000e+00> : vector<8x256xf32>
    %198 = tpu.matmul %196, %197, %cst_86 {dimension_numbers = #tpu.dot_dimension_numbers<[1], [0], [0], [1], [0, 0, 1, 1], [], []>} : vector<8x128xf32>, vector<128x256xf32>, vector<8x256xf32> -> vector<8x256xf32>
    %199 = arith.addf %198, %9 : vector<8x256xf32>
    %200 = math.tanh %199 : vector<8x256xf32>
    %201 = vector.extract_strided_slice %200 {offsets = [0, 0], sizes = [8, 64], strides = [1, 1]} : vector<8x256xf32> to vector<8x64xf32>
    %cst_87 = arith.constant 5.000000e-01 : f32
    %202 = vector.broadcast %cst_87 : f32 to vector<8x64xf32>
    %203 = arith.mulf %202, %201 : vector<8x64xf32>
    %cst_88 = arith.constant 5.000000e-01 : f32
    %204 = vector.broadcast %cst_88 : f32 to vector<8x64xf32>
    %205 = arith.addf %203, %204 : vector<8x64xf32>
    %206 = vector.extract_strided_slice %200 {offsets = [0, 64], sizes = [8, 64], strides = [1, 1]} : vector<8x256xf32> to vector<8x64xf32>
    %cst_89 = arith.constant 5.000000e-01 : f32
    %207 = vector.broadcast %cst_89 : f32 to vector<8x64xf32>
    %208 = arith.mulf %207, %206 : vector<8x64xf32>
    %cst_90 = arith.constant 5.000000e-01 : f32
    %209 = vector.broadcast %cst_90 : f32 to vector<8x64xf32>
    %210 = arith.addf %208, %209 : vector<8x64xf32>
    %211 = vector.extract_strided_slice %200 {offsets = [0, 128], sizes = [8, 64], strides = [1, 1]} : vector<8x256xf32> to vector<8x64xf32>
    %212 = vector.extract_strided_slice %200 {offsets = [0, 192], sizes = [8, 64], strides = [1, 1]} : vector<8x256xf32> to vector<8x64xf32>
    %cst_91 = arith.constant 5.000000e-01 : f32
    %213 = vector.broadcast %cst_91 : f32 to vector<8x64xf32>
    %214 = arith.mulf %213, %212 : vector<8x64xf32>
    %cst_92 = arith.constant 5.000000e-01 : f32
    %215 = vector.broadcast %cst_92 : f32 to vector<8x64xf32>
    %216 = arith.addf %214, %215 : vector<8x64xf32>
    %217 = arith.mulf %210, %166 : vector<8x64xf32>
    %218 = arith.mulf %205, %211 : vector<8x64xf32>
    %219 = arith.addf %217, %218 : vector<8x64xf32>
    %220 = math.tanh %219 : vector<8x64xf32>
    %221 = arith.mulf %216, %220 : vector<8x64xf32>
    %c24_93 = arith.constant 24 : index
    %c0_94 = arith.constant 0 : index
    %222 = vector.load %arg10[%c24_93, %c0_94] : memref<64x64xf32, #tpu.memory_space<vmem>>, vector<8x64xf32>
    tpu.vector_store %arg10[%c24_93, %c0_94], %221 {strides = array<i32>} : memref<64x64xf32, #tpu.memory_space<vmem>>, vector<8x64xf32>,
    %c32 = arith.constant 32 : index
    %c0_95 = arith.constant 0 : index
    %223 = vector.load %arg9[%c32, %c0_95] : memref<64x256xf32, #tpu.memory_space<vmem>>, vector<8x256xf32>
    %c0_96 = arith.constant 0 : index
    %c0_97 = arith.constant 0 : index
    %224 = vector.load %arg2[%c0_96, %c0_97] : memref<64x256xf32, #tpu.memory_space<vmem>>, vector<64x256xf32>
    %cst_98 = arith.constant dense<0.000000e+00> : vector<8x256xf32>
    %225 = tpu.matmul %195, %224, %cst_98 {dimension_numbers = #tpu.dot_dimension_numbers<[1], [0], [0], [1], [0, 0, 1, 1], [], []>} : vector<8x64xf32>, vector<64x256xf32>, vector<8x256xf32> -> vector<8x256xf32>
    %226 = arith.addf %223, %225 : vector<8x256xf32>
    %227 = math.tanh %226 : vector<8x256xf32>
    %228 = vector.extract_strided_slice %227 {offsets = [0, 0], sizes = [8, 64], strides = [1, 1]} : vector<8x256xf32> to vector<8x64xf32>
    %cst_99 = arith.constant 5.000000e-01 : f32
    %229 = vector.broadcast %cst_99 : f32 to vector<8x64xf32>
    %230 = arith.mulf %229, %228 : vector<8x64xf32>
    %cst_100 = arith.constant 5.000000e-01 : f32
    %231 = vector.broadcast %cst_100 : f32 to vector<8x64xf32>
    %232 = arith.addf %230, %231 : vector<8x64xf32>
    %233 = vector.extract_strided_slice %227 {offsets = [0, 64], sizes = [8, 64], strides = [1, 1]} : vector<8x256xf32> to vector<8x64xf32>
    %cst_101 = arith.constant 5.000000e-01 : f32
    %234 = vector.broadcast %cst_101 : f32 to vector<8x64xf32>
    %235 = arith.mulf %234, %233 : vector<8x64xf32>
    %cst_102 = arith.constant 5.000000e-01 : f32
    %236 = vector.broadcast %cst_102 : f32 to vector<8x64xf32>
    %237 = arith.addf %235, %236 : vector<8x64xf32>
    %238 = vector.extract_strided_slice %227 {offsets = [0, 128], sizes = [8, 64], strides = [1, 1]} : vector<8x256xf32> to vector<8x64xf32>
    %239 = vector.extract_strided_slice %227 {offsets = [0, 192], sizes = [8, 64], strides = [1, 1]} : vector<8x256xf32> to vector<8x64xf32>
    %cst_103 = arith.constant 5.000000e-01 : f32
    %240 = vector.broadcast %cst_103 : f32 to vector<8x64xf32>
    %241 = arith.mulf %240, %239 : vector<8x64xf32>
    %cst_104 = arith.constant 5.000000e-01 : f32
    %242 = vector.broadcast %cst_104 : f32 to vector<8x64xf32>
    %243 = arith.addf %241, %242 : vector<8x64xf32>
    %244 = arith.mulf %237, %193 : vector<8x64xf32>
    %245 = arith.mulf %232, %238 : vector<8x64xf32>
    %246 = arith.addf %244, %245 : vector<8x64xf32>
    %247 = math.tanh %246 : vector<8x64xf32>
    %248 = arith.mulf %243, %247 : vector<8x64xf32>
    %249 = tpu.concatenate %248, %221 in 1 : vector<8x64xf32>, vector<8x64xf32> -> vector<8x128xf32>
    %c0_105 = arith.constant 0 : index
    %c0_106 = arith.constant 0 : index
    %250 = vector.load %arg4[%c0_105, %c0_106] : memref<128x256xf32, #tpu.memory_space<vmem>>, vector<128x256xf32>
    %cst_107 = arith.constant dense<0.000000e+00> : vector<8x256xf32>
    %251 = tpu.matmul %249, %250, %cst_107 {dimension_numbers = #tpu.dot_dimension_numbers<[1], [0], [0], [1], [0, 0, 1, 1], [], []>} : vector<8x128xf32>, vector<128x256xf32>, vector<8x256xf32> -> vector<8x256xf32>
    %252 = arith.addf %251, %9 : vector<8x256xf32>
    %253 = math.tanh %252 : vector<8x256xf32>
    %254 = vector.extract_strided_slice %253 {offsets = [0, 0], sizes = [8, 64], strides = [1, 1]} : vector<8x256xf32> to vector<8x64xf32>
    %cst_108 = arith.constant 5.000000e-01 : f32
    %255 = vector.broadcast %cst_108 : f32 to vector<8x64xf32>
    %256 = arith.mulf %255, %254 : vector<8x64xf32>
    %cst_109 = arith.constant 5.000000e-01 : f32
    %257 = vector.broadcast %cst_109 : f32 to vector<8x64xf32>
    %258 = arith.addf %256, %257 : vector<8x64xf32>
    %259 = vector.extract_strided_slice %253 {offsets = [0, 64], sizes = [8, 64], strides = [1, 1]} : vector<8x256xf32> to vector<8x64xf32>
    %cst_110 = arith.constant 5.000000e-01 : f32
    %260 = vector.broadcast %cst_110 : f32 to vector<8x64xf32>
    %261 = arith.mulf %260, %259 : vector<8x64xf32>
    %cst_111 = arith.constant 5.000000e-01 : f32
    %262 = vector.broadcast %cst_111 : f32 to vector<8x64xf32>
    %263 = arith.addf %261, %262 : vector<8x64xf32>
    %264 = vector.extract_strided_slice %253 {offsets = [0, 128], sizes = [8, 64], strides = [1, 1]} : vector<8x256xf32> to vector<8x64xf32>
    %265 = vector.extract_strided_slice %253 {offsets = [0, 192], sizes = [8, 64], strides = [1, 1]} : vector<8x256xf32> to vector<8x64xf32>
    %cst_112 = arith.constant 5.000000e-01 : f32
    %266 = vector.broadcast %cst_112 : f32 to vector<8x64xf32>
    %267 = arith.mulf %266, %265 : vector<8x64xf32>
    %cst_113 = arith.constant 5.000000e-01 : f32
    %268 = vector.broadcast %cst_113 : f32 to vector<8x64xf32>
    %269 = arith.addf %267, %268 : vector<8x64xf32>
    %270 = arith.mulf %263, %219 : vector<8x64xf32>
    %271 = arith.mulf %258, %264 : vector<8x64xf32>
    %272 = arith.addf %270, %271 : vector<8x64xf32>
    %273 = math.tanh %272 : vector<8x64xf32>
    %274 = arith.mulf %269, %273 : vector<8x64xf32>
    %c32_114 = arith.constant 32 : index
    %c0_115 = arith.constant 0 : index
    %275 = vector.load %arg10[%c32_114, %c0_115] : memref<64x64xf32, #tpu.memory_space<vmem>>, vector<8x64xf32>
    tpu.vector_store %arg10[%c32_114, %c0_115], %274 {strides = array<i32>} : memref<64x64xf32, #tpu.memory_space<vmem>>, vector<8x64xf32>,
    %c40 = arith.constant 40 : index
    %c0_116 = arith.constant 0 : index
    %276 = vector.load %arg9[%c40, %c0_116] : memref<64x256xf32, #tpu.memory_space<vmem>>, vector<8x256xf32>
    %c0_117 = arith.constant 0 : index
    %c0_118 = arith.constant 0 : index
    %277 = vector.load %arg2[%c0_117, %c0_118] : memref<64x256xf32, #tpu.memory_space<vmem>>, vector<64x256xf32>
    %cst_119 = arith.constant dense<0.000000e+00> : vector<8x256xf32>
    %278 = tpu.matmul %248, %277, %cst_119 {dimension_numbers = #tpu.dot_dimension_numbers<[1], [0], [0], [1], [0, 0, 1, 1], [], []>} : vector<8x64xf32>, vector<64x256xf32>, vector<8x256xf32> -> vector<8x256xf32>
    %279 = arith.addf %276, %278 : vector<8x256xf32>
    %280 = math.tanh %279 : vector<8x256xf32>
    %281 = vector.extract_strided_slice %280 {offsets = [0, 0], sizes = [8, 64], strides = [1, 1]} : vector<8x256xf32> to vector<8x64xf32>
    %cst_120 = arith.constant 5.000000e-01 : f32
    %282 = vector.broadcast %cst_120 : f32 to vector<8x64xf32>
    %283 = arith.mulf %282, %281 : vector<8x64xf32>
    %cst_121 = arith.constant 5.000000e-01 : f32
    %284 = vector.broadcast %cst_121 : f32 to vector<8x64xf32>
    %285 = arith.addf %283, %284 : vector<8x64xf32>
    %286 = vector.extract_strided_slice %280 {offsets = [0, 64], sizes = [8, 64], strides = [1, 1]} : vector<8x256xf32> to vector<8x64xf32>
    %cst_122 = arith.constant 5.000000e-01 : f32
    %287 = vector.broadcast %cst_122 : f32 to vector<8x64xf32>
    %288 = arith.mulf %287, %286 : vector<8x64xf32>
    %cst_123 = arith.constant 5.000000e-01 : f32
    %289 = vector.broadcast %cst_123 : f32 to vector<8x64xf32>
    %290 = arith.addf %288, %289 : vector<8x64xf32>
    %291 = vector.extract_strided_slice %280 {offsets = [0, 128], sizes = [8, 64], strides = [1, 1]} : vector<8x256xf32> to vector<8x64xf32>
    %292 = vector.extract_strided_slice %280 {offsets = [0, 192], sizes = [8, 64], strides = [1, 1]} : vector<8x256xf32> to vector<8x64xf32>
    %cst_124 = arith.constant 5.000000e-01 : f32
    %293 = vector.broadcast %cst_124 : f32 to vector<8x64xf32>
    %294 = arith.mulf %293, %292 : vector<8x64xf32>
    %cst_125 = arith.constant 5.000000e-01 : f32
    %295 = vector.broadcast %cst_125 : f32 to vector<8x64xf32>
    %296 = arith.addf %294, %295 : vector<8x64xf32>
    %297 = arith.mulf %290, %246 : vector<8x64xf32>
    %298 = arith.mulf %285, %291 : vector<8x64xf32>
    %299 = arith.addf %297, %298 : vector<8x64xf32>
    %300 = math.tanh %299 : vector<8x64xf32>
    %301 = arith.mulf %296, %300 : vector<8x64xf32>
    %302 = tpu.concatenate %301, %274 in 1 : vector<8x64xf32>, vector<8x64xf32> -> vector<8x128xf32>
    %c0_126 = arith.constant 0 : index
    %c0_127 = arith.constant 0 : index
    %303 = vector.load %arg4[%c0_126, %c0_127] : memref<128x256xf32, #tpu.memory_space<vmem>>, vector<128x256xf32>
    %cst_128 = arith.constant dense<0.000000e+00> : vector<8x256xf32>
    %304 = tpu.matmul %302, %303, %cst_128 {dimension_numbers = #tpu.dot_dimension_numbers<[1], [0], [0], [1], [0, 0, 1, 1], [], []>} : vector<8x128xf32>, vector<128x256xf32>, vector<8x256xf32> -> vector<8x256xf32>
    %305 = arith.addf %304, %9 : vector<8x256xf32>
    %306 = math.tanh %305 : vector<8x256xf32>
    %307 = vector.extract_strided_slice %306 {offsets = [0, 0], sizes = [8, 64], strides = [1, 1]} : vector<8x256xf32> to vector<8x64xf32>
    %cst_129 = arith.constant 5.000000e-01 : f32
    %308 = vector.broadcast %cst_129 : f32 to vector<8x64xf32>
    %309 = arith.mulf %308, %307 : vector<8x64xf32>
    %cst_130 = arith.constant 5.000000e-01 : f32
    %310 = vector.broadcast %cst_130 : f32 to vector<8x64xf32>
    %311 = arith.addf %309, %310 : vector<8x64xf32>
    %312 = vector.extract_strided_slice %306 {offsets = [0, 64], sizes = [8, 64], strides = [1, 1]} : vector<8x256xf32> to vector<8x64xf32>
    %cst_131 = arith.constant 5.000000e-01 : f32
    %313 = vector.broadcast %cst_131 : f32 to vector<8x64xf32>
    %314 = arith.mulf %313, %312 : vector<8x64xf32>
    %cst_132 = arith.constant 5.000000e-01 : f32
    %315 = vector.broadcast %cst_132 : f32 to vector<8x64xf32>
    %316 = arith.addf %314, %315 : vector<8x64xf32>
    %317 = vector.extract_strided_slice %306 {offsets = [0, 128], sizes = [8, 64], strides = [1, 1]} : vector<8x256xf32> to vector<8x64xf32>
    %318 = vector.extract_strided_slice %306 {offsets = [0, 192], sizes = [8, 64], strides = [1, 1]} : vector<8x256xf32> to vector<8x64xf32>
    %cst_133 = arith.constant 5.000000e-01 : f32
    %319 = vector.broadcast %cst_133 : f32 to vector<8x64xf32>
    %320 = arith.mulf %319, %318 : vector<8x64xf32>
    %cst_134 = arith.constant 5.000000e-01 : f32
    %321 = vector.broadcast %cst_134 : f32 to vector<8x64xf32>
    %322 = arith.addf %320, %321 : vector<8x64xf32>
    %323 = arith.mulf %316, %272 : vector<8x64xf32>
    %324 = arith.mulf %311, %317 : vector<8x64xf32>
    %325 = arith.addf %323, %324 : vector<8x64xf32>
    %326 = math.tanh %325 : vector<8x64xf32>
    %327 = arith.mulf %322, %326 : vector<8x64xf32>
    %c40_135 = arith.constant 40 : index
    %c0_136 = arith.constant 0 : index
    %328 = vector.load %arg10[%c40_135, %c0_136] : memref<64x64xf32, #tpu.memory_space<vmem>>, vector<8x64xf32>
    tpu.vector_store %arg10[%c40_135, %c0_136], %327 {strides = array<i32>} : memref<64x64xf32, #tpu.memory_space<vmem>>, vector<8x64xf32>,
    %c48 = arith.constant 48 : index
    %c0_137 = arith.constant 0 : index
    %329 = vector.load %arg9[%c48, %c0_137] : memref<64x256xf32, #tpu.memory_space<vmem>>, vector<8x256xf32>
    %c0_138 = arith.constant 0 : index
    %c0_139 = arith.constant 0 : index
    %330 = vector.load %arg2[%c0_138, %c0_139] : memref<64x256xf32, #tpu.memory_space<vmem>>, vector<64x256xf32>
    %cst_140 = arith.constant dense<0.000000e+00> : vector<8x256xf32>
    %331 = tpu.matmul %301, %330, %cst_140 {dimension_numbers = #tpu.dot_dimension_numbers<[1], [0], [0], [1], [0, 0, 1, 1], [], []>} : vector<8x64xf32>, vector<64x256xf32>, vector<8x256xf32> -> vector<8x256xf32>
    %332 = arith.addf %329, %331 : vector<8x256xf32>
    %333 = math.tanh %332 : vector<8x256xf32>
    %334 = vector.extract_strided_slice %333 {offsets = [0, 0], sizes = [8, 64], strides = [1, 1]} : vector<8x256xf32> to vector<8x64xf32>
    %cst_141 = arith.constant 5.000000e-01 : f32
    %335 = vector.broadcast %cst_141 : f32 to vector<8x64xf32>
    %336 = arith.mulf %335, %334 : vector<8x64xf32>
    %cst_142 = arith.constant 5.000000e-01 : f32
    %337 = vector.broadcast %cst_142 : f32 to vector<8x64xf32>
    %338 = arith.addf %336, %337 : vector<8x64xf32>
    %339 = vector.extract_strided_slice %333 {offsets = [0, 64], sizes = [8, 64], strides = [1, 1]} : vector<8x256xf32> to vector<8x64xf32>
    %cst_143 = arith.constant 5.000000e-01 : f32
    %340 = vector.broadcast %cst_143 : f32 to vector<8x64xf32>
    %341 = arith.mulf %340, %339 : vector<8x64xf32>
    %cst_144 = arith.constant 5.000000e-01 : f32
    %342 = vector.broadcast %cst_144 : f32 to vector<8x64xf32>
    %343 = arith.addf %341, %342 : vector<8x64xf32>
    %344 = vector.extract_strided_slice %333 {offsets = [0, 128], sizes = [8, 64], strides = [1, 1]} : vector<8x256xf32> to vector<8x64xf32>
    %345 = vector.extract_strided_slice %333 {offsets = [0, 192], sizes = [8, 64], strides = [1, 1]} : vector<8x256xf32> to vector<8x64xf32>
    %cst_145 = arith.constant 5.000000e-01 : f32
    %346 = vector.broadcast %cst_145 : f32 to vector<8x64xf32>
    %347 = arith.mulf %346, %345 : vector<8x64xf32>
    %cst_146 = arith.constant 5.000000e-01 : f32
    %348 = vector.broadcast %cst_146 : f32 to vector<8x64xf32>
    %349 = arith.addf %347, %348 : vector<8x64xf32>
    %350 = arith.mulf %343, %299 : vector<8x64xf32>
    %351 = arith.mulf %338, %344 : vector<8x64xf32>
    %352 = arith.addf %350, %351 : vector<8x64xf32>
    %353 = math.tanh %352 : vector<8x64xf32>
    %354 = arith.mulf %349, %353 : vector<8x64xf32>
    %355 = tpu.concatenate %354, %327 in 1 : vector<8x64xf32>, vector<8x64xf32> -> vector<8x128xf32>
    %c0_147 = arith.constant 0 : index
    %c0_148 = arith.constant 0 : index
    %356 = vector.load %arg4[%c0_147, %c0_148] : memref<128x256xf32, #tpu.memory_space<vmem>>, vector<128x256xf32>
    %cst_149 = arith.constant dense<0.000000e+00> : vector<8x256xf32>
    %357 = tpu.matmul %355, %356, %cst_149 {dimension_numbers = #tpu.dot_dimension_numbers<[1], [0], [0], [1], [0, 0, 1, 1], [], []>} : vector<8x128xf32>, vector<128x256xf32>, vector<8x256xf32> -> vector<8x256xf32>
    %358 = arith.addf %357, %9 : vector<8x256xf32>
    %359 = math.tanh %358 : vector<8x256xf32>
    %360 = vector.extract_strided_slice %359 {offsets = [0, 0], sizes = [8, 64], strides = [1, 1]} : vector<8x256xf32> to vector<8x64xf32>
    %cst_150 = arith.constant 5.000000e-01 : f32
    %361 = vector.broadcast %cst_150 : f32 to vector<8x64xf32>
    %362 = arith.mulf %361, %360 : vector<8x64xf32>
    %cst_151 = arith.constant 5.000000e-01 : f32
    %363 = vector.broadcast %cst_151 : f32 to vector<8x64xf32>
    %364 = arith.addf %362, %363 : vector<8x64xf32>
    %365 = vector.extract_strided_slice %359 {offsets = [0, 64], sizes = [8, 64], strides = [1, 1]} : vector<8x256xf32> to vector<8x64xf32>
    %cst_152 = arith.constant 5.000000e-01 : f32
    %366 = vector.broadcast %cst_152 : f32 to vector<8x64xf32>
    %367 = arith.mulf %366, %365 : vector<8x64xf32>
    %cst_153 = arith.constant 5.000000e-01 : f32
    %368 = vector.broadcast %cst_153 : f32 to vector<8x64xf32>
    %369 = arith.addf %367, %368 : vector<8x64xf32>
    %370 = vector.extract_strided_slice %359 {offsets = [0, 128], sizes = [8, 64], strides = [1, 1]} : vector<8x256xf32> to vector<8x64xf32>
    %371 = vector.extract_strided_slice %359 {offsets = [0, 192], sizes = [8, 64], strides = [1, 1]} : vector<8x256xf32> to vector<8x64xf32>
    %cst_154 = arith.constant 5.000000e-01 : f32
    %372 = vector.broadcast %cst_154 : f32 to vector<8x64xf32>
    %373 = arith.mulf %372, %371 : vector<8x64xf32>
    %cst_155 = arith.constant 5.000000e-01 : f32
    %374 = vector.broadcast %cst_155 : f32 to vector<8x64xf32>
    %375 = arith.addf %373, %374 : vector<8x64xf32>
    %376 = arith.mulf %369, %325 : vector<8x64xf32>
    %377 = arith.mulf %364, %370 : vector<8x64xf32>
    %378 = arith.addf %376, %377 : vector<8x64xf32>
    %379 = math.tanh %378 : vector<8x64xf32>
    %380 = arith.mulf %375, %379 : vector<8x64xf32>
    %c48_156 = arith.constant 48 : index
    %c0_157 = arith.constant 0 : index
    %381 = vector.load %arg10[%c48_156, %c0_157] : memref<64x64xf32, #tpu.memory_space<vmem>>, vector<8x64xf32>
    tpu.vector_store %arg10[%c48_156, %c0_157], %380 {strides = array<i32>} : memref<64x64xf32, #tpu.memory_space<vmem>>, vector<8x64xf32>,
    %c56 = arith.constant 56 : index
    %c0_158 = arith.constant 0 : index
    %382 = vector.load %arg9[%c56, %c0_158] : memref<64x256xf32, #tpu.memory_space<vmem>>, vector<8x256xf32>
    %c0_159 = arith.constant 0 : index
    %c0_160 = arith.constant 0 : index
    %383 = vector.load %arg2[%c0_159, %c0_160] : memref<64x256xf32, #tpu.memory_space<vmem>>, vector<64x256xf32>
    %cst_161 = arith.constant dense<0.000000e+00> : vector<8x256xf32>
    %384 = tpu.matmul %354, %383, %cst_161 {dimension_numbers = #tpu.dot_dimension_numbers<[1], [0], [0], [1], [0, 0, 1, 1], [], []>} : vector<8x64xf32>, vector<64x256xf32>, vector<8x256xf32> -> vector<8x256xf32>
    %385 = arith.addf %382, %384 : vector<8x256xf32>
    %386 = math.tanh %385 : vector<8x256xf32>
    %387 = vector.extract_strided_slice %386 {offsets = [0, 0], sizes = [8, 64], strides = [1, 1]} : vector<8x256xf32> to vector<8x64xf32>
    %cst_162 = arith.constant 5.000000e-01 : f32
    %388 = vector.broadcast %cst_162 : f32 to vector<8x64xf32>
    %389 = arith.mulf %388, %387 : vector<8x64xf32>
    %cst_163 = arith.constant 5.000000e-01 : f32
    %390 = vector.broadcast %cst_163 : f32 to vector<8x64xf32>
    %391 = arith.addf %389, %390 : vector<8x64xf32>
    %392 = vector.extract_strided_slice %386 {offsets = [0, 64], sizes = [8, 64], strides = [1, 1]} : vector<8x256xf32> to vector<8x64xf32>
    %cst_164 = arith.constant 5.000000e-01 : f32
    %393 = vector.broadcast %cst_164 : f32 to vector<8x64xf32>
    %394 = arith.mulf %393, %392 : vector<8x64xf32>
    %cst_165 = arith.constant 5.000000e-01 : f32
    %395 = vector.broadcast %cst_165 : f32 to vector<8x64xf32>
    %396 = arith.addf %394, %395 : vector<8x64xf32>
    %397 = vector.extract_strided_slice %386 {offsets = [0, 128], sizes = [8, 64], strides = [1, 1]} : vector<8x256xf32> to vector<8x64xf32>
    %398 = vector.extract_strided_slice %386 {offsets = [0, 192], sizes = [8, 64], strides = [1, 1]} : vector<8x256xf32> to vector<8x64xf32>
    %cst_166 = arith.constant 5.000000e-01 : f32
    %399 = vector.broadcast %cst_166 : f32 to vector<8x64xf32>
    %400 = arith.mulf %399, %398 : vector<8x64xf32>
    %cst_167 = arith.constant 5.000000e-01 : f32
    %401 = vector.broadcast %cst_167 : f32 to vector<8x64xf32>
    %402 = arith.addf %400, %401 : vector<8x64xf32>
    %403 = arith.mulf %396, %352 : vector<8x64xf32>
    %404 = arith.mulf %391, %397 : vector<8x64xf32>
    %405 = arith.addf %403, %404 : vector<8x64xf32>
    %406 = math.tanh %405 : vector<8x64xf32>
    %407 = arith.mulf %402, %406 : vector<8x64xf32>
    %408 = tpu.concatenate %407, %380 in 1 : vector<8x64xf32>, vector<8x64xf32> -> vector<8x128xf32>
    %c0_168 = arith.constant 0 : index
    %c0_169 = arith.constant 0 : index
    %409 = vector.load %arg4[%c0_168, %c0_169] : memref<128x256xf32, #tpu.memory_space<vmem>>, vector<128x256xf32>
    %cst_170 = arith.constant dense<0.000000e+00> : vector<8x256xf32>
    %410 = tpu.matmul %408, %409, %cst_170 {dimension_numbers = #tpu.dot_dimension_numbers<[1], [0], [0], [1], [0, 0, 1, 1], [], []>} : vector<8x128xf32>, vector<128x256xf32>, vector<8x256xf32> -> vector<8x256xf32>
    %411 = arith.addf %410, %9 : vector<8x256xf32>
    %412 = math.tanh %411 : vector<8x256xf32>
    %413 = vector.extract_strided_slice %412 {offsets = [0, 0], sizes = [8, 64], strides = [1, 1]} : vector<8x256xf32> to vector<8x64xf32>
    %cst_171 = arith.constant 5.000000e-01 : f32
    %414 = vector.broadcast %cst_171 : f32 to vector<8x64xf32>
    %415 = arith.mulf %414, %413 : vector<8x64xf32>
    %cst_172 = arith.constant 5.000000e-01 : f32
    %416 = vector.broadcast %cst_172 : f32 to vector<8x64xf32>
    %417 = arith.addf %415, %416 : vector<8x64xf32>
    %418 = vector.extract_strided_slice %412 {offsets = [0, 64], sizes = [8, 64], strides = [1, 1]} : vector<8x256xf32> to vector<8x64xf32>
    %cst_173 = arith.constant 5.000000e-01 : f32
    %419 = vector.broadcast %cst_173 : f32 to vector<8x64xf32>
    %420 = arith.mulf %419, %418 : vector<8x64xf32>
    %cst_174 = arith.constant 5.000000e-01 : f32
    %421 = vector.broadcast %cst_174 : f32 to vector<8x64xf32>
    %422 = arith.addf %420, %421 : vector<8x64xf32>
    %423 = vector.extract_strided_slice %412 {offsets = [0, 128], sizes = [8, 64], strides = [1, 1]} : vector<8x256xf32> to vector<8x64xf32>
    %424 = vector.extract_strided_slice %412 {offsets = [0, 192], sizes = [8, 64], strides = [1, 1]} : vector<8x256xf32> to vector<8x64xf32>
    %cst_175 = arith.constant 5.000000e-01 : f32
    %425 = vector.broadcast %cst_175 : f32 to vector<8x64xf32>
    %426 = arith.mulf %425, %424 : vector<8x64xf32>
    %cst_176 = arith.constant 5.000000e-01 : f32
    %427 = vector.broadcast %cst_176 : f32 to vector<8x64xf32>
    %428 = arith.addf %426, %427 : vector<8x64xf32>
    %429 = arith.mulf %422, %378 : vector<8x64xf32>
    %430 = arith.mulf %417, %423 : vector<8x64xf32>
    %431 = arith.addf %429, %430 : vector<8x64xf32>
    %432 = math.tanh %431 : vector<8x64xf32>
    %433 = arith.mulf %428, %432 : vector<8x64xf32>
    %c56_177 = arith.constant 56 : index
    %c0_178 = arith.constant 0 : index
    %434 = vector.load %arg10[%c56_177, %c0_178] : memref<64x64xf32, #tpu.memory_space<vmem>>, vector<8x64xf32>
    tpu.vector_store %arg10[%c56_177, %c0_178], %433 {strides = array<i32>} : memref<64x64xf32, #tpu.memory_space<vmem>>, vector<8x64xf32>,
    %c0_179 = arith.constant 0 : index
    %c0_180 = arith.constant 0 : index
    %435 = vector.load %arg10[%c0_179, %c0_180] : memref<64x64xf32, #tpu.memory_space<vmem>>, vector<64x64xf32>
    %c0_181 = arith.constant 0 : index
    %c0_182 = arith.constant 0 : index
    %436 = vector.load %arg6[%c0_181, %c0_182] : memref<64x2xf32, #tpu.memory_space<vmem>>, vector<64x2xf32>
    %cst_183 = arith.constant dense<0.000000e+00> : vector<64x2xf32>
    %437 = tpu.matmul %435, %436, %cst_183 {dimension_numbers = #tpu.dot_dimension_numbers<[1], [0], [0], [1], [0, 0, 1, 1], [], []>} : vector<64x64xf32>, vector<64x2xf32>, vector<64x2xf32> -> vector<64x2xf32>
    %c0_184 = arith.constant 0 : index
    %c0_185 = arith.constant 0 : index
    %438 = vector.load %arg7[%c0_184, %c0_185] : memref<1x2xf32, #tpu.memory_space<vmem>>, vector<1x2xf32>
    %439 = vector.broadcast %438 : vector<1x2xf32> to vector<64x2xf32>
    %440 = arith.addf %437, %439 : vector<64x2xf32>
    %c0_186 = arith.constant 0 : index
    %c0_187 = arith.constant 0 : index
    %441 = vector.load %arg8[%c0_186, %c0_187] : memref<64x2xf32, #tpu.memory_space<vmem>>, vector<64x2xf32>
    tpu.vector_store %arg8[%c0_186, %c0_187], %440 {strides = array<i32>} : memref<64x2xf32, #tpu.memory_space<vmem>>, vector<64x2xf32>,
    return
  }
}

</mosaic_0001>

<llo_original>
// kernel: tpu_custom_call.1
$region0: #{tpu_custom_call.1}
  #allocation0 [shape = 'u32[]', space=smem, size = 0x4, offset = 0x4, fixed_abs, tag = 'smem constant byte address 0x4 - core index']
  #allocation1 [shape = 'u32[144,128]{1,0:T(1,128)}', space=vmem, size = 0x12000, scoped, tag = 'internal scratch']
  #allocation2 [shape = 'f32[64,256]{1,0:T(8,128)}', space=vmem, size = 0x10000, scoped, tag = 'scratch operand']
  #allocation3 [shape = 'f32[64,64]{1,0:T(8,128)}', space=vmem, size = 0x8000, scoped, tag = 'scratch operand']
  %s0 = inlined_call_operand.vmem [shape: f32[64,2], index: 0, kind: input, shape index: {}]
  %s1 = inlined_call_operand.vmem [shape: f32[2,256], index: 1, kind: input, shape index: {}]
  %s2 = inlined_call_operand.vmem [shape: f32[64,256], index: 2, kind: input, shape index: {}]
  %s3 = inlined_call_operand.vmem [shape: f32[1,256], index: 3, kind: input, shape index: {}]
  %s4 = inlined_call_operand.hbm [shape: f32[128,256], index: 4, kind: input, shape index: {}]
  %s5 = inlined_call_operand.vmem [shape: f32[1,256], index: 5, kind: input, shape index: {}]
  %s6 = inlined_call_operand.vmem [shape: f32[64,2], index: 6, kind: input, shape index: {}]
  %s7 = inlined_call_operand.vmem [shape: f32[1,2], index: 7, kind: input, shape index: {}]
  %s8 = inlined_call_operand.vmem [shape: f32[64,2], index: 8, kind: output, shape index: {}]
  %s9 = sld [smem:[#allocation0]]
  $region46: #{tpu_custom_call.1} parent=0
    _
  %s11 = ssub.s32 1, %s9
  %s12 = scalar_select 0, %s11, %s9
  $region1: #{tpu_custom_call.1} parent=0
    #allocation4 [shape = 'u8[131072]{0}', space=vmem, size = 0x20000, scoped, tag = 'input window, operand 4, single buffered']
    #allocation5 [shape = 's32[1]{0}', space=sflag, size = 0x4, scoped, tag = 'scoped memory for tpu_custom_call.1']
    %13 = vsyncpa [#allocation5], 0
    // Predicated region
    $region2: #{tpu_custom_call.1} parent=1 // pred_check
      _
    $region3: #{tpu_custom_call.1} parent=1 // pred_check_branch
      %15 = sbr.rel (0) target = $region5
    $region4: #{tpu_custom_call.1} parent=1 // pred_region
      _
    $region5: #{tpu_custom_call.1} parent=1 // pred_fallthru
      _
    // Predicated region
    $region6: #{tpu_custom_call.1} parent=1 // pred_check
      _
    $region7: #{tpu_custom_call.1} parent=1 // pred_check_branch
      %17 = sbr.rel (0) target = $region9
    $region8: #{tpu_custom_call.1} parent=1 // pred_region
      _
    $region9: #{tpu_custom_call.1} parent=1 // pred_fallthru
      _
    // Predicated region
    $region10: #{tpu_custom_call.1} parent=1 // pred_check
      _
    $region11: #{tpu_custom_call.1} parent=1 // pred_check_branch
      %19 = sbr.rel (0) target = $region13
    $region12: #{tpu_custom_call.1} parent=1 // pred_region
      _
    $region13: #{tpu_custom_call.1} parent=1 // pred_fallthru
      _
    // Predicated region
    $region14: #{tpu_custom_call.1} parent=1 // pred_check
      _
    $region15: #{tpu_custom_call.1} parent=1 // pred_check_branch
      %21 = sbr.rel (0) target = $region17
    $region16: #{tpu_custom_call.1} parent=1 // pred_region
      _
    $region17: #{tpu_custom_call.1} parent=1 // pred_fallthru
      _
    // Predicated region
    $region18: #{tpu_custom_call.1} parent=1 // pred_check
      _
    $region19: #{tpu_custom_call.1} parent=1 // pred_check_branch
      %23 = sbr.rel (0) target = $region21
    $region20: #{tpu_custom_call.1} parent=1 // pred_region
      %s25 = ssub.s32 4096, 4096
      %26 = vsyncadd [#allocation5], %s25
      %s27 = sshll.u32 [#allocation4], 4
      %s28 = int_to_ptr.vmem [resolvable:$true] %s27
      %33 = dma.hbm_to_vmem [thread:$0]  %s4, 4096, %s28, [#allocation5], 256, 256, 16
    $region21: #{tpu_custom_call.1} parent=1 // pred_fallthru
      _
    // Predicated region
    $region22: #{tpu_custom_call.1} parent=1 // pred_check
      _
    $region23: #{tpu_custom_call.1} parent=1 // pred_check_branch
      %35 = sbr.rel (0) target = $region25
    $region24: #{tpu_custom_call.1} parent=1 // pred_region
      _
    $region25: #{tpu_custom_call.1} parent=1 // pred_fallthru
      _
    // Predicated region
    $region26: #{tpu_custom_call.1} parent=1 // pred_check
      _
    $region27: #{tpu_custom_call.1} parent=1 // pred_check_branch
      %37 = sbr.rel (0) target = $region29
    $region28: #{tpu_custom_call.1} parent=1 // pred_region
      _
    $region29: #{tpu_custom_call.1} parent=1 // pred_fallthru
      _
    // Predicated region
    $region30: #{tpu_custom_call.1} parent=1 // pred_check
      _
    $region31: #{tpu_custom_call.1} parent=1 // pred_check_branch
      %39 = sbr.rel (0) target = $region33
    $region32: #{tpu_custom_call.1} parent=1 // pred_region
      _
    $region33: #{tpu_custom_call.1} parent=1 // pred_fallthru
      _
    // Predicated region
    $region34: #{tpu_custom_call.1} parent=1 // pred_check
      _
    $region35: #{tpu_custom_call.1} parent=1 // pred_check_branch
      %41 = sbr.rel (0) target = $region37
    $region36: #{tpu_custom_call.1} parent=1 // pred_region
      %42 = dma.done [#allocation5], 4096
    $region37: #{tpu_custom_call.1} parent=1 // pred_fallthru
      _
    %v43 = vld [vmem:[%s0] sm:$0xff]
    %v44 = vld [vmem:[%s0 + $0x8] sm:$0xff]
    %v45 = vld [vmem:[%s0 + $0x10] sm:$0xff]
    %v46 = vld [vmem:[%s0 + $0x18] sm:$0xff]
    %v47 = vld [vmem:[%s0 + $0x20] sm:$0xff]
    %v48 = vld [vmem:[%s0 + $0x28] sm:$0xff]
    %v49 = vld [vmem:[%s0 + $0x30] sm:$0xff]
    %v50 = vld [vmem:[%s0 + $0x38] sm:$0xff]
    %v51 = vld [vmem:[%s1] sm:$0xf]
    %v52 = vld [vmem:[%s3] sm:$0x3]
    %v54 = vlaneseq
    %v55 = vshrl.u32 %v54, 7
    %v56 = vsub.s32 0, %v55
    %v57 = vrot.slane %v52, %v56
    %v58 = vlaneseq
    %v59 = vshrl.u32 %v58, 7
    %v60 = vsub.s32 1, %v59
    %v61 = vrot.slane %v52, %v60
    %v66 = vunpack.c.l.s4 1983009808
    %v67 = vunpack.c.0.s8 %v66
    %v68 = vlaneseq
    %v69 = vshrl.u32 %v68, 7
    %v70 = vsub.s32 %v67, %v69
    %v71 = vrot.slane %v51, %v70
    %v72 = vcombine.high %v71, %v71
    %vm73 = vcmask 15360
    %v75 = vsel %vm73, %v43, 0
    %v78 = vsel %vm73, %v44, 0
    %v81 = vsel %vm73, %v45, 0
    %v84 = vsel %vm73, %v46, 0
    %v87 = vsel %vm73, %v47, 0
    %v90 = vsel %vm73, %v48, 0
    %v93 = vsel %vm73, %v49, 0
    %v96 = vsel %vm73, %v50, 0
    %vm98 = vcmask 1041408
    %v99 = vsel %vm98, %v71, 0
    %v101 = vsel %vm98, %v72, 0
    %103 = vmatprep.subr.mxu0 %v101
    %104 = vmatpush1.msra.mxu0 %v99
    %105 = vmatprep.subr.mxu0 0.0
    %106 = vmatpush1.msra.mxu0 0.0
    %107 = vmatprep.subr.mxu0 0.0
    %108 = vmatpush1.msra.mxu0 0.0
    %109 = vmatprep.subr.mxu0 0.0
    %110 = vmatpush1.msra.mxu0 0.0
    %111 = vmatprep.subr.mxu0 0.0
    %112 = vmatpush1.msra.mxu0 0.0
    %113 = vmatprep.subr.mxu0 0.0
    %114 = vmatpush1.msra.mxu0 0.0
    %115 = vmatprep.subr.mxu0 0.0
    %116 = vmatpush1.msra.mxu0 0.0
    %117 = vmatprep.subr.mxu0 0.0
    %118 = vmatpush1.msra.mxu0 0.0
    %119 = vmatprep.subr.mxu0 0.0
    %120 = vmatpush1.msra.mxu0 0.0
    %121 = vmatprep.subr.mxu0 0.0
    %122 = vmatpush1.msra.mxu0 0.0
    %123 = vmatprep.subr.mxu0 0.0
    %124 = vmatpush1.msra.mxu0 0.0
    %125 = vmatprep.subr.mxu0 0.0
    %126 = vmatpush1.msra.mxu0 0.0
    %127 = vmatprep.subr.mxu0 0.0
    %128 = vmatpush1.msra.mxu0 0.0
    %129 = vmatprep.subr.mxu0 0.0
    %130 = vmatpush1.msra.mxu0 0.0
    %131 = vmatprep.subr.mxu0 0.0
    %132 = vmatpush1.msra.mxu0 0.0
    %133 = vmatprep.subr.mxu0 0.0
    %134 = vmatpush1.msra.mxu0 0.0
    %135 = vmatprep.subr.mxu0 0.0
    %136 = vmatpush1.msra.mxu0 0.0
    %137 = vmatprep.subr.mxu0 0.0
    %138 = vmatpush1.msra.mxu0 0.0
    %139 = vmatprep.subr.mxu0 0.0
    %140 = vmatpush1.msra.mxu0 0.0
    %141 = vmatprep.subr.mxu0 0.0
    %142 = vmatpush1.msra.mxu0 0.0
    %143 = vmatprep.subr.mxu0 0.0
    %144 = vmatpush1.msra.mxu0 0.0
    %145 = vmatprep.subr.mxu0 0.0
    %146 = vmatpush1.msra.mxu0 0.0
    %147 = vmatprep.subr.mxu0 0.0
    %148 = vmatpush1.msra.mxu0 0.0
    %149 = vmatprep.subr.mxu0 0.0
    %150 = vmatpush1.msra.mxu0 0.0
    %151 = vmatprep.subr.mxu0 0.0
    %152 = vmatpush1.msra.mxu0 0.0
    %153 = vmatprep.subr.mxu0 0.0
    %154 = vmatpush1.msra.mxu0 0.0
    %155 = vmatprep.subr.mxu0 0.0
    %156 = vmatpush1.msra.mxu0 0.0
    %157 = vmatprep.subr.mxu0 0.0
    %158 = vmatpush1.msra.mxu0 0.0
    %159 = vmatprep.subr.mxu0 0.0
    %160 = vmatpush1.msra.mxu0 0.0
    %161 = vmatprep.subr.mxu0 0.0
    %162 = vmatpush1.msra.mxu0 0.0
    %163 = vmatprep.subr.mxu0 0.0
    %164 = vmatpush1.msra.mxu0 0.0
    %165 = vmatprep.subr.mxu0 0.0
    %166 = vmatpush1.msra.mxu0 0.0
    %167 = vmatprep.mubr.f32.mxu0 0.0
    %168 = vmatmul.mubr.f32.gmra.mrb[0].mxu0 %v75
    %v169 = vpop.f32.mrb[0].mxu0
    %v170 = vadd.f32 %v57, %v169
    %v171 = vpop.f32.mrb[0].mxu0
    %v172 = vadd.f32 %v61, %v171
    %173 = vmatprep.mubr.f32.mxu0 0.0
    %174 = vmatmul.mubr.f32.gmra.mrb[0].mxu0 %v78
    %v175 = vpop.f32.mrb[0].mxu0
    %v176 = vadd.f32 %v57, %v175
    %v177 = vpop.f32.mrb[0].mxu0
    %v178 = vadd.f32 %v61, %v177
    %179 = vmatprep.mubr.f32.mxu0 0.0
    %180 = vmatmul.mubr.f32.gmra.mrb[0].mxu0 %v81
    %v181 = vpop.f32.mrb[0].mxu0
    %v182 = vadd.f32 %v57, %v181
    %v183 = vpop.f32.mrb[0].mxu0
    %v184 = vadd.f32 %v61, %v183
    %185 = vmatprep.mubr.f32.mxu0 0.0
    %186 = vmatmul.mubr.f32.gmra.mrb[0].mxu0 %v84
    %v187 = vpop.f32.mrb[0].mxu0
    %v188 = vadd.f32 %v57, %v187
    %v189 = vpop.f32.mrb[0].mxu0
    %v190 = vadd.f32 %v61, %v189
    %191 = vmatprep.mubr.f32.mxu0 0.0
    %192 = vmatmul.mubr.f32.gmra.mrb[0].mxu0 %v87
    %v193 = vpop.f32.mrb[0].mxu0
    %v194 = vadd.f32 %v57, %v193
    %v195 = vpop.f32.mrb[0].mxu0
    %v196 = vadd.f32 %v61, %v195
    %197 = vmatprep.mubr.f32.mxu0 0.0
    %198 = vmatmul.mubr.f32.gmra.mrb[0].mxu0 %v90
    %v199 = vpop.f32.mrb[0].mxu0
    %v200 = vadd.f32 %v57, %v199
    %v201 = vpop.f32.mrb[0].mxu0
    %v202 = vadd.f32 %v61, %v201
    %203 = vmatprep.mubr.f32.mxu0 0.0
    %204 = vmatmul.mubr.f32.gmra.mrb[0].mxu0 %v93
    %v205 = vpop.f32.mrb[0].mxu0
    %v206 = vadd.f32 %v57, %v205
    %v207 = vpop.f32.mrb[0].mxu0
    %v208 = vadd.f32 %v61, %v207
    %209 = vmatprep.mubr.f32.mxu0 0.0
    %210 = vmatmul.mubr.f32.gmra.mrb[0].mxu0 %v96
    %v211 = vpop.f32.mrb[0].mxu0
    %v212 = vadd.f32 %v57, %v211
    %v213 = vpop.f32.mrb[0].mxu0
    %v214 = vadd.f32 %v61, %v213
    %215 = vdwg.mxu0
    %216 = vst [vmem:[#allocation2] sm:$0xff] %v170
    %217 = vst [vmem:[#allocation2 + $0x8] sm:$0xff] %v172
    %218 = vst [vmem:[#allocation2 + $0x10] sm:$0xff] %v176
    %219 = vst [vmem:[#allocation2 + $0x18] sm:$0xff] %v178
    %220 = vst [vmem:[#allocation2 + $0x20] sm:$0xff] %v182
    %221 = vst [vmem:[#allocation2 + $0x28] sm:$0xff] %v184
    %222 = vst [vmem:[#allocation2 + $0x30] sm:$0xff] %v188
    %223 = vst [vmem:[#allocation2 + $0x38] sm:$0xff] %v190
    %224 = vst [vmem:[#allocation2 + $0x40] sm:$0xff] %v194
    %225 = vst [vmem:[#allocation2 + $0x48] sm:$0xff] %v196
    %226 = vst [vmem:[#allocation2 + $0x50] sm:$0xff] %v200
    %227 = vst [vmem:[#allocation2 + $0x58] sm:$0xff] %v202
    %228 = vst [vmem:[#allocation2 + $0x60] sm:$0xff] %v206
    %229 = vst [vmem:[#allocation2 + $0x68] sm:$0xff] %v208
    %230 = vst [vmem:[#allocation2 + $0x70] sm:$0xff] %v212
    %231 = vst [vmem:[#allocation2 + $0x78] sm:$0xff] %v214
    %v232 = vld [vmem:[%s5] sm:$0x3]
    %v234 = vlaneseq
    %v235 = vshrl.u32 %v234, 7
    %v236 = vsub.s32 0, %v235
    %v237 = vrot.slane %v232, %v236
    %v238 = vlaneseq
    %v239 = vshrl.u32 %v238, 7
    %v240 = vsub.s32 1, %v239
    %v241 = vrot.slane %v232, %v240
    %v244 = vld [vmem:[#allocation2] sm:$0xff]
    %v245 = vld [vmem:[#allocation2 + $0x8] sm:$0xff]
    %v246 = vld [vmem:[%s2] sm:$0xff]
    %v247 = vld [vmem:[%s2 + $0x8] sm:$0xff]
    %v248 = vld [vmem:[%s2 + $0x10] sm:$0xff]
    %v249 = vld [vmem:[%s2 + $0x18] sm:$0xff]
    %v250 = vld [vmem:[%s2 + $0x20] sm:$0xff]
    %v251 = vld [vmem:[%s2 + $0x28] sm:$0xff]
    %v252 = vld [vmem:[%s2 + $0x30] sm:$0xff]
    %v253 = vld [vmem:[%s2 + $0x38] sm:$0xff]
    %v254 = vld [vmem:[%s2 + $0x40] sm:$0xff]
    %v255 = vld [vmem:[%s2 + $0x48] sm:$0xff]
    %v256 = vld [vmem:[%s2 + $0x50] sm:$0xff]
    %v257 = vld [vmem:[%s2 + $0x58] sm:$0xff]
    %v258 = vld [vmem:[%s2 + $0x60] sm:$0xff]
    %v259 = vld [vmem:[%s2 + $0x68] sm:$0xff]
    %v260 = vld [vmem:[%s2 + $0x70] sm:$0xff]
    %v261 = vld [vmem:[%s2 + $0x78] sm:$0xff]
    %vm262 = vcmask 523264
    %v264 = vsel %vm262, 0.0, 0
    %266 = vmatprep.subr.mxu0 %v247
    %267 = vmatpush1.msra.mxu0 %v246
    %268 = vmatprep.subr.mxu0 %v249
    %269 = vmatpush1.msra.mxu0 %v248
    %270 = vmatprep.subr.mxu0 %v251
    %271 = vmatpush1.msra.mxu0 %v250
    %272 = vmatprep.subr.mxu0 %v253
    %273 = vmatpush1.msra.mxu0 %v252
    %274 = vmatprep.subr.mxu0 %v255
    %275 = vmatpush1.msra.mxu0 %v254
    %276 = vmatprep.subr.mxu0 %v257
    %277 = vmatpush1.msra.mxu0 %v256
    %278 = vmatprep.subr.mxu0 %v259
    %279 = vmatpush1.msra.mxu0 %v258
    %280 = vmatprep.subr.mxu0 %v261
    %281 = vmatpush1.msra.mxu0 %v260
    %282 = vmatprep.subr.mxu0 0.0
    %283 = vmatpush1.msra.mxu0 0.0
    %284 = vmatprep.subr.mxu0 0.0
    %285 = vmatpush1.msra.mxu0 0.0
    %286 = vmatprep.subr.mxu0 0.0
    %287 = vmatpush1.msra.mxu0 0.0
    %288 = vmatprep.subr.mxu0 0.0
    %289 = vmatpush1.msra.mxu0 0.0
    %290 = vmatprep.subr.mxu0 0.0
    %291 = vmatpush1.msra.mxu0 0.0
    %292 = vmatprep.subr.mxu0 0.0
    %293 = vmatpush1.msra.mxu0 0.0
    %294 = vmatprep.subr.mxu0 0.0
    %295 = vmatpush1.msra.mxu0 0.0
    %296 = vmatprep.subr.mxu0 0.0
    %297 = vmatpush1.msra.mxu0 0.0
    %298 = vmatprep.subr.mxu0 0.0
    %299 = vmatpush1.msra.mxu0 0.0
    %300 = vmatprep.subr.mxu0 0.0
    %301 = vmatpush1.msra.mxu0 0.0
    %302 = vmatprep.subr.mxu0 0.0
    %303 = vmatpush1.msra.mxu0 0.0
    %304 = vmatprep.subr.mxu0 0.0
    %305 = vmatpush1.msra.mxu0 0.0
    %306 = vmatprep.subr.mxu0 0.0
    %307 = vmatpush1.msra.mxu0 0.0
    %308 = vmatprep.subr.mxu0 0.0
    %309 = vmatpush1.msra.mxu0 0.0
    %310 = vmatprep.subr.mxu0 0.0
    %311 = vmatpush1.msra.mxu0 0.0
    %312 = vmatprep.subr.mxu0 0.0
    %313 = vmatpush1.msra.mxu0 0.0
    %314 = vmatprep.subr.mxu0 0.0
    %315 = vmatpush1.msra.mxu0 0.0
    %316 = vmatprep.subr.mxu0 0.0
    %317 = vmatpush1.msra.mxu0 0.0
    %318 = vmatprep.subr.mxu0 0.0
    %319 = vmatpush1.msra.mxu0 0.0
    %320 = vmatprep.subr.mxu0 0.0
    %321 = vmatpush1.msra.mxu0 0.0
    %322 = vmatprep.subr.mxu0 0.0
    %323 = vmatpush1.msra.mxu0 0.0
    %324 = vmatprep.subr.mxu0 0.0
    %325 = vmatpush1.msra.mxu0 0.0
    %326 = vmatprep.subr.mxu0 0.0
    %327 = vmatpush1.msra.mxu0 0.0
    %328 = vmatprep.subr.mxu0 0.0
    %329 = vmatpush1.msra.mxu0 0.0
    %330 = vmatprep.mubr.f32.mxu0 0.0
    %331 = vmatmul.mubr.f32.gmra.mrb[0].mxu0 %v264
    %v332 = vpop.f32.mrb[0].mxu0
    %v333 = vadd.f32 0.0, %v332
    %v334 = vpop.f32.mrb[0].mxu0
    %v335 = vadd.f32 0.0, %v334
    %336 = vdwg.mxu0
    %v337 = vadd.f32 %v244, %v333
    %v338 = vadd.f32 %v245, %v335
    %v339 = vtanh.pop %v337
    %v340 = vtanh.pop %v338
    %v341 = vmul.f32 %v339, 0.5
    %v342 = vadd.f32 %v341, 0.5
    %v343 = vmul.f32 %v340, 0.5
    %v344 = vadd.f32 %v343, 0.5
    %v345 = vmul.f32 %v342, 0.0
    %v346 = vmul.f32 %v342, %v340
    %348 = vrot.lane.b32.xlu0 %v346, 64
    %v349 = vpop.permute.xlu0 %348
    %v351 = vadd.f32 %v345, %v349
    %v352 = vtanh.pop %v351
    %v353 = vmul.f32 %v344, %v352
    %355 = vrot.lane.b32.xlu0 %v353, 64
    %v356 = vpop.permute.xlu0 %355
    %v358 = vsel %vm262, %v356, 0.0
    %v359 = vld [vmem:[#allocation4] sm:$0xff]
    %v360 = vld [vmem:[#allocation4 + $0x8] sm:$0xff]
    %v361 = vld [vmem:[#allocation4 + $0x10] sm:$0xff]
    %v362 = vld [vmem:[#allocation4 + $0x18] sm:$0xff]
    %v363 = vld [vmem:[#allocation4 + $0x20] sm:$0xff]
    %v364 = vld [vmem:[#allocation4 + $0x28] sm:$0xff]
    %v365 = vld [vmem:[#allocation4 + $0x30] sm:$0xff]
    %v366 = vld [vmem:[#allocation4 + $0x38] sm:$0xff]
    %v367 = vld [vmem:[#allocation4 + $0x40] sm:$0xff]
    %v368 = vld [vmem:[#allocation4 + $0x48] sm:$0xff]
    %v369 = vld [vmem:[#allocation4 + $0x50] sm:$0xff]
    %v370 = vld [vmem:[#allocation4 + $0x58] sm:$0xff]
    %v371 = vld [vmem:[#allocation4 + $0x60] sm:$0xff]
    %v372 = vld [vmem:[#allocation4 + $0x68] sm:$0xff]
    %v373 = vld [vmem:[#allocation4 + $0x70] sm:$0xff]
    %v374 = vld [vmem:[#allocation4 + $0x78] sm:$0xff]
    %v375 = vld [vmem:[#allocation4 + $0x80] sm:$0xff]
    %v376 = vld [vmem:[#allocation4 + $0x88] sm:$0xff]
    %v377 = vld [vmem:[#allocation4 + $0x90] sm:$0xff]
    %v378 = vld [vmem:[#allocation4 + $0x98] sm:$0xff]
    %v379 = vld [vmem:[#allocation4 + $0xa0] sm:$0xff]
    %v380 = vld [vmem:[#allocation4 + $0xa8] sm:$0xff]
    %v381 = vld [vmem:[#allocation4 + $0xb0] sm:$0xff]
    %v382 = vld [vmem:[#allocation4 + $0xb8] sm:$0xff]
    %v383 = vld [vmem:[#allocation4 + $0xc0] sm:$0xff]
    %v384 = vld [vmem:[#allocation4 + $0xc8] sm:$0xff]
    %v385 = vld [vmem:[#allocation4 + $0xd0] sm:$0xff]
    %v386 = vld [vmem:[#allocation4 + $0xd8] sm:$0xff]
    %v387 = vld [vmem:[#allocation4 + $0xe0] sm:$0xff]
    %v388 = vld [vmem:[#allocation4 + $0xe8] sm:$0xff]
    %v389 = vld [vmem:[#allocation4 + $0xf0] sm:$0xff]
    %v390 = vld [vmem:[#allocation4 + $0xf8] sm:$0xff]
    %391 = vmatprep.subr.mxu0 %v360
    %392 = vmatpush1.msra.mxu0 %v359
    %393 = vmatprep.subr.mxu0 %v362
    %394 = vmatpush1.msra.mxu0 %v361
    %395 = vmatprep.subr.mxu0 %v364
    %396 = vmatpush1.msra.mxu0 %v363
    %397 = vmatprep.subr.mxu0 %v366
    %398 = vmatpush1.msra.mxu0 %v365
    %399 = vmatprep.subr.mxu0 %v368
    %400 = vmatpush1.msra.mxu0 %v367
    %401 = vmatprep.subr.mxu0 %v370
    %402 = vmatpush1.msra.mxu0 %v369
    %403 = vmatprep.subr.mxu0 %v372
    %404 = vmatpush1.msra.mxu0 %v371
    %405 = vmatprep.subr.mxu0 %v374
    %406 = vmatpush1.msra.mxu0 %v373
    %407 = vmatprep.subr.mxu0 %v376
    %408 = vmatpush1.msra.mxu0 %v375
    %409 = vmatprep.subr.mxu0 %v378
    %410 = vmatpush1.msra.mxu0 %v377
    %411 = vmatprep.subr.mxu0 %v380
    %412 = vmatpush1.msra.mxu0 %v379
    %413 = vmatprep.subr.mxu0 %v382
    %414 = vmatpush1.msra.mxu0 %v381
    %415 = vmatprep.subr.mxu0 %v384
    %416 = vmatpush1.msra.mxu0 %v383
    %417 = vmatprep.subr.mxu0 %v386
    %418 = vmatpush1.msra.mxu0 %v385
    %419 = vmatprep.subr.mxu0 %v388
    %420 = vmatpush1.msra.mxu0 %v387
    %421 = vmatprep.subr.mxu0 %v390
    %422 = vmatpush1.msra.mxu0 %v389
    %423 = vmatprep.subr.mxu0 0.0
    %424 = vmatpush1.msra.mxu0 0.0
    %425 = vmatprep.subr.mxu0 0.0
    %426 = vmatpush1.msra.mxu0 0.0
    %427 = vmatprep.subr.mxu0 0.0
    %428 = vmatpush1.msra.mxu0 0.0
    %429 = vmatprep.subr.mxu0 0.0
    %430 = vmatpush1.msra.mxu0 0.0
    %431 = vmatprep.subr.mxu0 0.0
    %432 = vmatpush1.msra.mxu0 0.0
    %433 = vmatprep.subr.mxu0 0.0
    %434 = vmatpush1.msra.mxu0 0.0
    %435 = vmatprep.subr.mxu0 0.0
    %436 = vmatpush1.msra.mxu0 0.0
    %437 = vmatprep.subr.mxu0 0.0
    %438 = vmatpush1.msra.mxu0 0.0
    %439 = vmatprep.subr.mxu0 0.0
    %440 = vmatpush1.msra.mxu0 0.0
    %441 = vmatprep.subr.mxu0 0.0
    %442 = vmatpush1.msra.mxu0 0.0
    %443 = vmatprep.subr.mxu0 0.0
    %444 = vmatpush1.msra.mxu0 0.0
    %445 = vmatprep.subr.mxu0 0.0
    %446 = vmatpush1.msra.mxu0 0.0
    %447 = vmatprep.subr.mxu0 0.0
    %448 = vmatpush1.msra.mxu0 0.0
    %449 = vmatprep.subr.mxu0 0.0
    %450 = vmatpush1.msra.mxu0 0.0
    %451 = vmatprep.subr.mxu0 0.0
    %452 = vmatpush1.msra.mxu0 0.0
    %453 = vmatprep.subr.mxu0 0.0
    %454 = vmatpush1.msra.mxu0 0.0
    %455 = vmatprep.mubr.f32.mxu0 0.0
    %456 = vmatmul.mubr.f32.gmra.mrb[0].mxu0 %v358
    %v457 = vpop.f32.mrb[0].mxu0
    %v458 = vadd.f32 %v237, %v457
    %v459 = vpop.f32.mrb[0].mxu0
    %v460 = vadd.f32 %v241, %v459
    %461 = vdwg.mxu0
    %v462 = vtanh.pop %v458
    %v463 = vtanh.pop %v460
    %v464 = vmul.f32 %v462, 0.5
    %v465 = vadd.f32 %v464, 0.5
    %v466 = vmul.f32 %v463, 0.5
    %v467 = vadd.f32 %v466, 0.5
    %v468 = vmul.f32 %v465, 0.0
    %v469 = vmul.f32 %v465, %v463
    %471 = vrot.lane.b32.xlu0 %v469, 64
    %v472 = vpop.permute.xlu0 %471
    %v474 = vadd.f32 %v468, %v472
    %v475 = vtanh.pop %v474
    %v476 = vmul.f32 %v467, %v475
    %478 = vrot.lane.b32.xlu0 %v476, 64
    %v479 = vpop.permute.xlu0 %478
    %481 = vst.msk [vmem:[#allocation3] sm:$0xff] %vm262, %v479
    %v482 = vld [vmem:[#allocation2 + $0x10] sm:$0xff]
    %v483 = vld [vmem:[#allocation2 + $0x18] sm:$0xff]
    %v484 = vld [vmem:[%s2] sm:$0xff]
    %v485 = vld [vmem:[%s2 + $0x8] sm:$0xff]
    %v486 = vld [vmem:[%s2 + $0x10] sm:$0xff]
    %v487 = vld [vmem:[%s2 + $0x18] sm:$0xff]
    %v488 = vld [vmem:[%s2 + $0x20] sm:$0xff]
    %v489 = vld [vmem:[%s2 + $0x28] sm:$0xff]
    %v490 = vld [vmem:[%s2 + $0x30] sm:$0xff]
    %v491 = vld [vmem:[%s2 + $0x38] sm:$0xff]
    %v492 = vld [vmem:[%s2 + $0x40] sm:$0xff]
    %v493 = vld [vmem:[%s2 + $0x48] sm:$0xff]
    %v494 = vld [vmem:[%s2 + $0x50] sm:$0xff]
    %v495 = vld [vmem:[%s2 + $0x58] sm:$0xff]
    %v496 = vld [vmem:[%s2 + $0x60] sm:$0xff]
    %v497 = vld [vmem:[%s2 + $0x68] sm:$0xff]
    %v498 = vld [vmem:[%s2 + $0x70] sm:$0xff]
    %v499 = vld [vmem:[%s2 + $0x78] sm:$0xff]
    %v500 = vsel %vm262, %v356, 0
    %502 = vmatprep.subr.mxu0 %v485
    %503 = vmatpush1.msra.mxu0 %v484
    %504 = vmatprep.subr.mxu0 %v487
    %505 = vmatpush1.msra.mxu0 %v486
    %506 = vmatprep.subr.mxu0 %v489
    %507 = vmatpush1.msra.mxu0 %v488
    %508 = vmatprep.subr.mxu0 %v491
    %509 = vmatpush1.msra.mxu0 %v490
    %510 = vmatprep.subr.mxu0 %v493
    %511 = vmatpush1.msra.mxu0 %v492
    %512 = vmatprep.subr.mxu0 %v495
    %513 = vmatpush1.msra.mxu0 %v494
    %514 = vmatprep.subr.mxu0 %v497
    %515 = vmatpush1.msra.mxu0 %v496
    %516 = vmatprep.subr.mxu0 %v499
    %517 = vmatpush1.msra.mxu0 %v498
    %518 = vmatprep.subr.mxu0 0.0
    %519 = vmatpush1.msra.mxu0 0.0
    %520 = vmatprep.subr.mxu0 0.0
    %521 = vmatpush1.msra.mxu0 0.0
    %522 = vmatprep.subr.mxu0 0.0
    %523 = vmatpush1.msra.mxu0 0.0
    %524 = vmatprep.subr.mxu0 0.0
    %525 = vmatpush1.msra.mxu0 0.0
    %526 = vmatprep.subr.mxu0 0.0
    %527 = vmatpush1.msra.mxu0 0.0
    %528 = vmatprep.subr.mxu0 0.0
    %529 = vmatpush1.msra.mxu0 0.0
    %530 = vmatprep.subr.mxu0 0.0
    %531 = vmatpush1.msra.mxu0 0.0
    %532 = vmatprep.subr.mxu0 0.0
    %533 = vmatpush1.msra.mxu0 0.0
    %534 = vmatprep.subr.mxu0 0.0
    %535 = vmatpush1.msra.mxu0 0.0
    %536 = vmatprep.subr.mxu0 0.0
    %537 = vmatpush1.msra.mxu0 0.0
    %538 = vmatprep.subr.mxu0 0.0
    %539 = vmatpush1.msra.mxu0 0.0
    %540 = vmatprep.subr.mxu0 0.0
    %541 = vmatpush1.msra.mxu0 0.0
    %542 = vmatprep.subr.mxu0 0.0
    %543 = vmatpush1.msra.mxu0 0.0
    %544 = vmatprep.subr.mxu0 0.0
    %545 = vmatpush1.msra.mxu0 0.0
    %546 = vmatprep.subr.mxu0 0.0
    %547 = vmatpush1.msra.mxu0 0.0
    %548 = vmatprep.subr.mxu0 0.0
    %549 = vmatpush1.msra.mxu0 0.0
    %550 = vmatprep.subr.mxu0 0.0
    %551 = vmatpush1.msra.mxu0 0.0
    %552 = vmatprep.subr.mxu0 0.0
    %553 = vmatpush1.msra.mxu0 0.0
    %554 = vmatprep.subr.mxu0 0.0
    %555 = vmatpush1.msra.mxu0 0.0
    %556 = vmatprep.subr.mxu0 0.0
    %557 = vmatpush1.msra.mxu0 0.0
    %558 = vmatprep.subr.mxu0 0.0
    %559 = vmatpush1.msra.mxu0 0.0
    %560 = vmatprep.subr.mxu0 0.0
    %561 = vmatpush1.msra.mxu0 0.0
    %562 = vmatprep.subr.mxu0 0.0
    %563 = vmatpush1.msra.mxu0 0.0
    %564 = vmatprep.subr.mxu0 0.0
    %565 = vmatpush1.msra.mxu0 0.0
    %566 = vmatprep.mubr.f32.mxu0 0.0
    %567 = vmatmul.mubr.f32.gmra.mrb[0].mxu0 %v500
    %v568 = vpop.f32.mrb[0].mxu0
    %v569 = vadd.f32 0.0, %v568
    %v570 = vpop.f32.mrb[0].mxu0
    %v571 = vadd.f32 0.0, %v570
    %572 = vdwg.mxu0
    %v573 = vadd.f32 %v482, %v569
    %v574 = vadd.f32 %v483, %v571
    %v575 = vtanh.pop %v573
    %v576 = vtanh.pop %v574
    %v577 = vmul.f32 %v575, 0.5
    %v578 = vadd.f32 %v577, 0.5
    %v579 = vmul.f32 %v576, 0.5
    %v580 = vadd.f32 %v579, 0.5
    %v581 = vmul.f32 %v578, %v351
    %v582 = vmul.f32 %v578, %v576
    %584 = vrot.lane.b32.xlu0 %v582, 64
    %v585 = vpop.permute.xlu0 %584
    %v587 = vadd.f32 %v581, %v585
    %v588 = vtanh.pop %v587
    %v589 = vmul.f32 %v580, %v588
    %591 = vrot.lane.b32.xlu0 %v589, 64
    %v592 = vpop.permute.xlu0 %591
    %v594 = vsel %vm262, %v592, %v476
    %v595 = vld [vmem:[#allocation4] sm:$0xff]
    %v596 = vld [vmem:[#allocation4 + $0x8] sm:$0xff]
    %v597 = vld [vmem:[#allocation4 + $0x10] sm:$0xff]
    %v598 = vld [vmem:[#allocation4 + $0x18] sm:$0xff]
    %v599 = vld [vmem:[#allocation4 + $0x20] sm:$0xff]
    %v600 = vld [vmem:[#allocation4 + $0x28] sm:$0xff]
    %v601 = vld [vmem:[#allocation4 + $0x30] sm:$0xff]
    %v602 = vld [vmem:[#allocation4 + $0x38] sm:$0xff]
    %v603 = vld [vmem:[#allocation4 + $0x40] sm:$0xff]
    %v604 = vld [vmem:[#allocation4 + $0x48] sm:$0xff]
    %v605 = vld [vmem:[#allocation4 + $0x50] sm:$0xff]
    %v606 = vld [vmem:[#allocation4 + $0x58] sm:$0xff]
    %v607 = vld [vmem:[#allocation4 + $0x60] sm:$0xff]
    %v608 = vld [vmem:[#allocation4 + $0x68] sm:$0xff]
    %v609 = vld [vmem:[#allocation4 + $0x70] sm:$0xff]
    %v610 = vld [vmem:[#allocation4 + $0x78] sm:$0xff]
    %v611 = vld [vmem:[#allocation4 + $0x80] sm:$0xff]
    %v612 = vld [vmem:[#allocation4 + $0x88] sm:$0xff]
    %v613 = vld [vmem:[#allocation4 + $0x90] sm:$0xff]
    %v614 = vld [vmem:[#allocation4 + $0x98] sm:$0xff]
    %v615 = vld [vmem:[#allocation4 + $0xa0] sm:$0xff]
    %v616 = vld [vmem:[#allocation4 + $0xa8] sm:$0xff]
    %v617 = vld [vmem:[#allocation4 + $0xb0] sm:$0xff]
    %v618 = vld [vmem:[#allocation4 + $0xb8] sm:$0xff]
    %v619 = vld [vmem:[#allocation4 + $0xc0] sm:$0xff]
    %v620 = vld [vmem:[#allocation4 + $0xc8] sm:$0xff]
    %v621 = vld [vmem:[#allocation4 + $0xd0] sm:$0xff]
    %v622 = vld [vmem:[#allocation4 + $0xd8] sm:$0xff]
    %v623 = vld [vmem:[#allocation4 + $0xe0] sm:$0xff]
    %v624 = vld [vmem:[#allocation4 + $0xe8] sm:$0xff]
    %v625 = vld [vmem:[#allocation4 + $0xf0] sm:$0xff]
    %v626 = vld [vmem:[#allocation4 + $0xf8] sm:$0xff]
    %627 = vmatprep.subr.mxu0 %v596
    %628 = vmatpush1.msra.mxu0 %v595
    %629 = vmatprep.subr.mxu0 %v598
    %630 = vmatpush1.msra.mxu0 %v597
    %631 = vmatprep.subr.mxu0 %v600
    %632 = vmatpush1.msra.mxu0 %v599
    %633 = vmatprep.subr.mxu0 %v602
    %634 = vmatpush1.msra.mxu0 %v601
    %635 = vmatprep.subr.mxu0 %v604
    %636 = vmatpush1.msra.mxu0 %v603
    %637 = vmatprep.subr.mxu0 %v606
    %638 = vmatpush1.msra.mxu0 %v605
    %639 = vmatprep.subr.mxu0 %v608
    %640 = vmatpush1.msra.mxu0 %v607
    %641 = vmatprep.subr.mxu0 %v610
    %642 = vmatpush1.msra.mxu0 %v609
    %643 = vmatprep.subr.mxu0 %v612
    %644 = vmatpush1.msra.mxu0 %v611
    %645 = vmatprep.subr.mxu0 %v614
    %646 = vmatpush1.msra.mxu0 %v613
    %647 = vmatprep.subr.mxu0 %v616
    %648 = vmatpush1.msra.mxu0 %v615
    %649 = vmatprep.subr.mxu0 %v618
    %650 = vmatpush1.msra.mxu0 %v617
    %651 = vmatprep.subr.mxu0 %v620
    %652 = vmatpush1.msra.mxu0 %v619
    %653 = vmatprep.subr.mxu0 %v622
    %654 = vmatpush1.msra.mxu0 %v621
    %655 = vmatprep.subr.mxu0 %v624
    %656 = vmatpush1.msra.mxu0 %v623
    %657 = vmatprep.subr.mxu0 %v626
    %658 = vmatpush1.msra.mxu0 %v625
    %659 = vmatprep.subr.mxu0 0.0
    %660 = vmatpush1.msra.mxu0 0.0
    %661 = vmatprep.subr.mxu0 0.0
    %662 = vmatpush1.msra.mxu0 0.0
    %663 = vmatprep.subr.mxu0 0.0
    %664 = vmatpush1.msra.mxu0 0.0
    %665 = vmatprep.subr.mxu0 0.0
    %666 = vmatpush1.msra.mxu0 0.0
    %667 = vmatprep.subr.mxu0 0.0
    %668 = vmatpush1.msra.mxu0 0.0
    %669 = vmatprep.subr.mxu0 0.0
    %670 = vmatpush1.msra.mxu0 0.0
    %671 = vmatprep.subr.mxu0 0.0
    %672 = vmatpush1.msra.mxu0 0.0
    %673 = vmatprep.subr.mxu0 0.0
    %674 = vmatpush1.msra.mxu0 0.0
    %675 = vmatprep.subr.mxu0 0.0
    %676 = vmatpush1.msra.mxu0 0.0
    %677 = vmatprep.subr.mxu0 0.0
    %678 = vmatpush1.msra.mxu0 0.0
    %679 = vmatprep.subr.mxu0 0.0
    %680 = vmatpush1.msra.mxu0 0.0
    %681 = vmatprep.subr.mxu0 0.0
    %682 = vmatpush1.msra.mxu0 0.0
    %683 = vmatprep.subr.mxu0 0.0
    %684 = vmatpush1.msra.mxu0 0.0
    %685 = vmatprep.subr.mxu0 0.0
    %686 = vmatpush1.msra.mxu0 0.0
    %687 = vmatprep.subr.mxu0 0.0
    %688 = vmatpush1.msra.mxu0 0.0
    %689 = vmatprep.subr.mxu0 0.0
    %690 = vmatpush1.msra.mxu0 0.0
    %691 = vmatprep.mubr.f32.mxu0 0.0
    %692 = vmatmul.mubr.f32.gmra.mrb[0].mxu0 %v594
    %v693 = vpop.f32.mrb[0].mxu0
    %v694 = vadd.f32 %v237, %v693
    %v695 = vpop.f32.mrb[0].mxu0
    %v696 = vadd.f32 %v241, %v695
    %697 = vdwg.mxu0
    %v698 = vtanh.pop %v694
    %v699 = vtanh.pop %v696
    %v700 = vmul.f32 %v698, 0.5
    %v701 = vadd.f32 %v700, 0.5
    %v702 = vmul.f32 %v699, 0.5
    %v703 = vadd.f32 %v702, 0.5
    %v704 = vmul.f32 %v701, %v474
    %v705 = vmul.f32 %v701, %v699
    %707 = vrot.lane.b32.xlu0 %v705, 64
    %v708 = vpop.permute.xlu0 %707
    %v710 = vadd.f32 %v704, %v708
    %v711 = vtanh.pop %v710
    %v712 = vmul.f32 %v703, %v711
    %714 = vrot.lane.b32.xlu0 %v712, 64
    %v715 = vpop.permute.xlu0 %714
    %717 = vst.msk [vmem:[#allocation3 + $0x8] sm:$0xff] %vm262, %v715
    %v718 = vld [vmem:[#allocation2 + $0x20] sm:$0xff]
    %v719 = vld [vmem:[#allocation2 + $0x28] sm:$0xff]
    %v720 = vld [vmem:[%s2] sm:$0xff]
    %v721 = vld [vmem:[%s2 + $0x8] sm:$0xff]
    %v722 = vld [vmem:[%s2 + $0x10] sm:$0xff]
    %v723 = vld [vmem:[%s2 + $0x18] sm:$0xff]
    %v724 = vld [vmem:[%s2 + $0x20] sm:$0xff]
    %v725 = vld [vmem:[%s2 + $0x28] sm:$0xff]
    %v726 = vld [vmem:[%s2 + $0x30] sm:$0xff]
    %v727 = vld [vmem:[%s2 + $0x38] sm:$0xff]
    %v728 = vld [vmem:[%s2 + $0x40] sm:$0xff]
    %v729 = vld [vmem:[%s2 + $0x48] sm:$0xff]
    %v730 = vld [vmem:[%s2 + $0x50] sm:$0xff]
    %v731 = vld [vmem:[%s2 + $0x58] sm:$0xff]
    %v732 = vld [vmem:[%s2 + $0x60] sm:$0xff]
    %v733 = vld [vmem:[%s2 + $0x68] sm:$0xff]
    %v734 = vld [vmem:[%s2 + $0x70] sm:$0xff]
    %v735 = vld [vmem:[%s2 + $0x78] sm:$0xff]
    %v736 = vsel %vm262, %v592, 0
    %738 = vmatprep.subr.mxu0 %v721
    %739 = vmatpush1.msra.mxu0 %v720
    %740 = vmatprep.subr.mxu0 %v723
    %741 = vmatpush1.msra.mxu0 %v722
    %742 = vmatprep.subr.mxu0 %v725
    %743 = vmatpush1.msra.mxu0 %v724
    %744 = vmatprep.subr.mxu0 %v727
    %745 = vmatpush1.msra.mxu0 %v726
    %746 = vmatprep.subr.mxu0 %v729
    %747 = vmatpush1.msra.mxu0 %v728
    %748 = vmatprep.subr.mxu0 %v731
    %749 = vmatpush1.msra.mxu0 %v730
    %750 = vmatprep.subr.mxu0 %v733
    %751 = vmatpush1.msra.mxu0 %v732
    %752 = vmatprep.subr.mxu0 %v735
    %753 = vmatpush1.msra.mxu0 %v734
    %754 = vmatprep.subr.mxu0 0.0
    %755 = vmatpush1.msra.mxu0 0.0
    %756 = vmatprep.subr.mxu0 0.0
    %757 = vmatpush1.msra.mxu0 0.0
    %758 = vmatprep.subr.mxu0 0.0
    %759 = vmatpush1.msra.mxu0 0.0
    %760 = vmatprep.subr.mxu0 0.0
    %761 = vmatpush1.msra.mxu0 0.0
    %762 = vmatprep.subr.mxu0 0.0
    %763 = vmatpush1.msra.mxu0 0.0
    %764 = vmatprep.subr.mxu0 0.0
    %765 = vmatpush1.msra.mxu0 0.0
    %766 = vmatprep.subr.mxu0 0.0
    %767 = vmatpush1.msra.mxu0 0.0
    %768 = vmatprep.subr.mxu0 0.0
    %769 = vmatpush1.msra.mxu0 0.0
    %770 = vmatprep.subr.mxu0 0.0
    %771 = vmatpush1.msra.mxu0 0.0
    %772 = vmatprep.subr.mxu0 0.0
    %773 = vmatpush1.msra.mxu0 0.0
    %774 = vmatprep.subr.mxu0 0.0
    %775 = vmatpush1.msra.mxu0 0.0
    %776 = vmatprep.subr.mxu0 0.0
    %777 = vmatpush1.msra.mxu0 0.0
    %778 = vmatprep.subr.mxu0 0.0
    %779 = vmatpush1.msra.mxu0 0.0
    %780 = vmatprep.subr.mxu0 0.0
    %781 = vmatpush1.msra.mxu0 0.0
    %782 = vmatprep.subr.mxu0 0.0
    %783 = vmatpush1.msra.mxu0 0.0
    %784 = vmatprep.subr.mxu0 0.0
    %785 = vmatpush1.msra.mxu0 0.0
    %786 = vmatprep.subr.mxu0 0.0
    %787 = vmatpush1.msra.mxu0 0.0
    %788 = vmatprep.subr.mxu0 0.0
    %789 = vmatpush1.msra.mxu0 0.0
    %790 = vmatprep.subr.mxu0 0.0
    %791 = vmatpush1.msra.mxu0 0.0
    %792 = vmatprep.subr.mxu0 0.0
    %793 = vmatpush1.msra.mxu0 0.0
    %794 = vmatprep.subr.mxu0 0.0
    %795 = vmatpush1.msra.mxu0 0.0
    %796 = vmatprep.subr.mxu0 0.0
    %797 = vmatpush1.msra.mxu0 0.0
    %798 = vmatprep.subr.mxu0 0.0
    %799 = vmatpush1.msra.mxu0 0.0
    %800 = vmatprep.subr.mxu0 0.0
    %801 = vmatpush1.msra.mxu0 0.0
    %802 = vmatprep.mubr.f32.mxu0 0.0
    %803 = vmatmul.mubr.f32.gmra.mrb[0].mxu0 %v736
    %v804 = vpop.f32.mrb[0].mxu0
    %v805 = vadd.f32 0.0, %v804
    %v806 = vpop.f32.mrb[0].mxu0
    %v807 = vadd.f32 0.0, %v806
    %808 = vdwg.mxu0
    %v809 = vadd.f32 %v718, %v805
    %v810 = vadd.f32 %v719, %v807
    %v811 = vtanh.pop %v809
    %v812 = vtanh.pop %v810
    %v813 = vmul.f32 %v811, 0.5
    %v814 = vadd.f32 %v813, 0.5
    %v815 = vmul.f32 %v812, 0.5
    %v816 = vadd.f32 %v815, 0.5
    %v817 = vmul.f32 %v814, %v587
    %v818 = vmul.f32 %v814, %v812
    %820 = vrot.lane.b32.xlu0 %v818, 64
    %v821 = vpop.permute.xlu0 %820
    %v823 = vadd.f32 %v817, %v821
    %v824 = vtanh.pop %v823
    %v825 = vmul.f32 %v816, %v824
    %827 = vrot.lane.b32.xlu0 %v825, 64
    %v828 = vpop.permute.xlu0 %827
    %v830 = vsel %vm262, %v828, %v712
    %v831 = vld [vmem:[#allocation4] sm:$0xff]
    %v832 = vld [vmem:[#allocation4 + $0x8] sm:$0xff]
    %v833 = vld [vmem:[#allocation4 + $0x10] sm:$0xff]
    %v834 = vld [vmem:[#allocation4 + $0x18] sm:$0xff]
    %v835 = vld [vmem:[#allocation4 + $0x20] sm:$0xff]
    %v836 = vld [vmem:[#allocation4 + $0x28] sm:$0xff]
    %v837 = vld [vmem:[#allocation4 + $0x30] sm:$0xff]
    %v838 = vld [vmem:[#allocation4 + $0x38] sm:$0xff]
    %v839 = vld [vmem:[#allocation4 + $0x40] sm:$0xff]
    %v840 = vld [vmem:[#allocation4 + $0x48] sm:$0xff]
    %v841 = vld [vmem:[#allocation4 + $0x50] sm:$0xff]
    %v842 = vld [vmem:[#allocation4 + $0x58] sm:$0xff]
    %v843 = vld [vmem:[#allocation4 + $0x60] sm:$0xff]
    %v844 = vld [vmem:[#allocation4 + $0x68] sm:$0xff]
    %v845 = vld [vmem:[#allocation4 + $0x70] sm:$0xff]
    %v846 = vld [vmem:[#allocation4 + $0x78] sm:$0xff]
    %v847 = vld [vmem:[#allocation4 + $0x80] sm:$0xff]
    %v848 = vld [vmem:[#allocation4 + $0x88] sm:$0xff]
    %v849 = vld [vmem:[#allocation4 + $0x90] sm:$0xff]
    %v850 = vld [vmem:[#allocation4 + $0x98] sm:$0xff]
    %v851 = vld [vmem:[#allocation4 + $0xa0] sm:$0xff]
    %v852 = vld [vmem:[#allocation4 + $0xa8] sm:$0xff]
    %v853 = vld [vmem:[#allocation4 + $0xb0] sm:$0xff]
    %v854 = vld [vmem:[#allocation4 + $0xb8] sm:$0xff]
    %v855 = vld [vmem:[#allocation4 + $0xc0] sm:$0xff]
    %v856 = vld [vmem:[#allocation4 + $0xc8] sm:$0xff]
    %v857 = vld [vmem:[#allocation4 + $0xd0] sm:$0xff]
    %v858 = vld [vmem:[#allocation4 + $0xd8] sm:$0xff]
    %v859 = vld [vmem:[#allocation4 + $0xe0] sm:$0xff]
    %v860 = vld [vmem:[#allocation4 + $0xe8] sm:$0xff]
    %v861 = vld [vmem:[#allocation4 + $0xf0] sm:$0xff]
    %v862 = vld [vmem:[#allocation4 + $0xf8] sm:$0xff]
    %863 = vmatprep.subr.mxu0 %v832
    %864 = vmatpush1.msra.mxu0 %v831
    %865 = vmatprep.subr.mxu0 %v834
    %866 = vmatpush1.msra.mxu0 %v833
    %867 = vmatprep.subr.mxu0 %v836
    %868 = vmatpush1.msra.mxu0 %v835
    %869 = vmatprep.subr.mxu0 %v838
    %870 = vmatpush1.msra.mxu0 %v837
    %871 = vmatprep.subr.mxu0 %v840
    %872 = vmatpush1.msra.mxu0 %v839
    %873 = vmatprep.subr.mxu0 %v842
    %874 = vmatpush1.msra.mxu0 %v841
    %875 = vmatprep.subr.mxu0 %v844
    %876 = vmatpush1.msra.mxu0 %v843
    %877 = vmatprep.subr.mxu0 %v846
    %878 = vmatpush1.msra.mxu0 %v845
    %879 = vmatprep.subr.mxu0 %v848
    %880 = vmatpush1.msra.mxu0 %v847
    %881 = vmatprep.subr.mxu0 %v850
    %882 = vmatpush1.msra.mxu0 %v849
    %883 = vmatprep.subr.mxu0 %v852
    %884 = vmatpush1.msra.mxu0 %v851
    %885 = vmatprep.subr.mxu0 %v854
    %886 = vmatpush1.msra.mxu0 %v853
    %887 = vmatprep.subr.mxu0 %v856
    %888 = vmatpush1.msra.mxu0 %v855
    %889 = vmatprep.subr.mxu0 %v858
    %890 = vmatpush1.msra.mxu0 %v857
    %891 = vmatprep.subr.mxu0 %v860
    %892 = vmatpush1.msra.mxu0 %v859
    %893 = vmatprep.subr.mxu0 %v862
    %894 = vmatpush1.msra.mxu0 %v861
    %895 = vmatprep.subr.mxu0 0.0
    %896 = vmatpush1.msra.mxu0 0.0
    %897 = vmatprep.subr.mxu0 0.0
    %898 = vmatpush1.msra.mxu0 0.0
    %899 = vmatprep.subr.mxu0 0.0
    %900 = vmatpush1.msra.mxu0 0.0
    %901 = vmatprep.subr.mxu0 0.0
    %902 = vmatpush1.msra.mxu0 0.0
    %903 = vmatprep.subr.mxu0 0.0
    %904 = vmatpush1.msra.mxu0 0.0
    %905 = vmatprep.subr.mxu0 0.0
    %906 = vmatpush1.msra.mxu0 0.0
    %907 = vmatprep.subr.mxu0 0.0
    %908 = vmatpush1.msra.mxu0 0.0
    %909 = vmatprep.subr.mxu0 0.0
    %910 = vmatpush1.msra.mxu0 0.0
    %911 = vmatprep.subr.mxu0 0.0
    %912 = vmatpush1.msra.mxu0 0.0
    %913 = vmatprep.subr.mxu0 0.0
    %914 = vmatpush1.msra.mxu0 0.0
    %915 = vmatprep.subr.mxu0 0.0
    %916 = vmatpush1.msra.mxu0 0.0
    %917 = vmatprep.subr.mxu0 0.0
    %918 = vmatpush1.msra.mxu0 0.0
    %919 = vmatprep.subr.mxu0 0.0
    %920 = vmatpush1.msra.mxu0 0.0
    %921 = vmatprep.subr.mxu0 0.0
    %922 = vmatpush1.msra.mxu0 0.0
    %923 = vmatprep.subr.mxu0 0.0
    %924 = vmatpush1.msra.mxu0 0.0
    %925 = vmatprep.subr.mxu0 0.0
    %926 = vmatpush1.msra.mxu0 0.0
    %927 = vmatprep.mubr.f32.mxu0 0.0
    %928 = vmatmul.mubr.f32.gmra.mrb[0].mxu0 %v830
    %v929 = vpop.f32.mrb[0].mxu0
    %v930 = vadd.f32 %v237, %v929
    %v931 = vpop.f32.mrb[0].mxu0
    %v932 = vadd.f32 %v241, %v931
    %933 = vdwg.mxu0
    %v934 = vtanh.pop %v930
    %v935 = vtanh.pop %v932
    %v936 = vmul.f32 %v934, 0.5
    %v937 = vadd.f32 %v936, 0.5
    %v938 = vmul.f32 %v935, 0.5
    %v939 = vadd.f32 %v938, 0.5
    %v940 = vmul.f32 %v937, %v710
    %v941 = vmul.f32 %v937, %v935
    %943 = vrot.lane.b32.xlu0 %v941, 64
    %v944 = vpop.permute.xlu0 %943
    %v946 = vadd.f32 %v940, %v944
    %v947 = vtanh.pop %v946
    %v948 = vmul.f32 %v939, %v947
    %950 = vrot.lane.b32.xlu0 %v948, 64
    %v951 = vpop.permute.xlu0 %950
    %953 = vst.msk [vmem:[#allocation3 + $0x10] sm:$0xff] %vm262, %v951
    %v954 = vld [vmem:[#allocation2 + $0x30] sm:$0xff]
    %v955 = vld [vmem:[#allocation2 + $0x38] sm:$0xff]
    %v956 = vld [vmem:[%s2] sm:$0xff]
    %v957 = vld [vmem:[%s2 + $0x8] sm:$0xff]
    %v958 = vld [vmem:[%s2 + $0x10] sm:$0xff]
    %v959 = vld [vmem:[%s2 + $0x18] sm:$0xff]
    %v960 = vld [vmem:[%s2 + $0x20] sm:$0xff]
    %v961 = vld [vmem:[%s2 + $0x28] sm:$0xff]
    %v962 = vld [vmem:[%s2 + $0x30] sm:$0xff]
    %v963 = vld [vmem:[%s2 + $0x38] sm:$0xff]
    %v964 = vld [vmem:[%s2 + $0x40] sm:$0xff]
    %v965 = vld [vmem:[%s2 + $0x48] sm:$0xff]
    %v966 = vld [vmem:[%s2 + $0x50] sm:$0xff]
    %v967 = vld [vmem:[%s2 + $0x58] sm:$0xff]
    %v968 = vld [vmem:[%s2 + $0x60] sm:$0xff]
    %v969 = vld [vmem:[%s2 + $0x68] sm:$0xff]
    %v970 = vld [vmem:[%s2 + $0x70] sm:$0xff]
    %v971 = vld [vmem:[%s2 + $0x78] sm:$0xff]
    %v972 = vsel %vm262, %v828, 0
    %974 = vmatprep.subr.mxu0 %v957
    %975 = vmatpush1.msra.mxu0 %v956
    %976 = vmatprep.subr.mxu0 %v959
    %977 = vmatpush1.msra.mxu0 %v958
    %978 = vmatprep.subr.mxu0 %v961
    %979 = vmatpush1.msra.mxu0 %v960
    %980 = vmatprep.subr.mxu0 %v963
    %981 = vmatpush1.msra.mxu0 %v962
    %982 = vmatprep.subr.mxu0 %v965
    %983 = vmatpush1.msra.mxu0 %v964
    %984 = vmatprep.subr.mxu0 %v967
    %985 = vmatpush1.msra.mxu0 %v966
    %986 = vmatprep.subr.mxu0 %v969
    %987 = vmatpush1.msra.mxu0 %v968
    %988 = vmatprep.subr.mxu0 %v971
    %989 = vmatpush1.msra.mxu0 %v970
    %990 = vmatprep.subr.mxu0 0.0
    %991 = vmatpush1.msra.mxu0 0.0
    %992 = vmatprep.subr.mxu0 0.0
    %993 = vmatpush1.msra.mxu0 0.0
    %994 = vmatprep.subr.mxu0 0.0
    %995 = vmatpush1.msra.mxu0 0.0
    %996 = vmatprep.subr.mxu0 0.0
    %997 = vmatpush1.msra.mxu0 0.0
    %998 = vmatprep.subr.mxu0 0.0
    %999 = vmatpush1.msra.mxu0 0.0
    %1000 = vmatprep.subr.mxu0 0.0
    %1001 = vmatpush1.msra.mxu0 0.0
    %1002 = vmatprep.subr.mxu0 0.0
    %1003 = vmatpush1.msra.mxu0 0.0
    %1004 = vmatprep.subr.mxu0 0.0
    %1005 = vmatpush1.msra.mxu0 0.0
    %1006 = vmatprep.subr.mxu0 0.0
    %1007 = vmatpush1.msra.mxu0 0.0
    %1008 = vmatprep.subr.mxu0 0.0
    %1009 = vmatpush1.msra.mxu0 0.0
    %1010 = vmatprep.subr.mxu0 0.0
    %1011 = vmatpush1.msra.mxu0 0.0
    %1012 = vmatprep.subr.mxu0 0.0
    %1013 = vmatpush1.msra.mxu0 0.0
    %1014 = vmatprep.subr.mxu0 0.0
    %1015 = vmatpush1.msra.mxu0 0.0
    %1016 = vmatprep.subr.mxu0 0.0
    %1017 = vmatpush1.msra.mxu0 0.0
    %1018 = vmatprep.subr.mxu0 0.0
    %1019 = vmatpush1.msra.mxu0 0.0
    %1020 = vmatprep.subr.mxu0 0.0
    %1021 = vmatpush1.msra.mxu0 0.0
    %1022 = vmatprep.subr.mxu0 0.0
    %1023 = vmatpush1.msra.mxu0 0.0
    %1024 = vmatprep.subr.mxu0 0.0
    %1025 = vmatpush1.msra.mxu0 0.0
    %1026 = vmatprep.subr.mxu0 0.0
    %1027 = vmatpush1.msra.mxu0 0.0
    %1028 = vmatprep.subr.mxu0 0.0
    %1029 = vmatpush1.msra.mxu0 0.0
    %1030 = vmatprep.subr.mxu0 0.0
    %1031 = vmatpush1.msra.mxu0 0.0
    %1032 = vmatprep.subr.mxu0 0.0
    %1033 = vmatpush1.msra.mxu0 0.0
    %1034 = vmatprep.subr.mxu0 0.0
    %1035 = vmatpush1.msra.mxu0 0.0
    %1036 = vmatprep.subr.mxu0 0.0
    %1037 = vmatpush1.msra.mxu0 0.0
    %1038 = vmatprep.mubr.f32.mxu0 0.0
    %1039 = vmatmul.mubr.f32.gmra.mrb[0].mxu0 %v972
    %v1040 = vpop.f32.mrb[0].mxu0
    %v1041 = vadd.f32 0.0, %v1040
    %v1042 = vpop.f32.mrb[0].mxu0
    %v1043 = vadd.f32 0.0, %v1042
    %1044 = vdwg.mxu0
    %v1045 = vadd.f32 %v954, %v1041
    %v1046 = vadd.f32 %v955, %v1043
    %v1047 = vtanh.pop %v1045
    %v1048 = vtanh.pop %v1046
    %v1049 = vmul.f32 %v1047, 0.5
    %v1050 = vadd.f32 %v1049, 0.5
    %v1051 = vmul.f32 %v1048, 0.5
    %v1052 = vadd.f32 %v1051, 0.5
    %v1053 = vmul.f32 %v1050, %v823
    %v1054 = vmul.f32 %v1050, %v1048
    %1056 = vrot.lane.b32.xlu0 %v1054, 64
    %v1057 = vpop.permute.xlu0 %1056
    %v1059 = vadd.f32 %v1053, %v1057
    %v1060 = vtanh.pop %v1059
    %v1061 = vmul.f32 %v1052, %v1060
    %1063 = vrot.lane.b32.xlu0 %v1061, 64
    %v1064 = vpop.permute.xlu0 %1063
    %v1066 = vsel %vm262, %v1064, %v948
    %v1067 = vld [vmem:[#allocation4] sm:$0xff]
    %v1068 = vld [vmem:[#allocation4 + $0x8] sm:$0xff]
    %v1069 = vld [vmem:[#allocation4 + $0x10] sm:$0xff]
    %v1070 = vld [vmem:[#allocation4 + $0x18] sm:$0xff]
    %v1071 = vld [vmem:[#allocation4 + $0x20] sm:$0xff]
    %v1072 = vld [vmem:[#allocation4 + $0x28] sm:$0xff]
    %v1073 = vld [vmem:[#allocation4 + $0x30] sm:$0xff]
    %v1074 = vld [vmem:[#allocation4 + $0x38] sm:$0xff]
    %v1075 = vld [vmem:[#allocation4 + $0x40] sm:$0xff]
    %v1076 = vld [vmem:[#allocation4 + $0x48] sm:$0xff]
    %v1077 = vld [vmem:[#allocation4 + $0x50] sm:$0xff]
    %v1078 = vld [vmem:[#allocation4 + $0x58] sm:$0xff]
    %v1079 = vld [vmem:[#allocation4 + $0x60] sm:$0xff]
    %v1080 = vld [vmem:[#allocation4 + $0x68] sm:$0xff]
    %v1081 = vld [vmem:[#allocation4 + $0x70] sm:$0xff]
    %v1082 = vld [vmem:[#allocation4 + $0x78] sm:$0xff]
    %v1083 = vld [vmem:[#allocation4 + $0x80] sm:$0xff]
    %v1084 = vld [vmem:[#allocation4 + $0x88] sm:$0xff]
    %v1085 = vld [vmem:[#allocation4 + $0x90] sm:$0xff]
    %v1086 = vld [vmem:[#allocation4 + $0x98] sm:$0xff]
    %v1087 = vld [vmem:[#allocation4 + $0xa0] sm:$0xff]
    %v1088 = vld [vmem:[#allocation4 + $0xa8] sm:$0xff]
    %v1089 = vld [vmem:[#allocation4 + $0xb0] sm:$0xff]
    %v1090 = vld [vmem:[#allocation4 + $0xb8] sm:$0xff]
    %v1091 = vld [vmem:[#allocation4 + $0xc0] sm:$0xff]
    %v1092 = vld [vmem:[#allocation4 + $0xc8] sm:$0xff]
    %v1093 = vld [vmem:[#allocation4 + $0xd0] sm:$0xff]
    %v1094 = vld [vmem:[#allocation4 + $0xd8] sm:$0xff]
    %v1095 = vld [vmem:[#allocation4 + $0xe0] sm:$0xff]
    %v1096 = vld [vmem:[#allocation4 + $0xe8] sm:$0xff]
    %v1097 = vld [vmem:[#allocation4 + $0xf0] sm:$0xff]
    %v1098 = vld [vmem:[#allocation4 + $0xf8] sm:$0xff]
    %1099 = vmatprep.subr.mxu0 %v1068
    %1100 = vmatpush1.msra.mxu0 %v1067
    %1101 = vmatprep.subr.mxu0 %v1070
    %1102 = vmatpush1.msra.mxu0 %v1069
    %1103 = vmatprep.subr.mxu0 %v1072
    %1104 = vmatpush1.msra.mxu0 %v1071
    %1105 = vmatprep.subr.mxu0 %v1074
    %1106 = vmatpush1.msra.mxu0 %v1073
    %1107 = vmatprep.subr.mxu0 %v1076
    %1108 = vmatpush1.msra.mxu0 %v1075
    %1109 = vmatprep.subr.mxu0 %v1078
    %1110 = vmatpush1.msra.mxu0 %v1077
    %1111 = vmatprep.subr.mxu0 %v1080
    %1112 = vmatpush1.msra.mxu0 %v1079
    %1113 = vmatprep.subr.mxu0 %v1082
    %1114 = vmatpush1.msra.mxu0 %v1081
    %1115 = vmatprep.subr.mxu0 %v1084
    %1116 = vmatpush1.msra.mxu0 %v1083
    %1117 = vmatprep.subr.mxu0 %v1086
    %1118 = vmatpush1.msra.mxu0 %v1085
    %1119 = vmatprep.subr.mxu0 %v1088
    %1120 = vmatpush1.msra.mxu0 %v1087
    %1121 = vmatprep.subr.mxu0 %v1090
    %1122 = vmatpush1.msra.mxu0 %v1089
    %1123 = vmatprep.subr.mxu0 %v1092
    %1124 = vmatpush1.msra.mxu0 %v1091
    %1125 = vmatprep.subr.mxu0 %v1094
    %1126 = vmatpush1.msra.mxu0 %v1093
    %1127 = vmatprep.subr.mxu0 %v1096
    %1128 = vmatpush1.msra.mxu0 %v1095
    %1129 = vmatprep.subr.mxu0 %v1098
    %1130 = vmatpush1.msra.mxu0 %v1097
    %1131 = vmatprep.subr.mxu0 0.0
    %1132 = vmatpush1.msra.mxu0 0.0
    %1133 = vmatprep.subr.mxu0 0.0
    %1134 = vmatpush1.msra.mxu0 0.0
    %1135 = vmatprep.subr.mxu0 0.0
    %1136 = vmatpush1.msra.mxu0 0.0
    %1137 = vmatprep.subr.mxu0 0.0
    %1138 = vmatpush1.msra.mxu0 0.0
    %1139 = vmatprep.subr.mxu0 0.0
    %1140 = vmatpush1.msra.mxu0 0.0
    %1141 = vmatprep.subr.mxu0 0.0
    %1142 = vmatpush1.msra.mxu0 0.0
    %1143 = vmatprep.subr.mxu0 0.0
    %1144 = vmatpush1.msra.mxu0 0.0
    %1145 = vmatprep.subr.mxu0 0.0
    %1146 = vmatpush1.msra.mxu0 0.0
    %1147 = vmatprep.subr.mxu0 0.0
    %1148 = vmatpush1.msra.mxu0 0.0
    %1149 = vmatprep.subr.mxu0 0.0
    %1150 = vmatpush1.msra.mxu0 0.0
    %1151 = vmatprep.subr.mxu0 0.0
    %1152 = vmatpush1.msra.mxu0 0.0
    %1153 = vmatprep.subr.mxu0 0.0
    %1154 = vmatpush1.msra.mxu0 0.0
    %1155 = vmatprep.subr.mxu0 0.0
    %1156 = vmatpush1.msra.mxu0 0.0
    %1157 = vmatprep.subr.mxu0 0.0
    %1158 = vmatpush1.msra.mxu0 0.0
    %1159 = vmatprep.subr.mxu0 0.0
    %1160 = vmatpush1.msra.mxu0 0.0
    %1161 = vmatprep.subr.mxu0 0.0
    %1162 = vmatpush1.msra.mxu0 0.0
    %1163 = vmatprep.mubr.f32.mxu0 0.0
    %1164 = vmatmul.mubr.f32.gmra.mrb[0].mxu0 %v1066
    %v1165 = vpop.f32.mrb[0].mxu0
    %v1166 = vadd.f32 %v237, %v1165
    %v1167 = vpop.f32.mrb[0].mxu0
    %v1168 = vadd.f32 %v241, %v1167
    %1169 = vdwg.mxu0
    %v1170 = vtanh.pop %v1166
    %v1171 = vtanh.pop %v1168
    %v1172 = vmul.f32 %v1170, 0.5
    %v1173 = vadd.f32 %v1172, 0.5
    %v1174 = vmul.f32 %v1171, 0.5
    %v1175 = vadd.f32 %v1174, 0.5
    %v1176 = vmul.f32 %v1173, %v946
    %v1177 = vmul.f32 %v1173, %v1171
    %1179 = vrot.lane.b32.xlu0 %v1177, 64
    %v1180 = vpop.permute.xlu0 %1179
    %v1182 = vadd.f32 %v1176, %v1180
    %v1183 = vtanh.pop %v1182
    %v1184 = vmul.f32 %v1175, %v1183
    %1186 = vrot.lane.b32.xlu0 %v1184, 64
    %v1187 = vpop.permute.xlu0 %1186
    %1189 = vst.msk [vmem:[#allocation3 + $0x18] sm:$0xff] %vm262, %v1187
    %v1190 = vld [vmem:[#allocation2 + $0x40] sm:$0xff]
    %v1191 = vld [vmem:[#allocation2 + $0x48] sm:$0xff]
    %v1192 = vld [vmem:[%s2] sm:$0xff]
    %v1193 = vld [vmem:[%s2 + $0x8] sm:$0xff]
    %v1194 = vld [vmem:[%s2 + $0x10] sm:$0xff]
    %v1195 = vld [vmem:[%s2 + $0x18] sm:$0xff]
    %v1196 = vld [vmem:[%s2 + $0x20] sm:$0xff]
    %v1197 = vld [vmem:[%s2 + $0x28] sm:$0xff]
    %v1198 = vld [vmem:[%s2 + $0x30] sm:$0xff]
    %v1199 = vld [vmem:[%s2 + $0x38] sm:$0xff]
    %v1200 = vld [vmem:[%s2 + $0x40] sm:$0xff]
    %v1201 = vld [vmem:[%s2 + $0x48] sm:$0xff]
    %v1202 = vld [vmem:[%s2 + $0x50] sm:$0xff]
    %v1203 = vld [vmem:[%s2 + $0x58] sm:$0xff]
    %v1204 = vld [vmem:[%s2 + $0x60] sm:$0xff]
    %v1205 = vld [vmem:[%s2 + $0x68] sm:$0xff]
    %v1206 = vld [vmem:[%s2 + $0x70] sm:$0xff]
    %v1207 = vld [vmem:[%s2 + $0x78] sm:$0xff]
    %v1208 = vsel %vm262, %v1064, 0
    %1210 = vmatprep.subr.mxu0 %v1193
    %1211 = vmatpush1.msra.mxu0 %v1192
    %1212 = vmatprep.subr.mxu0 %v1195
    %1213 = vmatpush1.msra.mxu0 %v1194
    %1214 = vmatprep.subr.mxu0 %v1197
    %1215 = vmatpush1.msra.mxu0 %v1196
    %1216 = vmatprep.subr.mxu0 %v1199
    %1217 = vmatpush1.msra.mxu0 %v1198
    %1218 = vmatprep.subr.mxu0 %v1201
    %1219 = vmatpush1.msra.mxu0 %v1200
    %1220 = vmatprep.subr.mxu0 %v1203
    %1221 = vmatpush1.msra.mxu0 %v1202
    %1222 = vmatprep.subr.mxu0 %v1205
    %1223 = vmatpush1.msra.mxu0 %v1204
    %1224 = vmatprep.subr.mxu0 %v1207
    %1225 = vmatpush1.msra.mxu0 %v1206
    %1226 = vmatprep.subr.mxu0 0.0
    %1227 = vmatpush1.msra.mxu0 0.0
    %1228 = vmatprep.subr.mxu0 0.0
    %1229 = vmatpush1.msra.mxu0 0.0
    %1230 = vmatprep.subr.mxu0 0.0
    %1231 = vmatpush1.msra.mxu0 0.0
    %1232 = vmatprep.subr.mxu0 0.0
    %1233 = vmatpush1.msra.mxu0 0.0
    %1234 = vmatprep.subr.mxu0 0.0
    %1235 = vmatpush1.msra.mxu0 0.0
    %1236 = vmatprep.subr.mxu0 0.0
    %1237 = vmatpush1.msra.mxu0 0.0
    %1238 = vmatprep.subr.mxu0 0.0
    %1239 = vmatpush1.msra.mxu0 0.0
    %1240 = vmatprep.subr.mxu0 0.0
    %1241 = vmatpush1.msra.mxu0 0.0
    %1242 = vmatprep.subr.mxu0 0.0
    %1243 = vmatpush1.msra.mxu0 0.0
    %1244 = vmatprep.subr.mxu0 0.0
    %1245 = vmatpush1.msra.mxu0 0.0
    %1246 = vmatprep.subr.mxu0 0.0
    %1247 = vmatpush1.msra.mxu0 0.0
    %1248 = vmatprep.subr.mxu0 0.0
    %1249 = vmatpush1.msra.mxu0 0.0
    %1250 = vmatprep.subr.mxu0 0.0
    %1251 = vmatpush1.msra.mxu0 0.0
    %1252 = vmatprep.subr.mxu0 0.0
    %1253 = vmatpush1.msra.mxu0 0.0
    %1254 = vmatprep.subr.mxu0 0.0
    %1255 = vmatpush1.msra.mxu0 0.0
    %1256 = vmatprep.subr.mxu0 0.0
    %1257 = vmatpush1.msra.mxu0 0.0
    %1258 = vmatprep.subr.mxu0 0.0
    %1259 = vmatpush1.msra.mxu0 0.0
    %1260 = vmatprep.subr.mxu0 0.0
    %1261 = vmatpush1.msra.mxu0 0.0
    %1262 = vmatprep.subr.mxu0 0.0
    %1263 = vmatpush1.msra.mxu0 0.0
    %1264 = vmatprep.subr.mxu0 0.0
    %1265 = vmatpush1.msra.mxu0 0.0
    %1266 = vmatprep.subr.mxu0 0.0
    %1267 = vmatpush1.msra.mxu0 0.0
    %1268 = vmatprep.subr.mxu0 0.0
    %1269 = vmatpush1.msra.mxu0 0.0
    %1270 = vmatprep.subr.mxu0 0.0
    %1271 = vmatpush1.msra.mxu0 0.0
    %1272 = vmatprep.subr.mxu0 0.0
    %1273 = vmatpush1.msra.mxu0 0.0
    %1274 = vmatprep.mubr.f32.mxu0 0.0
    %1275 = vmatmul.mubr.f32.gmra.mrb[0].mxu0 %v1208
    %v1276 = vpop.f32.mrb[0].mxu0
    %v1277 = vadd.f32 0.0, %v1276
    %v1278 = vpop.f32.mrb[0].mxu0
    %v1279 = vadd.f32 0.0, %v1278
    %1280 = vdwg.mxu0
    %v1281 = vadd.f32 %v1190, %v1277
    %v1282 = vadd.f32 %v1191, %v1279
    %v1283 = vtanh.pop %v1281
    %v1284 = vtanh.pop %v1282
    %v1285 = vmul.f32 %v1283, 0.5
    %v1286 = vadd.f32 %v1285, 0.5
    %v1287 = vmul.f32 %v1284, 0.5
    %v1288 = vadd.f32 %v1287, 0.5
    %v1289 = vmul.f32 %v1286, %v1059
    %v1290 = vmul.f32 %v1286, %v1284
    %1292 = vrot.lane.b32.xlu0 %v1290, 64
    %v1293 = vpop.permute.xlu0 %1292
    %v1295 = vadd.f32 %v1289, %v1293
    %v1296 = vtanh.pop %v1295
    %v1297 = vmul.f32 %v1288, %v1296
    %1299 = vrot.lane.b32.xlu0 %v1297, 64
    %v1300 = vpop.permute.xlu0 %1299
    %v1302 = vsel %vm262, %v1300, %v1184
    %v1303 = vld [vmem:[#allocation4] sm:$0xff]
    %v1304 = vld [vmem:[#allocation4 + $0x8] sm:$0xff]
    %v1305 = vld [vmem:[#allocation4 + $0x10] sm:$0xff]
    %v1306 = vld [vmem:[#allocation4 + $0x18] sm:$0xff]
    %v1307 = vld [vmem:[#allocation4 + $0x20] sm:$0xff]
    %v1308 = vld [vmem:[#allocation4 + $0x28] sm:$0xff]
    %v1309 = vld [vmem:[#allocation4 + $0x30] sm:$0xff]
    %v1310 = vld [vmem:[#allocation4 + $0x38] sm:$0xff]
    %v1311 = vld [vmem:[#allocation4 + $0x40] sm:$0xff]
    %v1312 = vld [vmem:[#allocation4 + $0x48] sm:$0xff]
    %v1313 = vld [vmem:[#allocation4 + $0x50] sm:$0xff]
    %v1314 = vld [vmem:[#allocation4 + $0x58] sm:$0xff]
    %v1315 = vld [vmem:[#allocation4 + $0x60] sm:$0xff]
    %v1316 = vld [vmem:[#allocation4 + $0x68] sm:$0xff]
    %v1317 = vld [vmem:[#allocation4 + $0x70] sm:$0xff]
    %v1318 = vld [vmem:[#allocation4 + $0x78] sm:$0xff]
    %v1319 = vld [vmem:[#allocation4 + $0x80] sm:$0xff]
    %v1320 = vld [vmem:[#allocation4 + $0x88] sm:$0xff]
    %v1321 = vld [vmem:[#allocation4 + $0x90] sm:$0xff]
    %v1322 = vld [vmem:[#allocation4 + $0x98] sm:$0xff]
    %v1323 = vld [vmem:[#allocation4 + $0xa0] sm:$0xff]
    %v1324 = vld [vmem:[#allocation4 + $0xa8] sm:$0xff]
    %v1325 = vld [vmem:[#allocation4 + $0xb0] sm:$0xff]
    %v1326 = vld [vmem:[#allocation4 + $0xb8] sm:$0xff]
    %v1327 = vld [vmem:[#allocation4 + $0xc0] sm:$0xff]
    %v1328 = vld [vmem:[#allocation4 + $0xc8] sm:$0xff]
    %v1329 = vld [vmem:[#allocation4 + $0xd0] sm:$0xff]
    %v1330 = vld [vmem:[#allocation4 + $0xd8] sm:$0xff]
    %v1331 = vld [vmem:[#allocation4 + $0xe0] sm:$0xff]
    %v1332 = vld [vmem:[#allocation4 + $0xe8] sm:$0xff]
    %v1333 = vld [vmem:[#allocation4 + $0xf0] sm:$0xff]
    %v1334 = vld [vmem:[#allocation4 + $0xf8] sm:$0xff]
    %1335 = vmatprep.subr.mxu0 %v1304
    %1336 = vmatpush1.msra.mxu0 %v1303
    %1337 = vmatprep.subr.mxu0 %v1306
    %1338 = vmatpush1.msra.mxu0 %v1305
    %1339 = vmatprep.subr.mxu0 %v1308
    %1340 = vmatpush1.msra.mxu0 %v1307
    %1341 = vmatprep.subr.mxu0 %v1310
    %1342 = vmatpush1.msra.mxu0 %v1309
    %1343 = vmatprep.subr.mxu0 %v1312
    %1344 = vmatpush1.msra.mxu0 %v1311
    %1345 = vmatprep.subr.mxu0 %v1314
    %1346 = vmatpush1.msra.mxu0 %v1313
    %1347 = vmatprep.subr.mxu0 %v1316
    %1348 = vmatpush1.msra.mxu0 %v1315
    %1349 = vmatprep.subr.mxu0 %v1318
    %1350 = vmatpush1.msra.mxu0 %v1317
    %1351 = vmatprep.subr.mxu0 %v1320
    %1352 = vmatpush1.msra.mxu0 %v1319
    %1353 = vmatprep.subr.mxu0 %v1322
    %1354 = vmatpush1.msra.mxu0 %v1321
    %1355 = vmatprep.subr.mxu0 %v1324
    %1356 = vmatpush1.msra.mxu0 %v1323
    %1357 = vmatprep.subr.mxu0 %v1326
    %1358 = vmatpush1.msra.mxu0 %v1325
    %1359 = vmatprep.subr.mxu0 %v1328
    %1360 = vmatpush1.msra.mxu0 %v1327
    %1361 = vmatprep.subr.mxu0 %v1330
    %1362 = vmatpush1.msra.mxu0 %v1329
    %1363 = vmatprep.subr.mxu0 %v1332
    %1364 = vmatpush1.msra.mxu0 %v1331
    %1365 = vmatprep.subr.mxu0 %v1334
    %1366 = vmatpush1.msra.mxu0 %v1333
    %1367 = vmatprep.subr.mxu0 0.0
    %1368 = vmatpush1.msra.mxu0 0.0
    %1369 = vmatprep.subr.mxu0 0.0
    %1370 = vmatpush1.msra.mxu0 0.0
    %1371 = vmatprep.subr.mxu0 0.0
    %1372 = vmatpush1.msra.mxu0 0.0
    %1373 = vmatprep.subr.mxu0 0.0
    %1374 = vmatpush1.msra.mxu0 0.0
    %1375 = vmatprep.subr.mxu0 0.0
    %1376 = vmatpush1.msra.mxu0 0.0
    %1377 = vmatprep.subr.mxu0 0.0
    %1378 = vmatpush1.msra.mxu0 0.0
    %1379 = vmatprep.subr.mxu0 0.0
    %1380 = vmatpush1.msra.mxu0 0.0
    %1381 = vmatprep.subr.mxu0 0.0
    %1382 = vmatpush1.msra.mxu0 0.0
    %1383 = vmatprep.subr.mxu0 0.0
    %1384 = vmatpush1.msra.mxu0 0.0
    %1385 = vmatprep.subr.mxu0 0.0
    %1386 = vmatpush1.msra.mxu0 0.0
    %1387 = vmatprep.subr.mxu0 0.0
    %1388 = vmatpush1.msra.mxu0 0.0
    %1389 = vmatprep.subr.mxu0 0.0
    %1390 = vmatpush1.msra.mxu0 0.0
    %1391 = vmatprep.subr.mxu0 0.0
    %1392 = vmatpush1.msra.mxu0 0.0
    %1393 = vmatprep.subr.mxu0 0.0
    %1394 = vmatpush1.msra.mxu0 0.0
    %1395 = vmatprep.subr.mxu0 0.0
    %1396 = vmatpush1.msra.mxu0 0.0
    %1397 = vmatprep.subr.mxu0 0.0
    %1398 = vmatpush1.msra.mxu0 0.0
    %1399 = vmatprep.mubr.f32.mxu0 0.0
    %1400 = vmatmul.mubr.f32.gmra.mrb[0].mxu0 %v1302
    %v1401 = vpop.f32.mrb[0].mxu0
    %v1402 = vadd.f32 %v237, %v1401
    %v1403 = vpop.f32.mrb[0].mxu0
    %v1404 = vadd.f32 %v241, %v1403
    %1405 = vdwg.mxu0
    %v1406 = vtanh.pop %v1402
    %v1407 = vtanh.pop %v1404
    %v1408 = vmul.f32 %v1406, 0.5
    %v1409 = vadd.f32 %v1408, 0.5
    %v1410 = vmul.f32 %v1407, 0.5
    %v1411 = vadd.f32 %v1410, 0.5
    %v1412 = vmul.f32 %v1409, %v1182
    %v1413 = vmul.f32 %v1409, %v1407
    %1415 = vrot.lane.b32.xlu0 %v1413, 64
    %v1416 = vpop.permute.xlu0 %1415
    %v1418 = vadd.f32 %v1412, %v1416
    %v1419 = vtanh.pop %v1418
    %v1420 = vmul.f32 %v1411, %v1419
    %1422 = vrot.lane.b32.xlu0 %v1420, 64
    %v1423 = vpop.permute.xlu0 %1422
    %1425 = vst.msk [vmem:[#allocation3 + $0x20] sm:$0xff] %vm262, %v1423
    %v1426 = vld [vmem:[#allocation2 + $0x50] sm:$0xff]
    %v1427 = vld [vmem:[#allocation2 + $0x58] sm:$0xff]
    %v1428 = vld [vmem:[%s2] sm:$0xff]
    %v1429 = vld [vmem:[%s2 + $0x8] sm:$0xff]
    %v1430 = vld [vmem:[%s2 + $0x10] sm:$0xff]
    %v1431 = vld [vmem:[%s2 + $0x18] sm:$0xff]
    %v1432 = vld [vmem:[%s2 + $0x20] sm:$0xff]
    %v1433 = vld [vmem:[%s2 + $0x28] sm:$0xff]
    %v1434 = vld [vmem:[%s2 + $0x30] sm:$0xff]
    %v1435 = vld [vmem:[%s2 + $0x38] sm:$0xff]
    %v1436 = vld [vmem:[%s2 + $0x40] sm:$0xff]
    %v1437 = vld [vmem:[%s2 + $0x48] sm:$0xff]
    %v1438 = vld [vmem:[%s2 + $0x50] sm:$0xff]
    %v1439 = vld [vmem:[%s2 + $0x58] sm:$0xff]
    %v1440 = vld [vmem:[%s2 + $0x60] sm:$0xff]
    %v1441 = vld [vmem:[%s2 + $0x68] sm:$0xff]
    %v1442 = vld [vmem:[%s2 + $0x70] sm:$0xff]
    %v1443 = vld [vmem:[%s2 + $0x78] sm:$0xff]
    %v1444 = vsel %vm262, %v1300, 0
    %1446 = vmatprep.subr.mxu0 %v1429
    %1447 = vmatpush1.msra.mxu0 %v1428
    %1448 = vmatprep.subr.mxu0 %v1431
    %1449 = vmatpush1.msra.mxu0 %v1430
    %1450 = vmatprep.subr.mxu0 %v1433
    %1451 = vmatpush1.msra.mxu0 %v1432
    %1452 = vmatprep.subr.mxu0 %v1435
    %1453 = vmatpush1.msra.mxu0 %v1434
    %1454 = vmatprep.subr.mxu0 %v1437
    %1455 = vmatpush1.msra.mxu0 %v1436
    %1456 = vmatprep.subr.mxu0 %v1439
    %1457 = vmatpush1.msra.mxu0 %v1438
    %1458 = vmatprep.subr.mxu0 %v1441
    %1459 = vmatpush1.msra.mxu0 %v1440
    %1460 = vmatprep.subr.mxu0 %v1443
    %1461 = vmatpush1.msra.mxu0 %v1442
    %1462 = vmatprep.subr.mxu0 0.0
    %1463 = vmatpush1.msra.mxu0 0.0
    %1464 = vmatprep.subr.mxu0 0.0
    %1465 = vmatpush1.msra.mxu0 0.0
    %1466 = vmatprep.subr.mxu0 0.0
    %1467 = vmatpush1.msra.mxu0 0.0
    %1468 = vmatprep.subr.mxu0 0.0
    %1469 = vmatpush1.msra.mxu0 0.0
    %1470 = vmatprep.subr.mxu0 0.0
    %1471 = vmatpush1.msra.mxu0 0.0
    %1472 = vmatprep.subr.mxu0 0.0
    %1473 = vmatpush1.msra.mxu0 0.0
    %1474 = vmatprep.subr.mxu0 0.0
    %1475 = vmatpush1.msra.mxu0 0.0
    %1476 = vmatprep.subr.mxu0 0.0
    %1477 = vmatpush1.msra.mxu0 0.0
    %1478 = vmatprep.subr.mxu0 0.0
    %1479 = vmatpush1.msra.mxu0 0.0
    %1480 = vmatprep.subr.mxu0 0.0
    %1481 = vmatpush1.msra.mxu0 0.0
    %1482 = vmatprep.subr.mxu0 0.0
    %1483 = vmatpush1.msra.mxu0 0.0
    %1484 = vmatprep.subr.mxu0 0.0
    %1485 = vmatpush1.msra.mxu0 0.0
    %1486 = vmatprep.subr.mxu0 0.0
    %1487 = vmatpush1.msra.mxu0 0.0
    %1488 = vmatprep.subr.mxu0 0.0
    %1489 = vmatpush1.msra.mxu0 0.0
    %1490 = vmatprep.subr.mxu0 0.0
    %1491 = vmatpush1.msra.mxu0 0.0
    %1492 = vmatprep.subr.mxu0 0.0
    %1493 = vmatpush1.msra.mxu0 0.0
    %1494 = vmatprep.subr.mxu0 0.0
    %1495 = vmatpush1.msra.mxu0 0.0
    %1496 = vmatprep.subr.mxu0 0.0
    %1497 = vmatpush1.msra.mxu0 0.0
    %1498 = vmatprep.subr.mxu0 0.0
    %1499 = vmatpush1.msra.mxu0 0.0
    %1500 = vmatprep.subr.mxu0 0.0
    %1501 = vmatpush1.msra.mxu0 0.0
    %1502 = vmatprep.subr.mxu0 0.0
    %1503 = vmatpush1.msra.mxu0 0.0
    %1504 = vmatprep.subr.mxu0 0.0
    %1505 = vmatpush1.msra.mxu0 0.0
    %1506 = vmatprep.subr.mxu0 0.0
    %1507 = vmatpush1.msra.mxu0 0.0
    %1508 = vmatprep.subr.mxu0 0.0
    %1509 = vmatpush1.msra.mxu0 0.0
    %1510 = vmatprep.mubr.f32.mxu0 0.0
    %1511 = vmatmul.mubr.f32.gmra.mrb[0].mxu0 %v1444
    %v1512 = vpop.f32.mrb[0].mxu0
    %v1513 = vadd.f32 0.0, %v1512
    %v1514 = vpop.f32.mrb[0].mxu0
    %v1515 = vadd.f32 0.0, %v1514
    %1516 = vdwg.mxu0
    %v1517 = vadd.f32 %v1426, %v1513
    %v1518 = vadd.f32 %v1427, %v1515
    %v1519 = vtanh.pop %v1517
    %v1520 = vtanh.pop %v1518
    %v1521 = vmul.f32 %v1519, 0.5
    %v1522 = vadd.f32 %v1521, 0.5
    %v1523 = vmul.f32 %v1520, 0.5
    %v1524 = vadd.f32 %v1523, 0.5
    %v1525 = vmul.f32 %v1522, %v1295
    %v1526 = vmul.f32 %v1522, %v1520
    %1528 = vrot.lane.b32.xlu0 %v1526, 64
    %v1529 = vpop.permute.xlu0 %1528
    %v1531 = vadd.f32 %v1525, %v1529
    %v1532 = vtanh.pop %v1531
    %v1533 = vmul.f32 %v1524, %v1532
    %1535 = vrot.lane.b32.xlu0 %v1533, 64
    %v1536 = vpop.permute.xlu0 %1535
    %v1538 = vsel %vm262, %v1536, %v1420
    %v1539 = vld [vmem:[#allocation4] sm:$0xff]
    %v1540 = vld [vmem:[#allocation4 + $0x8] sm:$0xff]
    %v1541 = vld [vmem:[#allocation4 + $0x10] sm:$0xff]
    %v1542 = vld [vmem:[#allocation4 + $0x18] sm:$0xff]
    %v1543 = vld [vmem:[#allocation4 + $0x20] sm:$0xff]
    %v1544 = vld [vmem:[#allocation4 + $0x28] sm:$0xff]
    %v1545 = vld [vmem:[#allocation4 + $0x30] sm:$0xff]
    %v1546 = vld [vmem:[#allocation4 + $0x38] sm:$0xff]
    %v1547 = vld [vmem:[#allocation4 + $0x40] sm:$0xff]
    %v1548 = vld [vmem:[#allocation4 + $0x48] sm:$0xff]
    %v1549 = vld [vmem:[#allocation4 + $0x50] sm:$0xff]
    %v1550 = vld [vmem:[#allocation4 + $0x58] sm:$0xff]
    %v1551 = vld [vmem:[#allocation4 + $0x60] sm:$0xff]
    %v1552 = vld [vmem:[#allocation4 + $0x68] sm:$0xff]
    %v1553 = vld [vmem:[#allocation4 + $0x70] sm:$0xff]
    %v1554 = vld [vmem:[#allocation4 + $0x78] sm:$0xff]
    %v1555 = vld [vmem:[#allocation4 + $0x80] sm:$0xff]
    %v1556 = vld [vmem:[#allocation4 + $0x88] sm:$0xff]
    %v1557 = vld [vmem:[#allocation4 + $0x90] sm:$0xff]
    %v1558 = vld [vmem:[#allocation4 + $0x98] sm:$0xff]
    %v1559 = vld [vmem:[#allocation4 + $0xa0] sm:$0xff]
    %v1560 = vld [vmem:[#allocation4 + $0xa8] sm:$0xff]
    %v1561 = vld [vmem:[#allocation4 + $0xb0] sm:$0xff]
    %v1562 = vld [vmem:[#allocation4 + $0xb8] sm:$0xff]
    %v1563 = vld [vmem:[#allocation4 + $0xc0] sm:$0xff]
    %v1564 = vld [vmem:[#allocation4 + $0xc8] sm:$0xff]
    %v1565 = vld [vmem:[#allocation4 + $0xd0] sm:$0xff]
    %v1566 = vld [vmem:[#allocation4 + $0xd8] sm:$0xff]
    %v1567 = vld [vmem:[#allocation4 + $0xe0] sm:$0xff]
    %v1568 = vld [vmem:[#allocation4 + $0xe8] sm:$0xff]
    %v1569 = vld [vmem:[#allocation4 + $0xf0] sm:$0xff]
    %v1570 = vld [vmem:[#allocation4 + $0xf8] sm:$0xff]
    %1571 = vmatprep.subr.mxu0 %v1540
    %1572 = vmatpush1.msra.mxu0 %v1539
    %1573 = vmatprep.subr.mxu0 %v1542
    %1574 = vmatpush1.msra.mxu0 %v1541
    %1575 = vmatprep.subr.mxu0 %v1544
    %1576 = vmatpush1.msra.mxu0 %v1543
    %1577 = vmatprep.subr.mxu0 %v1546
    %1578 = vmatpush1.msra.mxu0 %v1545
    %1579 = vmatprep.subr.mxu0 %v1548
    %1580 = vmatpush1.msra.mxu0 %v1547
    %1581 = vmatprep.subr.mxu0 %v1550
    %1582 = vmatpush1.msra.mxu0 %v1549
    %1583 = vmatprep.subr.mxu0 %v1552
    %1584 = vmatpush1.msra.mxu0 %v1551
    %1585 = vmatprep.subr.mxu0 %v1554
    %1586 = vmatpush1.msra.mxu0 %v1553
    %1587 = vmatprep.subr.mxu0 %v1556
    %1588 = vmatpush1.msra.mxu0 %v1555
    %1589 = vmatprep.subr.mxu0 %v1558
    %1590 = vmatpush1.msra.mxu0 %v1557
    %1591 = vmatprep.subr.mxu0 %v1560
    %1592 = vmatpush1.msra.mxu0 %v1559
    %1593 = vmatprep.subr.mxu0 %v1562
    %1594 = vmatpush1.msra.mxu0 %v1561
    %1595 = vmatprep.subr.mxu0 %v1564
    %1596 = vmatpush1.msra.mxu0 %v1563
    %1597 = vmatprep.subr.mxu0 %v1566
    %1598 = vmatpush1.msra.mxu0 %v1565
    %1599 = vmatprep.subr.mxu0 %v1568
    %1600 = vmatpush1.msra.mxu0 %v1567
    %1601 = vmatprep.subr.mxu0 %v1570
    %1602 = vmatpush1.msra.mxu0 %v1569
    %1603 = vmatprep.subr.mxu0 0.0
    %1604 = vmatpush1.msra.mxu0 0.0
    %1605 = vmatprep.subr.mxu0 0.0
    %1606 = vmatpush1.msra.mxu0 0.0
    %1607 = vmatprep.subr.mxu0 0.0
    %1608 = vmatpush1.msra.mxu0 0.0
    %1609 = vmatprep.subr.mxu0 0.0
    %1610 = vmatpush1.msra.mxu0 0.0
    %1611 = vmatprep.subr.mxu0 0.0
    %1612 = vmatpush1.msra.mxu0 0.0
    %1613 = vmatprep.subr.mxu0 0.0
    %1614 = vmatpush1.msra.mxu0 0.0
    %1615 = vmatprep.subr.mxu0 0.0
    %1616 = vmatpush1.msra.mxu0 0.0
    %1617 = vmatprep.subr.mxu0 0.0
    %1618 = vmatpush1.msra.mxu0 0.0
    %1619 = vmatprep.subr.mxu0 0.0
    %1620 = vmatpush1.msra.mxu0 0.0
    %1621 = vmatprep.subr.mxu0 0.0
    %1622 = vmatpush1.msra.mxu0 0.0
    %1623 = vmatprep.subr.mxu0 0.0
    %1624 = vmatpush1.msra.mxu0 0.0
    %1625 = vmatprep.subr.mxu0 0.0
    %1626 = vmatpush1.msra.mxu0 0.0
    %1627 = vmatprep.subr.mxu0 0.0
    %1628 = vmatpush1.msra.mxu0 0.0
    %1629 = vmatprep.subr.mxu0 0.0
    %1630 = vmatpush1.msra.mxu0 0.0
    %1631 = vmatprep.subr.mxu0 0.0
    %1632 = vmatpush1.msra.mxu0 0.0
    %1633 = vmatprep.subr.mxu0 0.0
    %1634 = vmatpush1.msra.mxu0 0.0
    %1635 = vmatprep.mubr.f32.mxu0 0.0
    %1636 = vmatmul.mubr.f32.gmra.mrb[0].mxu0 %v1538
    %v1637 = vpop.f32.mrb[0].mxu0
    %v1638 = vadd.f32 %v237, %v1637
    %v1639 = vpop.f32.mrb[0].mxu0
    %v1640 = vadd.f32 %v241, %v1639
    %1641 = vdwg.mxu0
    %v1642 = vtanh.pop %v1638
    %v1643 = vtanh.pop %v1640
    %v1644 = vmul.f32 %v1642, 0.5
    %v1645 = vadd.f32 %v1644, 0.5
    %v1646 = vmul.f32 %v1643, 0.5
    %v1647 = vadd.f32 %v1646, 0.5
    %v1648 = vmul.f32 %v1645, %v1418
    %v1649 = vmul.f32 %v1645, %v1643
    %1651 = vrot.lane.b32.xlu0 %v1649, 64
    %v1652 = vpop.permute.xlu0 %1651
    %v1654 = vadd.f32 %v1648, %v1652
    %v1655 = vtanh.pop %v1654
    %v1656 = vmul.f32 %v1647, %v1655
    %1658 = vrot.lane.b32.xlu0 %v1656, 64
    %v1659 = vpop.permute.xlu0 %1658
    %1661 = vst.msk [vmem:[#allocation3 + $0x28] sm:$0xff] %vm262, %v1659
    %v1662 = vld [vmem:[#allocation2 + $0x60] sm:$0xff]
    %v1663 = vld [vmem:[#allocation2 + $0x68] sm:$0xff]
    %v1664 = vld [vmem:[%s2] sm:$0xff]
    %v1665 = vld [vmem:[%s2 + $0x8] sm:$0xff]
    %v1666 = vld [vmem:[%s2 + $0x10] sm:$0xff]
    %v1667 = vld [vmem:[%s2 + $0x18] sm:$0xff]
    %v1668 = vld [vmem:[%s2 + $0x20] sm:$0xff]
    %v1669 = vld [vmem:[%s2 + $0x28] sm:$0xff]
    %v1670 = vld [vmem:[%s2 + $0x30] sm:$0xff]
    %v1671 = vld [vmem:[%s2 + $0x38] sm:$0xff]
    %v1672 = vld [vmem:[%s2 + $0x40] sm:$0xff]
    %v1673 = vld [vmem:[%s2 + $0x48] sm:$0xff]
    %v1674 = vld [vmem:[%s2 + $0x50] sm:$0xff]
    %v1675 = vld [vmem:[%s2 + $0x58] sm:$0xff]
    %v1676 = vld [vmem:[%s2 + $0x60] sm:$0xff]
    %v1677 = vld [vmem:[%s2 + $0x68] sm:$0xff]
    %v1678 = vld [vmem:[%s2 + $0x70] sm:$0xff]
    %v1679 = vld [vmem:[%s2 + $0x78] sm:$0xff]
    %v1680 = vsel %vm262, %v1536, 0
    %1682 = vmatprep.subr.mxu0 %v1665
    %1683 = vmatpush1.msra.mxu0 %v1664
    %1684 = vmatprep.subr.mxu0 %v1667
    %1685 = vmatpush1.msra.mxu0 %v1666
    %1686 = vmatprep.subr.mxu0 %v1669
    %1687 = vmatpush1.msra.mxu0 %v1668
    %1688 = vmatprep.subr.mxu0 %v1671
    %1689 = vmatpush1.msra.mxu0 %v1670
    %1690 = vmatprep.subr.mxu0 %v1673
    %1691 = vmatpush1.msra.mxu0 %v1672
    %1692 = vmatprep.subr.mxu0 %v1675
    %1693 = vmatpush1.msra.mxu0 %v1674
    %1694 = vmatprep.subr.mxu0 %v1677
    %1695 = vmatpush1.msra.mxu0 %v1676
    %1696 = vmatprep.subr.mxu0 %v1679
    %1697 = vmatpush1.msra.mxu0 %v1678
    %1698 = vmatprep.subr.mxu0 0.0
    %1699 = vmatpush1.msra.mxu0 0.0
    %1700 = vmatprep.subr.mxu0 0.0
    %1701 = vmatpush1.msra.mxu0 0.0
    %1702 = vmatprep.subr.mxu0 0.0
    %1703 = vmatpush1.msra.mxu0 0.0
    %1704 = vmatprep.subr.mxu0 0.0
    %1705 = vmatpush1.msra.mxu0 0.0
    %1706 = vmatprep.subr.mxu0 0.0
    %1707 = vmatpush1.msra.mxu0 0.0
    %1708 = vmatprep.subr.mxu0 0.0
    %1709 = vmatpush1.msra.mxu0 0.0
    %1710 = vmatprep.subr.mxu0 0.0
    %1711 = vmatpush1.msra.mxu0 0.0
    %1712 = vmatprep.subr.mxu0 0.0
    %1713 = vmatpush1.msra.mxu0 0.0
    %1714 = vmatprep.subr.mxu0 0.0
    %1715 = vmatpush1.msra.mxu0 0.0
    %1716 = vmatprep.subr.mxu0 0.0
    %1717 = vmatpush1.msra.mxu0 0.0
    %1718 = vmatprep.subr.mxu0 0.0
    %1719 = vmatpush1.msra.mxu0 0.0
    %1720 = vmatprep.subr.mxu0 0.0
    %1721 = vmatpush1.msra.mxu0 0.0
    %1722 = vmatprep.subr.mxu0 0.0
    %1723 = vmatpush1.msra.mxu0 0.0
    %1724 = vmatprep.subr.mxu0 0.0
    %1725 = vmatpush1.msra.mxu0 0.0
    %1726 = vmatprep.subr.mxu0 0.0
    %1727 = vmatpush1.msra.mxu0 0.0
    %1728 = vmatprep.subr.mxu0 0.0
    %1729 = vmatpush1.msra.mxu0 0.0
    %1730 = vmatprep.subr.mxu0 0.0
    %1731 = vmatpush1.msra.mxu0 0.0
    %1732 = vmatprep.subr.mxu0 0.0
    %1733 = vmatpush1.msra.mxu0 0.0
    %1734 = vmatprep.subr.mxu0 0.0
    %1735 = vmatpush1.msra.mxu0 0.0
    %1736 = vmatprep.subr.mxu0 0.0
    %1737 = vmatpush1.msra.mxu0 0.0
    %1738 = vmatprep.subr.mxu0 0.0
    %1739 = vmatpush1.msra.mxu0 0.0
    %1740 = vmatprep.subr.mxu0 0.0
    %1741 = vmatpush1.msra.mxu0 0.0
    %1742 = vmatprep.subr.mxu0 0.0
    %1743 = vmatpush1.msra.mxu0 0.0
    %1744 = vmatprep.subr.mxu0 0.0
    %1745 = vmatpush1.msra.mxu0 0.0
    %1746 = vmatprep.mubr.f32.mxu0 0.0
    %1747 = vmatmul.mubr.f32.gmra.mrb[0].mxu0 %v1680
    %v1748 = vpop.f32.mrb[0].mxu0
    %v1749 = vadd.f32 0.0, %v1748
    %v1750 = vpop.f32.mrb[0].mxu0
    %v1751 = vadd.f32 0.0, %v1750
    %1752 = vdwg.mxu0
    %v1753 = vadd.f32 %v1662, %v1749
    %v1754 = vadd.f32 %v1663, %v1751
    %v1755 = vtanh.pop %v1753
    %v1756 = vtanh.pop %v1754
    %v1757 = vmul.f32 %v1755, 0.5
    %v1758 = vadd.f32 %v1757, 0.5
    %v1759 = vmul.f32 %v1756, 0.5
    %v1760 = vadd.f32 %v1759, 0.5
    %v1761 = vmul.f32 %v1758, %v1531
    %v1762 = vmul.f32 %v1758, %v1756
    %1764 = vrot.lane.b32.xlu0 %v1762, 64
    %v1765 = vpop.permute.xlu0 %1764
    %v1767 = vadd.f32 %v1761, %v1765
    %v1768 = vtanh.pop %v1767
    %v1769 = vmul.f32 %v1760, %v1768
    %1771 = vrot.lane.b32.xlu0 %v1769, 64
    %v1772 = vpop.permute.xlu0 %1771
    %v1774 = vsel %vm262, %v1772, %v1656
    %v1775 = vld [vmem:[#allocation4] sm:$0xff]
    %v1776 = vld [vmem:[#allocation4 + $0x8] sm:$0xff]
    %v1777 = vld [vmem:[#allocation4 + $0x10] sm:$0xff]
    %v1778 = vld [vmem:[#allocation4 + $0x18] sm:$0xff]
    %v1779 = vld [vmem:[#allocation4 + $0x20] sm:$0xff]
    %v1780 = vld [vmem:[#allocation4 + $0x28] sm:$0xff]
    %v1781 = vld [vmem:[#allocation4 + $0x30] sm:$0xff]
    %v1782 = vld [vmem:[#allocation4 + $0x38] sm:$0xff]
    %v1783 = vld [vmem:[#allocation4 + $0x40] sm:$0xff]
    %v1784 = vld [vmem:[#allocation4 + $0x48] sm:$0xff]
    %v1785 = vld [vmem:[#allocation4 + $0x50] sm:$0xff]
    %v1786 = vld [vmem:[#allocation4 + $0x58] sm:$0xff]
    %v1787 = vld [vmem:[#allocation4 + $0x60] sm:$0xff]
    %v1788 = vld [vmem:[#allocation4 + $0x68] sm:$0xff]
    %v1789 = vld [vmem:[#allocation4 + $0x70] sm:$0xff]
    %v1790 = vld [vmem:[#allocation4 + $0x78] sm:$0xff]
    %v1791 = vld [vmem:[#allocation4 + $0x80] sm:$0xff]
    %v1792 = vld [vmem:[#allocation4 + $0x88] sm:$0xff]
    %v1793 = vld [vmem:[#allocation4 + $0x90] sm:$0xff]
    %v1794 = vld [vmem:[#allocation4 + $0x98] sm:$0xff]
    %v1795 = vld [vmem:[#allocation4 + $0xa0] sm:$0xff]
    %v1796 = vld [vmem:[#allocation4 + $0xa8] sm:$0xff]
    %v1797 = vld [vmem:[#allocation4 + $0xb0] sm:$0xff]
    %v1798 = vld [vmem:[#allocation4 + $0xb8] sm:$0xff]
    %v1799 = vld [vmem:[#allocation4 + $0xc0] sm:$0xff]
    %v1800 = vld [vmem:[#allocation4 + $0xc8] sm:$0xff]
    %v1801 = vld [vmem:[#allocation4 + $0xd0] sm:$0xff]
    %v1802 = vld [vmem:[#allocation4 + $0xd8] sm:$0xff]
    %v1803 = vld [vmem:[#allocation4 + $0xe0] sm:$0xff]
    %v1804 = vld [vmem:[#allocation4 + $0xe8] sm:$0xff]
    %v1805 = vld [vmem:[#allocation4 + $0xf0] sm:$0xff]
    %v1806 = vld [vmem:[#allocation4 + $0xf8] sm:$0xff]
    %1807 = vmatprep.subr.mxu0 %v1776
    %1808 = vmatpush1.msra.mxu0 %v1775
    %1809 = vmatprep.subr.mxu0 %v1778
    %1810 = vmatpush1.msra.mxu0 %v1777
    %1811 = vmatprep.subr.mxu0 %v1780
    %1812 = vmatpush1.msra.mxu0 %v1779
    %1813 = vmatprep.subr.mxu0 %v1782
    %1814 = vmatpush1.msra.mxu0 %v1781
    %1815 = vmatprep.subr.mxu0 %v1784
    %1816 = vmatpush1.msra.mxu0 %v1783
    %1817 = vmatprep.subr.mxu0 %v1786
    %1818 = vmatpush1.msra.mxu0 %v1785
    %1819 = vmatprep.subr.mxu0 %v1788
    %1820 = vmatpush1.msra.mxu0 %v1787
    %1821 = vmatprep.subr.mxu0 %v1790
    %1822 = vmatpush1.msra.mxu0 %v1789
    %1823 = vmatprep.subr.mxu0 %v1792
    %1824 = vmatpush1.msra.mxu0 %v1791
    %1825 = vmatprep.subr.mxu0 %v1794
    %1826 = vmatpush1.msra.mxu0 %v1793
    %1827 = vmatprep.subr.mxu0 %v1796
    %1828 = vmatpush1.msra.mxu0 %v1795
    %1829 = vmatprep.subr.mxu0 %v1798
    %1830 = vmatpush1.msra.mxu0 %v1797
    %1831 = vmatprep.subr.mxu0 %v1800
    %1832 = vmatpush1.msra.mxu0 %v1799
    %1833 = vmatprep.subr.mxu0 %v1802
    %1834 = vmatpush1.msra.mxu0 %v1801
    %1835 = vmatprep.subr.mxu0 %v1804
    %1836 = vmatpush1.msra.mxu0 %v1803
    %1837 = vmatprep.subr.mxu0 %v1806
    %1838 = vmatpush1.msra.mxu0 %v1805
    %1839 = vmatprep.subr.mxu0 0.0
    %1840 = vmatpush1.msra.mxu0 0.0
    %1841 = vmatprep.subr.mxu0 0.0
    %1842 = vmatpush1.msra.mxu0 0.0
    %1843 = vmatprep.subr.mxu0 0.0
    %1844 = vmatpush1.msra.mxu0 0.0
    %1845 = vmatprep.subr.mxu0 0.0
    %1846 = vmatpush1.msra.mxu0 0.0
    %1847 = vmatprep.subr.mxu0 0.0
    %1848 = vmatpush1.msra.mxu0 0.0
    %1849 = vmatprep.subr.mxu0 0.0
    %1850 = vmatpush1.msra.mxu0 0.0
    %1851 = vmatprep.subr.mxu0 0.0
    %1852 = vmatpush1.msra.mxu0 0.0
    %1853 = vmatprep.subr.mxu0 0.0
    %1854 = vmatpush1.msra.mxu0 0.0
    %1855 = vmatprep.subr.mxu0 0.0
    %1856 = vmatpush1.msra.mxu0 0.0
    %1857 = vmatprep.subr.mxu0 0.0
    %1858 = vmatpush1.msra.mxu0 0.0
    %1859 = vmatprep.subr.mxu0 0.0
    %1860 = vmatpush1.msra.mxu0 0.0
    %1861 = vmatprep.subr.mxu0 0.0
    %1862 = vmatpush1.msra.mxu0 0.0
    %1863 = vmatprep.subr.mxu0 0.0
    %1864 = vmatpush1.msra.mxu0 0.0
    %1865 = vmatprep.subr.mxu0 0.0
    %1866 = vmatpush1.msra.mxu0 0.0
    %1867 = vmatprep.subr.mxu0 0.0
    %1868 = vmatpush1.msra.mxu0 0.0
    %1869 = vmatprep.subr.mxu0 0.0
    %1870 = vmatpush1.msra.mxu0 0.0
    %1871 = vmatprep.mubr.f32.mxu0 0.0
    %1872 = vmatmul.mubr.f32.gmra.mrb[0].mxu0 %v1774
    %v1873 = vpop.f32.mrb[0].mxu0
    %v1874 = vadd.f32 %v237, %v1873
    %v1875 = vpop.f32.mrb[0].mxu0
    %v1876 = vadd.f32 %v241, %v1875
    %1877 = vdwg.mxu0
    %v1878 = vtanh.pop %v1874
    %v1879 = vtanh.pop %v1876
    %v1880 = vmul.f32 %v1878, 0.5
    %v1881 = vadd.f32 %v1880, 0.5
    %v1882 = vmul.f32 %v1879, 0.5
    %v1883 = vadd.f32 %v1882, 0.5
    %v1884 = vmul.f32 %v1881, %v1654
    %v1885 = vmul.f32 %v1881, %v1879
    %1887 = vrot.lane.b32.xlu0 %v1885, 64
    %v1888 = vpop.permute.xlu0 %1887
    %v1890 = vadd.f32 %v1884, %v1888
    %v1891 = vtanh.pop %v1890
    %v1892 = vmul.f32 %v1883, %v1891
    %1894 = vrot.lane.b32.xlu0 %v1892, 64
    %v1895 = vpop.permute.xlu0 %1894
    %1897 = vst.msk [vmem:[#allocation3 + $0x30] sm:$0xff] %vm262, %v1895
    %v1898 = vld [vmem:[#allocation2 + $0x70] sm:$0xff]
    %v1899 = vld [vmem:[#allocation2 + $0x78] sm:$0xff]
    %v1900 = vld [vmem:[%s2] sm:$0xff]
    %v1901 = vld [vmem:[%s2 + $0x8] sm:$0xff]
    %v1902 = vld [vmem:[%s2 + $0x10] sm:$0xff]
    %v1903 = vld [vmem:[%s2 + $0x18] sm:$0xff]
    %v1904 = vld [vmem:[%s2 + $0x20] sm:$0xff]
    %v1905 = vld [vmem:[%s2 + $0x28] sm:$0xff]
    %v1906 = vld [vmem:[%s2 + $0x30] sm:$0xff]
    %v1907 = vld [vmem:[%s2 + $0x38] sm:$0xff]
    %v1908 = vld [vmem:[%s2 + $0x40] sm:$0xff]
    %v1909 = vld [vmem:[%s2 + $0x48] sm:$0xff]
    %v1910 = vld [vmem:[%s2 + $0x50] sm:$0xff]
    %v1911 = vld [vmem:[%s2 + $0x58] sm:$0xff]
    %v1912 = vld [vmem:[%s2 + $0x60] sm:$0xff]
    %v1913 = vld [vmem:[%s2 + $0x68] sm:$0xff]
    %v1914 = vld [vmem:[%s2 + $0x70] sm:$0xff]
    %v1915 = vld [vmem:[%s2 + $0x78] sm:$0xff]
    %v1916 = vsel %vm262, %v1772, 0
    %1918 = vmatprep.subr.mxu0 %v1901
    %1919 = vmatpush1.msra.mxu0 %v1900
    %1920 = vmatprep.subr.mxu0 %v1903
    %1921 = vmatpush1.msra.mxu0 %v1902
    %1922 = vmatprep.subr.mxu0 %v1905
    %1923 = vmatpush1.msra.mxu0 %v1904
    %1924 = vmatprep.subr.mxu0 %v1907
    %1925 = vmatpush1.msra.mxu0 %v1906
    %1926 = vmatprep.subr.mxu0 %v1909
    %1927 = vmatpush1.msra.mxu0 %v1908
    %1928 = vmatprep.subr.mxu0 %v1911
    %1929 = vmatpush1.msra.mxu0 %v1910
    %1930 = vmatprep.subr.mxu0 %v1913
    %1931 = vmatpush1.msra.mxu0 %v1912
    %1932 = vmatprep.subr.mxu0 %v1915
    %1933 = vmatpush1.msra.mxu0 %v1914
    %1934 = vmatprep.subr.mxu0 0.0
    %1935 = vmatpush1.msra.mxu0 0.0
    %1936 = vmatprep.subr.mxu0 0.0
    %1937 = vmatpush1.msra.mxu0 0.0
    %1938 = vmatprep.subr.mxu0 0.0
    %1939 = vmatpush1.msra.mxu0 0.0
    %1940 = vmatprep.subr.mxu0 0.0
    %1941 = vmatpush1.msra.mxu0 0.0
    %1942 = vmatprep.subr.mxu0 0.0
    %1943 = vmatpush1.msra.mxu0 0.0
    %1944 = vmatprep.subr.mxu0 0.0
    %1945 = vmatpush1.msra.mxu0 0.0
    %1946 = vmatprep.subr.mxu0 0.0
    %1947 = vmatpush1.msra.mxu0 0.0
    %1948 = vmatprep.subr.mxu0 0.0
    %1949 = vmatpush1.msra.mxu0 0.0
    %1950 = vmatprep.subr.mxu0 0.0
    %1951 = vmatpush1.msra.mxu0 0.0
    %1952 = vmatprep.subr.mxu0 0.0
    %1953 = vmatpush1.msra.mxu0 0.0
    %1954 = vmatprep.subr.mxu0 0.0
    %1955 = vmatpush1.msra.mxu0 0.0
    %1956 = vmatprep.subr.mxu0 0.0
    %1957 = vmatpush1.msra.mxu0 0.0
    %1958 = vmatprep.subr.mxu0 0.0
    %1959 = vmatpush1.msra.mxu0 0.0
    %1960 = vmatprep.subr.mxu0 0.0
    %1961 = vmatpush1.msra.mxu0 0.0
    %1962 = vmatprep.subr.mxu0 0.0
    %1963 = vmatpush1.msra.mxu0 0.0
    %1964 = vmatprep.subr.mxu0 0.0
    %1965 = vmatpush1.msra.mxu0 0.0
    %1966 = vmatprep.subr.mxu0 0.0
    %1967 = vmatpush1.msra.mxu0 0.0
    %1968 = vmatprep.subr.mxu0 0.0
    %1969 = vmatpush1.msra.mxu0 0.0
    %1970 = vmatprep.subr.mxu0 0.0
    %1971 = vmatpush1.msra.mxu0 0.0
    %1972 = vmatprep.subr.mxu0 0.0
    %1973 = vmatpush1.msra.mxu0 0.0
    %1974 = vmatprep.subr.mxu0 0.0
    %1975 = vmatpush1.msra.mxu0 0.0
    %1976 = vmatprep.subr.mxu0 0.0
    %1977 = vmatpush1.msra.mxu0 0.0
    %1978 = vmatprep.subr.mxu0 0.0
    %1979 = vmatpush1.msra.mxu0 0.0
    %1980 = vmatprep.subr.mxu0 0.0
    %1981 = vmatpush1.msra.mxu0 0.0
    %1982 = vmatprep.mubr.f32.mxu0 0.0
    %1983 = vmatmul.mubr.f32.gmra.mrb[0].mxu0 %v1916
    %v1984 = vpop.f32.mrb[0].mxu0
    %v1985 = vadd.f32 0.0, %v1984
    %v1986 = vpop.f32.mrb[0].mxu0
    %v1987 = vadd.f32 0.0, %v1986
    %1988 = vdwg.mxu0
    %v1989 = vadd.f32 %v1898, %v1985
    %v1990 = vadd.f32 %v1899, %v1987
    %v1991 = vtanh.pop %v1989
    %v1992 = vtanh.pop %v1990
    %v1993 = vmul.f32 %v1991, 0.5
    %v1994 = vadd.f32 %v1993, 0.5
    %v1995 = vmul.f32 %v1992, 0.5
    %v1996 = vadd.f32 %v1995, 0.5
    %v1997 = vmul.f32 %v1994, %v1767
    %v1998 = vmul.f32 %v1994, %v1992
    %2000 = vrot.lane.b32.xlu0 %v1998, 64
    %v2001 = vpop.permute.xlu0 %2000
    %v2003 = vadd.f32 %v1997, %v2001
    %v2004 = vtanh.pop %v2003
    %v2005 = vmul.f32 %v1996, %v2004
    %2007 = vrot.lane.b32.xlu0 %v2005, 64
    %v2008 = vpop.permute.xlu0 %2007
    %v2010 = vsel %vm262, %v2008, %v1892
    %v2011 = vld [vmem:[#allocation4] sm:$0xff]
    %v2012 = vld [vmem:[#allocation4 + $0x8] sm:$0xff]
    %v2013 = vld [vmem:[#allocation4 + $0x10] sm:$0xff]
    %v2014 = vld [vmem:[#allocation4 + $0x18] sm:$0xff]
    %v2015 = vld [vmem:[#allocation4 + $0x20] sm:$0xff]
    %v2016 = vld [vmem:[#allocation4 + $0x28] sm:$0xff]
    %v2017 = vld [vmem:[#allocation4 + $0x30] sm:$0xff]
    %v2018 = vld [vmem:[#allocation4 + $0x38] sm:$0xff]
    %v2019 = vld [vmem:[#allocation4 + $0x40] sm:$0xff]
    %v2020 = vld [vmem:[#allocation4 + $0x48] sm:$0xff]
    %v2021 = vld [vmem:[#allocation4 + $0x50] sm:$0xff]
    %v2022 = vld [vmem:[#allocation4 + $0x58] sm:$0xff]
    %v2023 = vld [vmem:[#allocation4 + $0x60] sm:$0xff]
    %v2024 = vld [vmem:[#allocation4 + $0x68] sm:$0xff]
    %v2025 = vld [vmem:[#allocation4 + $0x70] sm:$0xff]
    %v2026 = vld [vmem:[#allocation4 + $0x78] sm:$0xff]
    %v2027 = vld [vmem:[#allocation4 + $0x80] sm:$0xff]
    %v2028 = vld [vmem:[#allocation4 + $0x88] sm:$0xff]
    %v2029 = vld [vmem:[#allocation4 + $0x90] sm:$0xff]
    %v2030 = vld [vmem:[#allocation4 + $0x98] sm:$0xff]
    %v2031 = vld [vmem:[#allocation4 + $0xa0] sm:$0xff]
    %v2032 = vld [vmem:[#allocation4 + $0xa8] sm:$0xff]
    %v2033 = vld [vmem:[#allocation4 + $0xb0] sm:$0xff]
    %v2034 = vld [vmem:[#allocation4 + $0xb8] sm:$0xff]
    %v2035 = vld [vmem:[#allocation4 + $0xc0] sm:$0xff]
    %v2036 = vld [vmem:[#allocation4 + $0xc8] sm:$0xff]
    %v2037 = vld [vmem:[#allocation4 + $0xd0] sm:$0xff]
    %v2038 = vld [vmem:[#allocation4 + $0xd8] sm:$0xff]
    %v2039 = vld [vmem:[#allocation4 + $0xe0] sm:$0xff]
    %v2040 = vld [vmem:[#allocation4 + $0xe8] sm:$0xff]
    %v2041 = vld [vmem:[#allocation4 + $0xf0] sm:$0xff]
    %v2042 = vld [vmem:[#allocation4 + $0xf8] sm:$0xff]
    %2043 = vmatprep.subr.mxu0 %v2012
    %2044 = vmatpush1.msra.mxu0 %v2011
    %2045 = vmatprep.subr.mxu0 %v2014
    %2046 = vmatpush1.msra.mxu0 %v2013
    %2047 = vmatprep.subr.mxu0 %v2016
    %2048 = vmatpush1.msra.mxu0 %v2015
    %2049 = vmatprep.subr.mxu0 %v2018
    %2050 = vmatpush1.msra.mxu0 %v2017
    %2051 = vmatprep.subr.mxu0 %v2020
    %2052 = vmatpush1.msra.mxu0 %v2019
    %2053 = vmatprep.subr.mxu0 %v2022
    %2054 = vmatpush1.msra.mxu0 %v2021
    %2055 = vmatprep.subr.mxu0 %v2024
    %2056 = vmatpush1.msra.mxu0 %v2023
    %2057 = vmatprep.subr.mxu0 %v2026
    %2058 = vmatpush1.msra.mxu0 %v2025
    %2059 = vmatprep.subr.mxu0 %v2028
    %2060 = vmatpush1.msra.mxu0 %v2027
    %2061 = vmatprep.subr.mxu0 %v2030
    %2062 = vmatpush1.msra.mxu0 %v2029
    %2063 = vmatprep.subr.mxu0 %v2032
    %2064 = vmatpush1.msra.mxu0 %v2031
    %2065 = vmatprep.subr.mxu0 %v2034
    %2066 = vmatpush1.msra.mxu0 %v2033
    %2067 = vmatprep.subr.mxu0 %v2036
    %2068 = vmatpush1.msra.mxu0 %v2035
    %2069 = vmatprep.subr.mxu0 %v2038
    %2070 = vmatpush1.msra.mxu0 %v2037
    %2071 = vmatprep.subr.mxu0 %v2040
    %2072 = vmatpush1.msra.mxu0 %v2039
    %2073 = vmatprep.subr.mxu0 %v2042
    %2074 = vmatpush1.msra.mxu0 %v2041
    %2075 = vmatprep.subr.mxu0 0.0
    %2076 = vmatpush1.msra.mxu0 0.0
    %2077 = vmatprep.subr.mxu0 0.0
    %2078 = vmatpush1.msra.mxu0 0.0
    %2079 = vmatprep.subr.mxu0 0.0
    %2080 = vmatpush1.msra.mxu0 0.0
    %2081 = vmatprep.subr.mxu0 0.0
    %2082 = vmatpush1.msra.mxu0 0.0
    %2083 = vmatprep.subr.mxu0 0.0
    %2084 = vmatpush1.msra.mxu0 0.0
    %2085 = vmatprep.subr.mxu0 0.0
    %2086 = vmatpush1.msra.mxu0 0.0
    %2087 = vmatprep.subr.mxu0 0.0
    %2088 = vmatpush1.msra.mxu0 0.0
    %2089 = vmatprep.subr.mxu0 0.0
    %2090 = vmatpush1.msra.mxu0 0.0
    %2091 = vmatprep.subr.mxu0 0.0
    %2092 = vmatpush1.msra.mxu0 0.0
    %2093 = vmatprep.subr.mxu0 0.0
    %2094 = vmatpush1.msra.mxu0 0.0
    %2095 = vmatprep.subr.mxu0 0.0
    %2096 = vmatpush1.msra.mxu0 0.0
    %2097 = vmatprep.subr.mxu0 0.0
    %2098 = vmatpush1.msra.mxu0 0.0
    %2099 = vmatprep.subr.mxu0 0.0
    %2100 = vmatpush1.msra.mxu0 0.0
    %2101 = vmatprep.subr.mxu0 0.0
    %2102 = vmatpush1.msra.mxu0 0.0
    %2103 = vmatprep.subr.mxu0 0.0
    %2104 = vmatpush1.msra.mxu0 0.0
    %2105 = vmatprep.subr.mxu0 0.0
    %2106 = vmatpush1.msra.mxu0 0.0
    %2107 = vmatprep.mubr.f32.mxu0 0.0
    %2108 = vmatmul.mubr.f32.gmra.mrb[0].mxu0 %v2010
    %v2109 = vpop.f32.mrb[0].mxu0
    %v2110 = vadd.f32 %v237, %v2109
    %v2111 = vpop.f32.mrb[0].mxu0
    %v2112 = vadd.f32 %v241, %v2111
    %2113 = vdwg.mxu0
    %v2114 = vtanh.pop %v2110
    %v2115 = vtanh.pop %v2112
    %v2116 = vmul.f32 %v2114, 0.5
    %v2117 = vadd.f32 %v2116, 0.5
    %v2118 = vmul.f32 %v2115, 0.5
    %v2119 = vadd.f32 %v2118, 0.5
    %v2120 = vmul.f32 %v2117, %v1890
    %v2121 = vmul.f32 %v2117, %v2115
    %2123 = vrot.lane.b32.xlu0 %v2121, 64
    %v2124 = vpop.permute.xlu0 %2123
    %v2126 = vadd.f32 %v2120, %v2124
    %v2127 = vtanh.pop %v2126
    %v2128 = vmul.f32 %v2119, %v2127
    %2130 = vrot.lane.b32.xlu0 %v2128, 64
    %v2131 = vpop.permute.xlu0 %2130
    %2133 = vst.msk [vmem:[#allocation3 + $0x38] sm:$0xff] %vm262, %v2131
    %v2134 = vld [vmem:[#allocation3] sm:$0xff]
    %v2135 = vld [vmem:[#allocation3 + $0x8] sm:$0xff]
    %v2136 = vld [vmem:[#allocation3 + $0x10] sm:$0xff]
    %v2137 = vld [vmem:[#allocation3 + $0x18] sm:$0xff]
    %v2138 = vld [vmem:[#allocation3 + $0x20] sm:$0xff]
    %v2139 = vld [vmem:[#allocation3 + $0x28] sm:$0xff]
    %v2140 = vld [vmem:[#allocation3 + $0x30] sm:$0xff]
    %v2141 = vld [vmem:[#allocation3 + $0x38] sm:$0xff]
    %v2142 = vld [vmem:[%s6] sm:$0xff]
    %v2143 = vld [vmem:[%s6 + $0x8] sm:$0xff]
    %v2144 = vld [vmem:[%s6 + $0x10] sm:$0xff]
    %v2145 = vld [vmem:[%s6 + $0x18] sm:$0xff]
    %v2146 = vld [vmem:[%s6 + $0x20] sm:$0xff]
    %v2147 = vld [vmem:[%s6 + $0x28] sm:$0xff]
    %v2148 = vld [vmem:[%s6 + $0x30] sm:$0xff]
    %v2149 = vld [vmem:[%s6 + $0x38] sm:$0xff]
    %v2150 = vld [vmem:[%s7] sm:$0x1]
    %v2152 = vlaneseq
    %v2153 = vshrl.u32 %v2152, 7
    %v2154 = vsub.s32 0, %v2153
    %v2155 = vrot.slane %v2150, %v2154
    %v2158 = vsel %vm262, %v2134, 0
    %v2161 = vsel %vm262, %v2135, 0
    %v2164 = vsel %vm262, %v2136, 0
    %v2167 = vsel %vm262, %v2137, 0
    %v2170 = vsel %vm262, %v2138, 0
    %v2173 = vsel %vm262, %v2139, 0
    %v2176 = vsel %vm262, %v2140, 0
    %v2179 = vsel %vm262, %v2141, 0
    %2181 = vmatprep.subr.mxu0 0.0
    %2182 = vmatpush1.msra.mxu0 %v2142
    %2183 = vmatprep.subr.mxu0 0.0
    %2184 = vmatpush1.msra.mxu0 %v2143
    %2185 = vmatprep.subr.mxu0 0.0
    %2186 = vmatpush1.msra.mxu0 %v2144
    %2187 = vmatprep.subr.mxu0 0.0
    %2188 = vmatpush1.msra.mxu0 %v2145
    %2189 = vmatprep.subr.mxu0 0.0
    %2190 = vmatpush1.msra.mxu0 %v2146
    %2191 = vmatprep.subr.mxu0 0.0
    %2192 = vmatpush1.msra.mxu0 %v2147
    %2193 = vmatprep.subr.mxu0 0.0
    %2194 = vmatpush1.msra.mxu0 %v2148
    %2195 = vmatprep.subr.mxu0 0.0
    %2196 = vmatpush1.msra.mxu0 %v2149
    %2197 = vmatprep.subr.mxu0 0.0
    %2198 = vmatpush1.msra.mxu0 0.0
    %2199 = vmatprep.subr.mxu0 0.0
    %2200 = vmatpush1.msra.mxu0 0.0
    %2201 = vmatprep.subr.mxu0 0.0
    %2202 = vmatpush1.msra.mxu0 0.0
    %2203 = vmatprep.subr.mxu0 0.0
    %2204 = vmatpush1.msra.mxu0 0.0
    %2205 = vmatprep.subr.mxu0 0.0
    %2206 = vmatpush1.msra.mxu0 0.0
    %2207 = vmatprep.subr.mxu0 0.0
    %2208 = vmatpush1.msra.mxu0 0.0
    %2209 = vmatprep.subr.mxu0 0.0
    %2210 = vmatpush1.msra.mxu0 0.0
    %2211 = vmatprep.subr.mxu0 0.0
    %2212 = vmatpush1.msra.mxu0 0.0
    %2213 = vmatprep.subr.mxu0 0.0
    %2214 = vmatpush1.msra.mxu0 0.0
    %2215 = vmatprep.subr.mxu0 0.0
    %2216 = vmatpush1.msra.mxu0 0.0
    %2217 = vmatprep.subr.mxu0 0.0
    %2218 = vmatpush1.msra.mxu0 0.0
    %2219 = vmatprep.subr.mxu0 0.0
    %2220 = vmatpush1.msra.mxu0 0.0
    %2221 = vmatprep.subr.mxu0 0.0
    %2222 = vmatpush1.msra.mxu0 0.0
    %2223 = vmatprep.subr.mxu0 0.0
    %2224 = vmatpush1.msra.mxu0 0.0
    %2225 = vmatprep.subr.mxu0 0.0
    %2226 = vmatpush1.msra.mxu0 0.0
    %2227 = vmatprep.subr.mxu0 0.0
    %2228 = vmatpush1.msra.mxu0 0.0
    %2229 = vmatprep.subr.mxu0 0.0
    %2230 = vmatpush1.msra.mxu0 0.0
    %2231 = vmatprep.subr.mxu0 0.0
    %2232 = vmatpush1.msra.mxu0 0.0
    %2233 = vmatprep.subr.mxu0 0.0
    %2234 = vmatpush1.msra.mxu0 0.0
    %2235 = vmatprep.subr.mxu0 0.0
    %2236 = vmatpush1.msra.mxu0 0.0
    %2237 = vmatprep.subr.mxu0 0.0
    %2238 = vmatpush1.msra.mxu0 0.0
    %2239 = vmatprep.subr.mxu0 0.0
    %2240 = vmatpush1.msra.mxu0 0.0
    %2241 = vmatprep.subr.mxu0 0.0
    %2242 = vmatpush1.msra.mxu0 0.0
    %2243 = vmatprep.subr.mxu0 0.0
    %2244 = vmatpush1.msra.mxu0 0.0
    %2245 = vmatprep.mubr.f32.mxu0 0.0
    %2246 = vmatmul.mubr.f32.gmra.mrb[0].mxu0 %v2158
    %v2247 = vpop.f32.mrb[0].mxu0
    %v2248 = vadd.f32 %v2155, %v2247
    %v2249 = vpop.f32.mrb[0].mxu0
    %2250 = vmatprep.mubr.f32.mxu0 0.0
    %2251 = vmatmul.mubr.f32.gmra.mrb[0].mxu0 %v2161
    %v2252 = vpop.f32.mrb[0].mxu0
    %v2253 = vadd.f32 %v2155, %v2252
    %v2254 = vpop.f32.mrb[0].mxu0
    %2255 = vmatprep.mubr.f32.mxu0 0.0
    %2256 = vmatmul.mubr.f32.gmra.mrb[0].mxu0 %v2164
    %v2257 = vpop.f32.mrb[0].mxu0
    %v2258 = vadd.f32 %v2155, %v2257
    %v2259 = vpop.f32.mrb[0].mxu0
    %2260 = vmatprep.mubr.f32.mxu0 0.0
    %2261 = vmatmul.mubr.f32.gmra.mrb[0].mxu0 %v2167
    %v2262 = vpop.f32.mrb[0].mxu0
    %v2263 = vadd.f32 %v2155, %v2262
    %v2264 = vpop.f32.mrb[0].mxu0
    %2265 = vmatprep.mubr.f32.mxu0 0.0
    %2266 = vmatmul.mubr.f32.gmra.mrb[0].mxu0 %v2170
    %v2267 = vpop.f32.mrb[0].mxu0
    %v2268 = vadd.f32 %v2155, %v2267
    %v2269 = vpop.f32.mrb[0].mxu0
    %2270 = vmatprep.mubr.f32.mxu0 0.0
    %2271 = vmatmul.mubr.f32.gmra.mrb[0].mxu0 %v2173
    %v2272 = vpop.f32.mrb[0].mxu0
    %v2273 = vadd.f32 %v2155, %v2272
    %v2274 = vpop.f32.mrb[0].mxu0
    %2275 = vmatprep.mubr.f32.mxu0 0.0
    %2276 = vmatmul.mubr.f32.gmra.mrb[0].mxu0 %v2176
    %v2277 = vpop.f32.mrb[0].mxu0
    %v2278 = vadd.f32 %v2155, %v2277
    %v2279 = vpop.f32.mrb[0].mxu0
    %2280 = vmatprep.mubr.f32.mxu0 0.0
    %2281 = vmatmul.mubr.f32.gmra.mrb[0].mxu0 %v2179
    %v2282 = vpop.f32.mrb[0].mxu0
    %v2283 = vadd.f32 %v2155, %v2282
    %v2284 = vpop.f32.mrb[0].mxu0
    %2285 = vdwg.mxu0
    %2286 = vst.msk [vmem:[%s8] sm:$0xff] %vm73, %v2248
    %2287 = vst.msk [vmem:[%s8 + $0x8] sm:$0xff] %vm73, %v2253
    %2288 = vst.msk [vmem:[%s8 + $0x10] sm:$0xff] %vm73, %v2258
    %2289 = vst.msk [vmem:[%s8 + $0x18] sm:$0xff] %vm73, %v2263
    %2290 = vst.msk [vmem:[%s8 + $0x20] sm:$0xff] %vm73, %v2268
    %2291 = vst.msk [vmem:[%s8 + $0x28] sm:$0xff] %vm73, %v2273
    %2292 = vst.msk [vmem:[%s8 + $0x30] sm:$0xff] %vm73, %v2278
    %2293 = vst.msk [vmem:[%s8 + $0x38] sm:$0xff] %vm73, %v2283
    // Predicated region
    $region38: #{tpu_custom_call.1} parent=1 // pred_check
      _
    $region39: #{tpu_custom_call.1} parent=1 // pred_check_branch
      %2295 = sbr.rel (0) target = $region41
    $region40: #{tpu_custom_call.1} parent=1 // pred_region
      _
    $region41: #{tpu_custom_call.1} parent=1 // pred_fallthru
      _
    // Predicated region
    $region42: #{tpu_custom_call.1} parent=1 // pred_check
      _
    $region43: #{tpu_custom_call.1} parent=1 // pred_check_branch
      %2297 = sbr.rel (0) target = $region45
    $region44: #{tpu_custom_call.1} parent=1 // pred_region
      _
    $region45: #{tpu_custom_call.1} parent=1 // pred_fallthru
      _
    %2298 = vsyncpa [#allocation5], 1

</llo_original>
